<compile_context>
chip_gen: v7x
topology: tpu7x:2x2x1
jax: 0.10.0
libtpu: 0.0.40
codegen_flags: <defaults>
</compile_context>

<pallas_src>
import functools
import math

import jax
import jax.numpy as jnp
from jax.experimental import pallas as pl
from jax.experimental.pallas import tpu as pltpu

# ---------------- small BERT config (synthetic, deterministic params) ----------------
BATCH = 2
SEQ = 8
HIDDEN = 32
NUM_HEADS = 2
HEAD_DIM = HIDDEN // NUM_HEADS
INTERMEDIATE = 64
NUM_LAYERS = 2
VOCAB = 100
MAX_POS = 64
TYPE_VOCAB = 2
NUM_CLASSES = 5          # stand-in for len(label_to_command_map)
LN_EPS = 1e-12
LANE_PAD = 128           # lane-dense padded width for the classifier output


def _layernorm(x, g, b):
    """Two-pass LayerNorm over the last axis (mean, then centered variance)."""
    mean = jnp.mean(x, axis=-1, keepdims=True)
    xc = x - mean
    var = jnp.mean(xc * xc, axis=-1, keepdims=True)
    return xc * jax.lax.rsqrt(var + LN_EPS) * g + b


# ------------------------------- fully fused kernel -----------------------------------
def _bert_kernel(emb_ref, bias_ref, cls_sel_ref, emb_g_ref, emb_b_ref,
                 wq_ref, bq_ref, wk_ref, bk_ref, wv_ref, bv_ref,
                 wo_ref, bo_ref,
                 ln1_g_ref, ln1_b_ref,
                 w1_ref, b1_ref, w2_ref, b2_ref,
                 ln2_g_ref, ln2_b_ref,
                 pw_ref, pb_ref, fcw_ref, fcb_ref,
                 logits_ref):
    f32 = jnp.float32

    # Embedding LayerNorm; hidden stays a value (vregs) across the whole kernel.
    hidden = _layernorm(emb_ref[...], emb_g_ref[...], emb_b_ref[...])   # (M, H)
    bias = bias_ref[...]                                                # (M, M), hoisted

    for layer in range(NUM_LAYERS):            # static unroll: single grid step
        # ---- self-attention: per-head matmuls, heads merged via summed output proj ----
        attn = bo_ref[layer]                   # (1, H) -> broadcasts on first add
        for head in range(NUM_HEADS):          # static unroll (tiny)
            i = layer * NUM_HEADS + head
            q = jnp.dot(hidden, wq_ref[i], preferred_element_type=f32) + bq_ref[i]
            k = jnp.dot(hidden, wk_ref[i], preferred_element_type=f32) + bk_ref[i]
            v = jnp.dot(hidden, wv_ref[i], preferred_element_type=f32) + bv_ref[i]
            # q @ k^T over all M rows; block-diagonal bias kills cross-batch terms.
            s = jax.lax.dot_general(q, k, (((1,), (1,)), ((), ())),
                                    preferred_element_type=f32) + bias  # (M, M)
            m = jnp.max(s, axis=-1, keepdims=True)
            p = jnp.exp(s - m)
            p = p * pl.reciprocal(jnp.sum(p, axis=-1, keepdims=True), approx=True)
            ctx = jnp.dot(p, v, preferred_element_type=f32)             # (M, HEAD_DIM)
            attn = attn + jnp.dot(ctx, wo_ref[i], preferred_element_type=f32)
        hidden = _layernorm(attn + hidden, ln1_g_ref[layer], ln1_b_ref[layer])

        # ---- feed-forward (erf-based gelu, BERT semantics) ----------------------------
        ff = jnp.dot(hidden, w1_ref[layer], preferred_element_type=f32) + b1_ref[layer]
        ff = 0.5 * ff * (1.0 + jax.lax.erf(ff * (1.0 / math.sqrt(2.0))))
        ff = jnp.dot(ff, w2_ref[layer], preferred_element_type=f32) + b2_ref[layer]
        hidden = _layernorm(ff + hidden, ln2_g_ref[layer], ln2_b_ref[layer])

    # ---- CLS select (MXU), pooler tanh, lane-dense padded classifier ------------------
    cls = jnp.dot(cls_sel_ref[...], hidden, preferred_element_type=f32)         # (B, H)
    pooled = jnp.tanh(jnp.dot(cls, pw_ref[...], preferred_element_type=f32) + pb_ref[...])
    logits_ref[...] = jnp.dot(pooled, fcw_ref[...],
                              preferred_element_type=f32) + fcb_ref[...]        # (B, 128)


# --------------------------------- model forward ---------------------------------------
def bert_sequence_classifier(params, input_ids, attention_mask):
    B, S = input_ids.shape
    M = B * S
    scale = 1.0 / math.sqrt(HEAD_DIM)

    # Embeddings: word + position + token_type(0)  (gather glue stays in JAX)
    we = jnp.take(params["word_emb"], input_ids, axis=0)            # (B, S, H)
    pe = params["pos_emb"][:S][None, :, :]
    te = params["type_emb"][0][None, None, :]
    emb = (we + pe + te).reshape(M, HIDDEN)

    # (M, M) additive bias: masks padded keys AND cross-batch keys so the whole batch is
    # one block-diagonal softmax inside the kernel (no per-batch loop, no lane slices).
    key_valid = attention_mask.astype(jnp.float32).reshape(M)       # (M,)
    batch_ids = jnp.repeat(jnp.arange(B), S)                        # (M,)
    same_batch = (batch_ids[:, None] == batch_ids[None, :]).astype(jnp.float32)
    bias_mm = (1.0 - same_batch * key_valid[None, :]) * -1e9        # (M, M)

    # CLS-row selector: cls = cls_sel @ hidden (single small matmul, no slicing/concat).
    cls_sel = jnp.zeros((B, M), jnp.float32).at[jnp.arange(B), jnp.arange(B) * S].set(1.0)

    # Per-head weight re-layout (lane-aligned per-head strips); scale folded into Q.
    def heads_w(w):  # (L, H, H) -> (L*NUM_HEADS, H, HEAD_DIM)
        return (w.reshape(NUM_LAYERS, HIDDEN, NUM_HEADS, HEAD_DIM)
                 .transpose(0, 2, 1, 3)
                 .reshape(NUM_LAYERS * NUM_HEADS, HIDDEN, HEAD_DIM))

    def heads_b(b):  # (L, 1, H) -> (L*NUM_HEADS, 1, HEAD_DIM)
        return (b.reshape(NUM_LAYERS, 1, NUM_HEADS, HEAD_DIM)
                 .transpose(0, 2, 1, 3)
                 .reshape(NUM_LAYERS * NUM_HEADS, 1, HEAD_DIM))

    wq = heads_w(params["wq"]) * scale
    bq = heads_b(params["bq"]) * scale
    wk = heads_w(params["wk"])
    bk = heads_b(params["bk"])
    wv = heads_w(params["wv"])
    bv = heads_b(params["bv"])
    # Output projection split along its input (head) axis: heads merged by summation.
    wo = params["wo"].reshape(NUM_LAYERS, NUM_HEADS, HEAD_DIM, HIDDEN) \
                     .reshape(NUM_LAYERS * NUM_HEADS, HEAD_DIM, HIDDEN)

    # Lane-dense (128-wide) padded classifier weights; slice logits back afterwards.
    fc_w_pad = jnp.zeros((HIDDEN, LANE_PAD), jnp.float32).at[:, :NUM_CLASSES].set(params["fc_w"])
    fc_b_pad = jnp.zeros((1, LANE_PAD), jnp.float32).at[:, :NUM_CLASSES].set(params["fc_b"])

    args = (emb, bias_mm, cls_sel, params["emb_ln_g"], params["emb_ln_b"],
            wq, bq, wk, bk, wv, bv, wo, params["bo"],
            params["ln1_g"], params["ln1_b"],
            params["ffn_w1"], params["ffn_b1"], params["ffn_w2"], params["ffn_b2"],
            params["ln2_g"], params["ln2_b"],
            params["pooler_w"], params["pooler_b"], fc_w_pad, fc_b_pad)

    vmem_spec = pl.BlockSpec(memory_space=pltpu.MemorySpace.VMEM)   # whole array in VMEM

    logits_pad = pl.pallas_call(
        _bert_kernel,
        out_shape=jax.ShapeDtypeStruct((B, LANE_PAD), jnp.float32),
        in_specs=[vmem_spec] * len(args),
        out_specs=vmem_spec,
    )(*args)

    return logits_pad[:, :NUM_CLASSES]


# ------------------------------ parameter construction --------------------------------
def init_params(key):
    # TODO(synk): the real module loads frozen 'bert-base-uncased' weights; here we
    # build deterministic synthetic parameters with the same structure (per-layer
    # Q/K/V/output-proj, FFN, LayerNorms, pooler, classifier).
    def nxt():
        nonlocal key
        key, sub = jax.random.split(key)
        return sub

    def randn(shape, scale=0.02):
        return scale * jax.random.normal(nxt(), shape, dtype=jnp.float32)

    L = NUM_LAYERS
    return {
        "word_emb": randn((VOCAB, HIDDEN)),
        "pos_emb": randn((MAX_POS, HIDDEN)),
        "type_emb": randn((TYPE_VOCAB, HIDDEN)),
        "emb_ln_g": jnp.ones((1, HIDDEN), jnp.float32),
        "emb_ln_b": jnp.zeros((1, HIDDEN), jnp.float32),
        "wq": randn((L, HIDDEN, HIDDEN)), "bq": randn((L, 1, HIDDEN)),
        "wk": randn((L, HIDDEN, HIDDEN)), "bk": randn((L, 1, HIDDEN)),
        "wv": randn((L, HIDDEN, HIDDEN)), "bv": randn((L, 1, HIDDEN)),
        "wo": randn((L, HIDDEN, HIDDEN)), "bo": randn((L, 1, HIDDEN)),
        "ln1_g": jnp.ones((L, 1, HIDDEN), jnp.float32),
        "ln1_b": jnp.zeros((L, 1, HIDDEN), jnp.float32),
        "ffn_w1": randn((L, HIDDEN, INTERMEDIATE)),
        "ffn_b1": randn((L, 1, INTERMEDIATE)),
        "ffn_w2": randn((L, INTERMEDIATE, HIDDEN)),
        "ffn_b2": randn((L, 1, HIDDEN)),
        "ln2_g": jnp.ones((L, 1, HIDDEN), jnp.float32),
        "ln2_b": jnp.zeros((L, 1, HIDDEN), jnp.float32),
        "pooler_w": randn((HIDDEN, HIDDEN)),
        "pooler_b": randn((1, HIDDEN)),
        "fc_w": randn((HIDDEN, NUM_CLASSES)),
        "fc_b": randn((1, NUM_CLASSES)),
    }


# ----------------------------- pure-JAX reference (no Pallas) --------------------------
def reference_forward(params, input_ids, attention_mask):
    B, S = input_ids.shape
    we = jnp.take(params["word_emb"], input_ids, axis=0)
    pe = params["pos_emb"][:S][None, :, :]
    te = params["type_emb"][0][None, None, :]
    x = (we + pe + te).reshape(B * S, HIDDEN)

    def ln(x, g, b):
        m = jnp.mean(x, axis=-1, keepdims=True)
        v = jnp.mean(jnp.square(x - m), axis=-1, keepdims=True)
        return (x - m) / jnp.sqrt(v + LN_EPS) * g + b

    h = ln(x, params["emb_ln_g"], params["emb_ln_b"])
    bias = (1.0 - attention_mask.astype(jnp.float32)) * -1e9          # (B, S)

    def split(t):  # (B*S, H) -> (B, NUM_HEADS, S, HEAD_DIM)
        return t.reshape(B, S, NUM_HEADS, HEAD_DIM).transpose(0, 2, 1, 3)

    for l in range(NUM_LAYERS):
        q = split(h @ params["wq"][l] + params["bq"][l])
        k = split(h @ params["wk"][l] + params["bk"][l])
        v = split(h @ params["wv"][l] + params["bv"][l])
        s = jnp.einsum("bhqd,bhkd->bhqk", q, k) / math.sqrt(HEAD_DIM)
        s = s + bias[:, None, None, :]
        p = jax.nn.softmax(s, axis=-1)
        ctx = jnp.einsum("bhqk,bhkd->bhqd", p, v).transpose(0, 2, 1, 3).reshape(B * S, HIDDEN)
        h = ln(ctx @ params["wo"][l] + params["bo"][l] + h,
               params["ln1_g"][l], params["ln1_b"][l])
        ff = h @ params["ffn_w1"][l] + params["ffn_b1"][l]
        ff = 0.5 * ff * (1.0 + jax.lax.erf(ff / math.sqrt(2.0)))
        ff = ff @ params["ffn_w2"][l] + params["ffn_b2"][l]
        h = ln(ff + h, params["ln2_g"][l], params["ln2_b"][l])

    cls = h.reshape(B, S, HIDDEN)[:, 0, :]
    pooled = jnp.tanh(cls @ params["pooler_w"] + params["pooler_b"])
    return pooled @ params["fc_w"] + params["fc_b"]


# --------------------------------------- main ------------------------------------------
if __name__ == "__main__":
    root = jax.random.PRNGKey(0)
    k_param, k_ids = jax.random.split(root)

    params = init_params(k_param)

    input_ids = jax.random.randint(k_ids, (BATCH, SEQ), 0, VOCAB, dtype=jnp.int32)
    attention_mask = jnp.array(
        [[1, 1, 1, 1, 1, 1, 1, 1],
         [1, 1, 1, 1, 1, 0, 0, 0]], dtype=jnp.int32)

    fwd = jax.jit(functools.partial(bert_sequence_classifier, params))
    logits = fwd(input_ids, attention_mask)
    jax.block_until_ready(logits)

    assert logits.shape == (BATCH, NUM_CLASSES)
    assert logits.dtype == jnp.float32

    ref = reference_forward(params, input_ids, attention_mask)
    assert jnp.allclose(logits, ref, rtol=5e-2, atol=2e-3), (logits, ref)

    print("KERNEL_OK")
</pallas_src>

<mosaic_0001>
module attributes {stable_mosaic.version = 11 : i64} {
  func.func @_bert_kernel(%arg0: memref<16x32xf32, #tpu.memory_space<vmem>>, %arg1: memref<16x16xf32, #tpu.memory_space<vmem>>, %arg2: memref<2x16xf32, #tpu.memory_space<vmem>>, %arg3: memref<1x32xf32, #tpu.memory_space<vmem>>, %arg4: memref<1x32xf32, #tpu.memory_space<vmem>>, %arg5: memref<4x32x16xf32, #tpu.memory_space<vmem>>, %arg6: memref<4x1x16xf32, #tpu.memory_space<vmem>>, %arg7: memref<4x32x16xf32, #tpu.memory_space<vmem>>, %arg8: memref<4x1x16xf32, #tpu.memory_space<vmem>>, %arg9: memref<4x32x16xf32, #tpu.memory_space<vmem>>, %arg10: memref<4x1x16xf32, #tpu.memory_space<vmem>>, %arg11: memref<4x16x32xf32, #tpu.memory_space<vmem>>, %arg12: memref<2x1x32xf32, #tpu.memory_space<vmem>>, %arg13: memref<2x1x32xf32, #tpu.memory_space<vmem>>, %arg14: memref<2x1x32xf32, #tpu.memory_space<vmem>>, %arg15: memref<2x32x64xf32, #tpu.memory_space<vmem>>, %arg16: memref<2x1x64xf32, #tpu.memory_space<vmem>>, %arg17: memref<2x64x32xf32, #tpu.memory_space<vmem>>, %arg18: memref<2x1x32xf32, #tpu.memory_space<vmem>>, %arg19: memref<2x1x32xf32, #tpu.memory_space<vmem>>, %arg20: memref<2x1x32xf32, #tpu.memory_space<vmem>>, %arg21: memref<32x32xf32, #tpu.memory_space<vmem>>, %arg22: memref<1x32xf32, #tpu.memory_space<vmem>>, %arg23: memref<32x128xf32, #tpu.memory_space<vmem>>, %arg24: memref<1x128xf32, #tpu.memory_space<vmem>>, %arg25: memref<2x128xf32, #tpu.memory_space<vmem>>) attributes {dimension_semantics = [], scalar_prefetch = 0 : i64, scratch_operands = 0 : i64, tpu.core_type = #tpu.core_type<tc>} {
    %c0 = arith.constant 0 : index
    %c0_0 = arith.constant 0 : index
    %0 = vector.load %arg0[%c0, %c0_0] : memref<16x32xf32, #tpu.memory_space<vmem>>, vector<16x32xf32>
    %c0_1 = arith.constant 0 : index
    %c0_2 = arith.constant 0 : index
    %1 = vector.load %arg3[%c0_1, %c0_2] : memref<1x32xf32, #tpu.memory_space<vmem>>, vector<1x32xf32>
    %c0_3 = arith.constant 0 : index
    %c0_4 = arith.constant 0 : index
    %2 = vector.load %arg4[%c0_3, %c0_4] : memref<1x32xf32, #tpu.memory_space<vmem>>, vector<1x32xf32>
    %cst = arith.constant dense<0.000000e+00> : vector<16xf32>
    %3 = vector.multi_reduction <add>, %0, %cst [1] : vector<16x32xf32> to vector<16xf32>
    %4 = vector.shape_cast %3 : vector<16xf32> to vector<16x1xf32>
    %cst_5 = arith.constant 3.200000e+01 : f32
    %5 = vector.broadcast %cst_5 : f32 to vector<16x1xf32>
    %6 = arith.divf %4, %5 : vector<16x1xf32>
    %7 = vector.broadcast %6 : vector<16x1xf32> to vector<16x32xf32>
    %8 = arith.subf %0, %7 : vector<16x32xf32>
    %9 = arith.mulf %8, %8 : vector<16x32xf32>
    %cst_6 = arith.constant dense<0.000000e+00> : vector<16xf32>
    %10 = vector.multi_reduction <add>, %9, %cst_6 [1] : vector<16x32xf32> to vector<16xf32>
    %11 = vector.shape_cast %10 : vector<16xf32> to vector<16x1xf32>
    %cst_7 = arith.constant 3.200000e+01 : f32
    %12 = vector.broadcast %cst_7 : f32 to vector<16x1xf32>
    %13 = arith.divf %11, %12 : vector<16x1xf32>
    %cst_8 = arith.constant 9.99999996E-13 : f32
    %14 = vector.broadcast %cst_8 : f32 to vector<16x1xf32>
    %15 = arith.addf %13, %14 : vector<16x1xf32>
    %16 = math.rsqrt %15 : vector<16x1xf32>
    %17 = vector.broadcast %16 : vector<16x1xf32> to vector<16x32xf32>
    %18 = arith.mulf %8, %17 : vector<16x32xf32>
    %19 = vector.broadcast %1 : vector<1x32xf32> to vector<16x32xf32>
    %20 = arith.mulf %18, %19 : vector<16x32xf32>
    %21 = vector.broadcast %2 : vector<1x32xf32> to vector<16x32xf32>
    %22 = arith.addf %20, %21 : vector<16x32xf32>
    %c0_9 = arith.constant 0 : index
    %c0_10 = arith.constant 0 : index
    %23 = vector.load %arg1[%c0_9, %c0_10] : memref<16x16xf32, #tpu.memory_space<vmem>>, vector<16x16xf32>
    %c0_11 = arith.constant 0 : index
    %c0_12 = arith.constant 0 : index
    %c0_13 = arith.constant 0 : index
    %24 = vector.load %arg12[%c0_11, %c0_12, %c0_13] : memref<2x1x32xf32, #tpu.memory_space<vmem>>, vector<1x1x32xf32>
    %25 = vector.shape_cast %24 : vector<1x1x32xf32> to vector<1x32xf32>
    %c0_14 = arith.constant 0 : index
    %c0_15 = arith.constant 0 : index
    %c0_16 = arith.constant 0 : index
    %26 = vector.load %arg5[%c0_14, %c0_15, %c0_16] : memref<4x32x16xf32, #tpu.memory_space<vmem>>, vector<1x32x16xf32>
    %27 = vector.shape_cast %26 : vector<1x32x16xf32> to vector<32x16xf32>
    %cst_17 = arith.constant dense<0.000000e+00> : vector<16x16xf32>
    %28 = tpu.matmul %22, %27, %cst_17 {dimension_numbers = #tpu.dot_dimension_numbers<[1], [0], [0], [1], [0, 0, 1, 1], [], []>} : vector<16x32xf32>, vector<32x16xf32>, vector<16x16xf32> -> vector<16x16xf32>
    %c0_18 = arith.constant 0 : index
    %c0_19 = arith.constant 0 : index
    %c0_20 = arith.constant 0 : index
    %29 = vector.load %arg6[%c0_18, %c0_19, %c0_20] : memref<4x1x16xf32, #tpu.memory_space<vmem>>, vector<1x1x16xf32>
    %30 = vector.shape_cast %29 : vector<1x1x16xf32> to vector<1x16xf32>
    %31 = vector.broadcast %30 : vector<1x16xf32> to vector<16x16xf32>
    %32 = arith.addf %28, %31 : vector<16x16xf32>
    %c0_21 = arith.constant 0 : index
    %c0_22 = arith.constant 0 : index
    %c0_23 = arith.constant 0 : index
    %33 = vector.load %arg7[%c0_21, %c0_22, %c0_23] : memref<4x32x16xf32, #tpu.memory_space<vmem>>, vector<1x32x16xf32>
    %34 = vector.shape_cast %33 : vector<1x32x16xf32> to vector<32x16xf32>
    %cst_24 = arith.constant dense<0.000000e+00> : vector<16x16xf32>
    %35 = tpu.matmul %22, %34, %cst_24 {dimension_numbers = #tpu.dot_dimension_numbers<[1], [0], [0], [1], [0, 0, 1, 1], [], []>} : vector<16x32xf32>, vector<32x16xf32>, vector<16x16xf32> -> vector<16x16xf32>
    %c0_25 = arith.constant 0 : index
    %c0_26 = arith.constant 0 : index
    %c0_27 = arith.constant 0 : index
    %36 = vector.load %arg8[%c0_25, %c0_26, %c0_27] : memref<4x1x16xf32, #tpu.memory_space<vmem>>, vector<1x1x16xf32>
    %37 = vector.shape_cast %36 : vector<1x1x16xf32> to vector<1x16xf32>
    %38 = vector.broadcast %37 : vector<1x16xf32> to vector<16x16xf32>
    %39 = arith.addf %35, %38 : vector<16x16xf32>
    %c0_28 = arith.constant 0 : index
    %c0_29 = arith.constant 0 : index
    %c0_30 = arith.constant 0 : index
    %40 = vector.load %arg9[%c0_28, %c0_29, %c0_30] : memref<4x32x16xf32, #tpu.memory_space<vmem>>, vector<1x32x16xf32>
    %41 = vector.shape_cast %40 : vector<1x32x16xf32> to vector<32x16xf32>
    %cst_31 = arith.constant dense<0.000000e+00> : vector<16x16xf32>
    %42 = tpu.matmul %22, %41, %cst_31 {dimension_numbers = #tpu.dot_dimension_numbers<[1], [0], [0], [1], [0, 0, 1, 1], [], []>} : vector<16x32xf32>, vector<32x16xf32>, vector<16x16xf32> -> vector<16x16xf32>
    %c0_32 = arith.constant 0 : index
    %c0_33 = arith.constant 0 : index
    %c0_34 = arith.constant 0 : index
    %43 = vector.load %arg10[%c0_32, %c0_33, %c0_34] : memref<4x1x16xf32, #tpu.memory_space<vmem>>, vector<1x1x16xf32>
    %44 = vector.shape_cast %43 : vector<1x1x16xf32> to vector<1x16xf32>
    %45 = vector.broadcast %44 : vector<1x16xf32> to vector<16x16xf32>
    %46 = arith.addf %42, %45 : vector<16x16xf32>
    %cst_35 = arith.constant dense<0.000000e+00> : vector<16x16xf32>
    %47 = tpu.matmul %32, %39, %cst_35 {dimension_numbers = #tpu.dot_dimension_numbers<[1], [1], [0], [0], [0, 0, 1, 0], [], []>} : vector<16x16xf32>, vector<16x16xf32>, vector<16x16xf32> -> vector<16x16xf32>
    %48 = arith.addf %47, %23 : vector<16x16xf32>
    %cst_36 = arith.constant dense<0xFF800000> : vector<16xf32>
    %49 = vector.multi_reduction <maximumf>, %48, %cst_36 [1] : vector<16x16xf32> to vector<16xf32>
    %50 = vector.shape_cast %49 : vector<16xf32> to vector<16x1xf32>
    %51 = vector.broadcast %50 : vector<16x1xf32> to vector<16x16xf32>
    %52 = arith.subf %48, %51 : vector<16x16xf32>
    %53 = math.exp %52 : vector<16x16xf32>
    %cst_37 = arith.constant dense<0.000000e+00> : vector<16xf32>
    %54 = vector.multi_reduction <add>, %53, %cst_37 [1] : vector<16x16xf32> to vector<16xf32>
    %55 = vector.shape_cast %54 : vector<16xf32> to vector<16x1xf32>
    %56 = tpu.reciprocal %55 {approx = true} : vector<16x1xf32> -> vector<16x1xf32>
    %57 = vector.broadcast %56 : vector<16x1xf32> to vector<16x16xf32>
    %58 = arith.mulf %53, %57 : vector<16x16xf32>
    %cst_38 = arith.constant dense<0.000000e+00> : vector<16x16xf32>
    %59 = tpu.matmul %58, %46, %cst_38 {dimension_numbers = #tpu.dot_dimension_numbers<[1], [0], [0], [1], [0, 0, 1, 1], [], []>} : vector<16x16xf32>, vector<16x16xf32>, vector<16x16xf32> -> vector<16x16xf32>
    %c0_39 = arith.constant 0 : index
    %c0_40 = arith.constant 0 : index
    %c0_41 = arith.constant 0 : index
    %60 = vector.load %arg11[%c0_39, %c0_40, %c0_41] : memref<4x16x32xf32, #tpu.memory_space<vmem>>, vector<1x16x32xf32>
    %61 = vector.shape_cast %60 : vector<1x16x32xf32> to vector<16x32xf32>
    %cst_42 = arith.constant dense<0.000000e+00> : vector<16x32xf32>
    %62 = tpu.matmul %59, %61, %cst_42 {dimension_numbers = #tpu.dot_dimension_numbers<[1], [0], [0], [1], [0, 0, 1, 1], [], []>} : vector<16x16xf32>, vector<16x32xf32>, vector<16x32xf32> -> vector<16x32xf32>
    %63 = vector.broadcast %25 : vector<1x32xf32> to vector<16x32xf32>
    %64 = arith.addf %63, %62 : vector<16x32xf32>
    %c1 = arith.constant 1 : index
    %c0_43 = arith.constant 0 : index
    %c0_44 = arith.constant 0 : index
    %65 = vector.load %arg5[%c1, %c0_43, %c0_44] : memref<4x32x16xf32, #tpu.memory_space<vmem>>, vector<1x32x16xf32>
    %66 = vector.shape_cast %65 : vector<1x32x16xf32> to vector<32x16xf32>
    %cst_45 = arith.constant dense<0.000000e+00> : vector<16x16xf32>
    %67 = tpu.matmul %22, %66, %cst_45 {dimension_numbers = #tpu.dot_dimension_numbers<[1], [0], [0], [1], [0, 0, 1, 1], [], []>} : vector<16x32xf32>, vector<32x16xf32>, vector<16x16xf32> -> vector<16x16xf32>
    %c1_46 = arith.constant 1 : index
    %c0_47 = arith.constant 0 : index
    %c0_48 = arith.constant 0 : index
    %68 = vector.load %arg6[%c1_46, %c0_47, %c0_48] : memref<4x1x16xf32, #tpu.memory_space<vmem>>, vector<1x1x16xf32>
    %69 = vector.shape_cast %68 : vector<1x1x16xf32> to vector<1x16xf32>
    %70 = vector.broadcast %69 : vector<1x16xf32> to vector<16x16xf32>
    %71 = arith.addf %67, %70 : vector<16x16xf32>
    %c1_49 = arith.constant 1 : index
    %c0_50 = arith.constant 0 : index
    %c0_51 = arith.constant 0 : index
    %72 = vector.load %arg7[%c1_49, %c0_50, %c0_51] : memref<4x32x16xf32, #tpu.memory_space<vmem>>, vector<1x32x16xf32>
    %73 = vector.shape_cast %72 : vector<1x32x16xf32> to vector<32x16xf32>
    %cst_52 = arith.constant dense<0.000000e+00> : vector<16x16xf32>
    %74 = tpu.matmul %22, %73, %cst_52 {dimension_numbers = #tpu.dot_dimension_numbers<[1], [0], [0], [1], [0, 0, 1, 1], [], []>} : vector<16x32xf32>, vector<32x16xf32>, vector<16x16xf32> -> vector<16x16xf32>
    %c1_53 = arith.constant 1 : index
    %c0_54 = arith.constant 0 : index
    %c0_55 = arith.constant 0 : index
    %75 = vector.load %arg8[%c1_53, %c0_54, %c0_55] : memref<4x1x16xf32, #tpu.memory_space<vmem>>, vector<1x1x16xf32>
    %76 = vector.shape_cast %75 : vector<1x1x16xf32> to vector<1x16xf32>
    %77 = vector.broadcast %76 : vector<1x16xf32> to vector<16x16xf32>
    %78 = arith.addf %74, %77 : vector<16x16xf32>
    %c1_56 = arith.constant 1 : index
    %c0_57 = arith.constant 0 : index
    %c0_58 = arith.constant 0 : index
    %79 = vector.load %arg9[%c1_56, %c0_57, %c0_58] : memref<4x32x16xf32, #tpu.memory_space<vmem>>, vector<1x32x16xf32>
    %80 = vector.shape_cast %79 : vector<1x32x16xf32> to vector<32x16xf32>
    %cst_59 = arith.constant dense<0.000000e+00> : vector<16x16xf32>
    %81 = tpu.matmul %22, %80, %cst_59 {dimension_numbers = #tpu.dot_dimension_numbers<[1], [0], [0], [1], [0, 0, 1, 1], [], []>} : vector<16x32xf32>, vector<32x16xf32>, vector<16x16xf32> -> vector<16x16xf32>
    %c1_60 = arith.constant 1 : index
    %c0_61 = arith.constant 0 : index
    %c0_62 = arith.constant 0 : index
    %82 = vector.load %arg10[%c1_60, %c0_61, %c0_62] : memref<4x1x16xf32, #tpu.memory_space<vmem>>, vector<1x1x16xf32>
    %83 = vector.shape_cast %82 : vector<1x1x16xf32> to vector<1x16xf32>
    %84 = vector.broadcast %83 : vector<1x16xf32> to vector<16x16xf32>
    %85 = arith.addf %81, %84 : vector<16x16xf32>
    %cst_63 = arith.constant dense<0.000000e+00> : vector<16x16xf32>
    %86 = tpu.matmul %71, %78, %cst_63 {dimension_numbers = #tpu.dot_dimension_numbers<[1], [1], [0], [0], [0, 0, 1, 0], [], []>} : vector<16x16xf32>, vector<16x16xf32>, vector<16x16xf32> -> vector<16x16xf32>
    %87 = arith.addf %86, %23 : vector<16x16xf32>
    %cst_64 = arith.constant dense<0xFF800000> : vector<16xf32>
    %88 = vector.multi_reduction <maximumf>, %87, %cst_64 [1] : vector<16x16xf32> to vector<16xf32>
    %89 = vector.shape_cast %88 : vector<16xf32> to vector<16x1xf32>
    %90 = vector.broadcast %89 : vector<16x1xf32> to vector<16x16xf32>
    %91 = arith.subf %87, %90 : vector<16x16xf32>
    %92 = math.exp %91 : vector<16x16xf32>
    %cst_65 = arith.constant dense<0.000000e+00> : vector<16xf32>
    %93 = vector.multi_reduction <add>, %92, %cst_65 [1] : vector<16x16xf32> to vector<16xf32>
    %94 = vector.shape_cast %93 : vector<16xf32> to vector<16x1xf32>
    %95 = tpu.reciprocal %94 {approx = true} : vector<16x1xf32> -> vector<16x1xf32>
    %96 = vector.broadcast %95 : vector<16x1xf32> to vector<16x16xf32>
    %97 = arith.mulf %92, %96 : vector<16x16xf32>
    %cst_66 = arith.constant dense<0.000000e+00> : vector<16x16xf32>
    %98 = tpu.matmul %97, %85, %cst_66 {dimension_numbers = #tpu.dot_dimension_numbers<[1], [0], [0], [1], [0, 0, 1, 1], [], []>} : vector<16x16xf32>, vector<16x16xf32>, vector<16x16xf32> -> vector<16x16xf32>
    %c1_67 = arith.constant 1 : index
    %c0_68 = arith.constant 0 : index
    %c0_69 = arith.constant 0 : index
    %99 = vector.load %arg11[%c1_67, %c0_68, %c0_69] : memref<4x16x32xf32, #tpu.memory_space<vmem>>, vector<1x16x32xf32>
    %100 = vector.shape_cast %99 : vector<1x16x32xf32> to vector<16x32xf32>
    %cst_70 = arith.constant dense<0.000000e+00> : vector<16x32xf32>
    %101 = tpu.matmul %98, %100, %cst_70 {dimension_numbers = #tpu.dot_dimension_numbers<[1], [0], [0], [1], [0, 0, 1, 1], [], []>} : vector<16x16xf32>, vector<16x32xf32>, vector<16x32xf32> -> vector<16x32xf32>
    %102 = arith.addf %64, %101 : vector<16x32xf32>
    %103 = arith.addf %102, %22 : vector<16x32xf32>
    %c0_71 = arith.constant 0 : index
    %c0_72 = arith.constant 0 : index
    %c0_73 = arith.constant 0 : index
    %104 = vector.load %arg13[%c0_71, %c0_72, %c0_73] : memref<2x1x32xf32, #tpu.memory_space<vmem>>, vector<1x1x32xf32>
    %105 = vector.shape_cast %104 : vector<1x1x32xf32> to vector<1x32xf32>
    %c0_74 = arith.constant 0 : index
    %c0_75 = arith.constant 0 : index
    %c0_76 = arith.constant 0 : index
    %106 = vector.load %arg14[%c0_74, %c0_75, %c0_76] : memref<2x1x32xf32, #tpu.memory_space<vmem>>, vector<1x1x32xf32>
    %107 = vector.shape_cast %106 : vector<1x1x32xf32> to vector<1x32xf32>
    %cst_77 = arith.constant dense<0.000000e+00> : vector<16xf32>
    %108 = vector.multi_reduction <add>, %103, %cst_77 [1] : vector<16x32xf32> to vector<16xf32>
    %109 = vector.shape_cast %108 : vector<16xf32> to vector<16x1xf32>
    %cst_78 = arith.constant 3.200000e+01 : f32
    %110 = vector.broadcast %cst_78 : f32 to vector<16x1xf32>
    %111 = arith.divf %109, %110 : vector<16x1xf32>
    %112 = vector.broadcast %111 : vector<16x1xf32> to vector<16x32xf32>
    %113 = arith.subf %103, %112 : vector<16x32xf32>
    %114 = arith.mulf %113, %113 : vector<16x32xf32>
    %cst_79 = arith.constant dense<0.000000e+00> : vector<16xf32>
    %115 = vector.multi_reduction <add>, %114, %cst_79 [1] : vector<16x32xf32> to vector<16xf32>
    %116 = vector.shape_cast %115 : vector<16xf32> to vector<16x1xf32>
    %cst_80 = arith.constant 3.200000e+01 : f32
    %117 = vector.broadcast %cst_80 : f32 to vector<16x1xf32>
    %118 = arith.divf %116, %117 : vector<16x1xf32>
    %cst_81 = arith.constant 9.99999996E-13 : f32
    %119 = vector.broadcast %cst_81 : f32 to vector<16x1xf32>
    %120 = arith.addf %118, %119 : vector<16x1xf32>
    %121 = math.rsqrt %120 : vector<16x1xf32>
    %122 = vector.broadcast %121 : vector<16x1xf32> to vector<16x32xf32>
    %123 = arith.mulf %113, %122 : vector<16x32xf32>
    %124 = vector.broadcast %105 : vector<1x32xf32> to vector<16x32xf32>
    %125 = arith.mulf %123, %124 : vector<16x32xf32>
    %126 = vector.broadcast %107 : vector<1x32xf32> to vector<16x32xf32>
    %127 = arith.addf %125, %126 : vector<16x32xf32>
    %c0_82 = arith.constant 0 : index
    %c0_83 = arith.constant 0 : index
    %c0_84 = arith.constant 0 : index
    %128 = vector.load %arg15[%c0_82, %c0_83, %c0_84] : memref<2x32x64xf32, #tpu.memory_space<vmem>>, vector<1x32x64xf32>
    %129 = vector.shape_cast %128 : vector<1x32x64xf32> to vector<32x64xf32>
    %cst_85 = arith.constant dense<0.000000e+00> : vector<16x64xf32>
    %130 = tpu.matmul %127, %129, %cst_85 {dimension_numbers = #tpu.dot_dimension_numbers<[1], [0], [0], [1], [0, 0, 1, 1], [], []>} : vector<16x32xf32>, vector<32x64xf32>, vector<16x64xf32> -> vector<16x64xf32>
    %c0_86 = arith.constant 0 : index
    %c0_87 = arith.constant 0 : index
    %c0_88 = arith.constant 0 : index
    %131 = vector.load %arg16[%c0_86, %c0_87, %c0_88] : memref<2x1x64xf32, #tpu.memory_space<vmem>>, vector<1x1x64xf32>
    %132 = vector.shape_cast %131 : vector<1x1x64xf32> to vector<1x64xf32>
    %133 = vector.broadcast %132 : vector<1x64xf32> to vector<16x64xf32>
    %134 = arith.addf %130, %133 : vector<16x64xf32>
    %cst_89 = arith.constant 5.000000e-01 : f32
    %135 = vector.broadcast %cst_89 : f32 to vector<16x64xf32>
    %136 = arith.mulf %135, %134 : vector<16x64xf32>
    %cst_90 = arith.constant 0.707106769 : f32
    %137 = vector.broadcast %cst_90 : f32 to vector<16x64xf32>
    %138 = arith.mulf %134, %137 : vector<16x64xf32>
    %139 = math.erf %138 : vector<16x64xf32>
    %cst_91 = arith.constant 1.000000e+00 : f32
    %140 = vector.broadcast %cst_91 : f32 to vector<16x64xf32>
    %141 = arith.addf %140, %139 : vector<16x64xf32>
    %142 = arith.mulf %136, %141 : vector<16x64xf32>
    %c0_92 = arith.constant 0 : index
    %c0_93 = arith.constant 0 : index
    %c0_94 = arith.constant 0 : index
    %143 = vector.load %arg17[%c0_92, %c0_93, %c0_94] : memref<2x64x32xf32, #tpu.memory_space<vmem>>, vector<1x64x32xf32>
    %144 = vector.shape_cast %143 : vector<1x64x32xf32> to vector<64x32xf32>
    %cst_95 = arith.constant dense<0.000000e+00> : vector<16x32xf32>
    %145 = tpu.matmul %142, %144, %cst_95 {dimension_numbers = #tpu.dot_dimension_numbers<[1], [0], [0], [1], [0, 0, 1, 1], [], []>} : vector<16x64xf32>, vector<64x32xf32>, vector<16x32xf32> -> vector<16x32xf32>
    %c0_96 = arith.constant 0 : index
    %c0_97 = arith.constant 0 : index
    %c0_98 = arith.constant 0 : index
    %146 = vector.load %arg18[%c0_96, %c0_97, %c0_98] : memref<2x1x32xf32, #tpu.memory_space<vmem>>, vector<1x1x32xf32>
    %147 = vector.shape_cast %146 : vector<1x1x32xf32> to vector<1x32xf32>
    %148 = vector.broadcast %147 : vector<1x32xf32> to vector<16x32xf32>
    %149 = arith.addf %145, %148 : vector<16x32xf32>
    %150 = arith.addf %149, %127 : vector<16x32xf32>
    %c0_99 = arith.constant 0 : index
    %c0_100 = arith.constant 0 : index
    %c0_101 = arith.constant 0 : index
    %151 = vector.load %arg19[%c0_99, %c0_100, %c0_101] : memref<2x1x32xf32, #tpu.memory_space<vmem>>, vector<1x1x32xf32>
    %152 = vector.shape_cast %151 : vector<1x1x32xf32> to vector<1x32xf32>
    %c0_102 = arith.constant 0 : index
    %c0_103 = arith.constant 0 : index
    %c0_104 = arith.constant 0 : index
    %153 = vector.load %arg20[%c0_102, %c0_103, %c0_104] : memref<2x1x32xf32, #tpu.memory_space<vmem>>, vector<1x1x32xf32>
    %154 = vector.shape_cast %153 : vector<1x1x32xf32> to vector<1x32xf32>
    %cst_105 = arith.constant dense<0.000000e+00> : vector<16xf32>
    %155 = vector.multi_reduction <add>, %150, %cst_105 [1] : vector<16x32xf32> to vector<16xf32>
    %156 = vector.shape_cast %155 : vector<16xf32> to vector<16x1xf32>
    %cst_106 = arith.constant 3.200000e+01 : f32
    %157 = vector.broadcast %cst_106 : f32 to vector<16x1xf32>
    %158 = arith.divf %156, %157 : vector<16x1xf32>
    %159 = vector.broadcast %158 : vector<16x1xf32> to vector<16x32xf32>
    %160 = arith.subf %150, %159 : vector<16x32xf32>
    %161 = arith.mulf %160, %160 : vector<16x32xf32>
    %cst_107 = arith.constant dense<0.000000e+00> : vector<16xf32>
    %162 = vector.multi_reduction <add>, %161, %cst_107 [1] : vector<16x32xf32> to vector<16xf32>
    %163 = vector.shape_cast %162 : vector<16xf32> to vector<16x1xf32>
    %cst_108 = arith.constant 3.200000e+01 : f32
    %164 = vector.broadcast %cst_108 : f32 to vector<16x1xf32>
    %165 = arith.divf %163, %164 : vector<16x1xf32>
    %cst_109 = arith.constant 9.99999996E-13 : f32
    %166 = vector.broadcast %cst_109 : f32 to vector<16x1xf32>
    %167 = arith.addf %165, %166 : vector<16x1xf32>
    %168 = math.rsqrt %167 : vector<16x1xf32>
    %169 = vector.broadcast %168 : vector<16x1xf32> to vector<16x32xf32>
    %170 = arith.mulf %160, %169 : vector<16x32xf32>
    %171 = vector.broadcast %152 : vector<1x32xf32> to vector<16x32xf32>
    %172 = arith.mulf %170, %171 : vector<16x32xf32>
    %173 = vector.broadcast %154 : vector<1x32xf32> to vector<16x32xf32>
    %174 = arith.addf %172, %173 : vector<16x32xf32>
    %c1_110 = arith.constant 1 : index
    %c0_111 = arith.constant 0 : index
    %c0_112 = arith.constant 0 : index
    %175 = vector.load %arg12[%c1_110, %c0_111, %c0_112] : memref<2x1x32xf32, #tpu.memory_space<vmem>>, vector<1x1x32xf32>
    %176 = vector.shape_cast %175 : vector<1x1x32xf32> to vector<1x32xf32>
    %c2 = arith.constant 2 : index
    %c0_113 = arith.constant 0 : index
    %c0_114 = arith.constant 0 : index
    %177 = vector.load %arg5[%c2, %c0_113, %c0_114] : memref<4x32x16xf32, #tpu.memory_space<vmem>>, vector<1x32x16xf32>
    %178 = vector.shape_cast %177 : vector<1x32x16xf32> to vector<32x16xf32>
    %cst_115 = arith.constant dense<0.000000e+00> : vector<16x16xf32>
    %179 = tpu.matmul %174, %178, %cst_115 {dimension_numbers = #tpu.dot_dimension_numbers<[1], [0], [0], [1], [0, 0, 1, 1], [], []>} : vector<16x32xf32>, vector<32x16xf32>, vector<16x16xf32> -> vector<16x16xf32>
    %c2_116 = arith.constant 2 : index
    %c0_117 = arith.constant 0 : index
    %c0_118 = arith.constant 0 : index
    %180 = vector.load %arg6[%c2_116, %c0_117, %c0_118] : memref<4x1x16xf32, #tpu.memory_space<vmem>>, vector<1x1x16xf32>
    %181 = vector.shape_cast %180 : vector<1x1x16xf32> to vector<1x16xf32>
    %182 = vector.broadcast %181 : vector<1x16xf32> to vector<16x16xf32>
    %183 = arith.addf %179, %182 : vector<16x16xf32>
    %c2_119 = arith.constant 2 : index
    %c0_120 = arith.constant 0 : index
    %c0_121 = arith.constant 0 : index
    %184 = vector.load %arg7[%c2_119, %c0_120, %c0_121] : memref<4x32x16xf32, #tpu.memory_space<vmem>>, vector<1x32x16xf32>
    %185 = vector.shape_cast %184 : vector<1x32x16xf32> to vector<32x16xf32>
    %cst_122 = arith.constant dense<0.000000e+00> : vector<16x16xf32>
    %186 = tpu.matmul %174, %185, %cst_122 {dimension_numbers = #tpu.dot_dimension_numbers<[1], [0], [0], [1], [0, 0, 1, 1], [], []>} : vector<16x32xf32>, vector<32x16xf32>, vector<16x16xf32> -> vector<16x16xf32>
    %c2_123 = arith.constant 2 : index
    %c0_124 = arith.constant 0 : index
    %c0_125 = arith.constant 0 : index
    %187 = vector.load %arg8[%c2_123, %c0_124, %c0_125] : memref<4x1x16xf32, #tpu.memory_space<vmem>>, vector<1x1x16xf32>
    %188 = vector.shape_cast %187 : vector<1x1x16xf32> to vector<1x16xf32>
    %189 = vector.broadcast %188 : vector<1x16xf32> to vector<16x16xf32>
    %190 = arith.addf %186, %189 : vector<16x16xf32>
    %c2_126 = arith.constant 2 : index
    %c0_127 = arith.constant 0 : index
    %c0_128 = arith.constant 0 : index
    %191 = vector.load %arg9[%c2_126, %c0_127, %c0_128] : memref<4x32x16xf32, #tpu.memory_space<vmem>>, vector<1x32x16xf32>
    %192 = vector.shape_cast %191 : vector<1x32x16xf32> to vector<32x16xf32>
    %cst_129 = arith.constant dense<0.000000e+00> : vector<16x16xf32>
    %193 = tpu.matmul %174, %192, %cst_129 {dimension_numbers = #tpu.dot_dimension_numbers<[1], [0], [0], [1], [0, 0, 1, 1], [], []>} : vector<16x32xf32>, vector<32x16xf32>, vector<16x16xf32> -> vector<16x16xf32>
    %c2_130 = arith.constant 2 : index
    %c0_131 = arith.constant 0 : index
    %c0_132 = arith.constant 0 : index
    %194 = vector.load %arg10[%c2_130, %c0_131, %c0_132] : memref<4x1x16xf32, #tpu.memory_space<vmem>>, vector<1x1x16xf32>
    %195 = vector.shape_cast %194 : vector<1x1x16xf32> to vector<1x16xf32>
    %196 = vector.broadcast %195 : vector<1x16xf32> to vector<16x16xf32>
    %197 = arith.addf %193, %196 : vector<16x16xf32>
    %cst_133 = arith.constant dense<0.000000e+00> : vector<16x16xf32>
    %198 = tpu.matmul %183, %190, %cst_133 {dimension_numbers = #tpu.dot_dimension_numbers<[1], [1], [0], [0], [0, 0, 1, 0], [], []>} : vector<16x16xf32>, vector<16x16xf32>, vector<16x16xf32> -> vector<16x16xf32>
    %199 = arith.addf %198, %23 : vector<16x16xf32>
    %cst_134 = arith.constant dense<0xFF800000> : vector<16xf32>
    %200 = vector.multi_reduction <maximumf>, %199, %cst_134 [1] : vector<16x16xf32> to vector<16xf32>
    %201 = vector.shape_cast %200 : vector<16xf32> to vector<16x1xf32>
    %202 = vector.broadcast %201 : vector<16x1xf32> to vector<16x16xf32>
    %203 = arith.subf %199, %202 : vector<16x16xf32>
    %204 = math.exp %203 : vector<16x16xf32>
    %cst_135 = arith.constant dense<0.000000e+00> : vector<16xf32>
    %205 = vector.multi_reduction <add>, %204, %cst_135 [1] : vector<16x16xf32> to vector<16xf32>
    %206 = vector.shape_cast %205 : vector<16xf32> to vector<16x1xf32>
    %207 = tpu.reciprocal %206 {approx = true} : vector<16x1xf32> -> vector<16x1xf32>
    %208 = vector.broadcast %207 : vector<16x1xf32> to vector<16x16xf32>
    %209 = arith.mulf %204, %208 : vector<16x16xf32>
    %cst_136 = arith.constant dense<0.000000e+00> : vector<16x16xf32>
    %210 = tpu.matmul %209, %197, %cst_136 {dimension_numbers = #tpu.dot_dimension_numbers<[1], [0], [0], [1], [0, 0, 1, 1], [], []>} : vector<16x16xf32>, vector<16x16xf32>, vector<16x16xf32> -> vector<16x16xf32>
    %c2_137 = arith.constant 2 : index
    %c0_138 = arith.constant 0 : index
    %c0_139 = arith.constant 0 : index
    %211 = vector.load %arg11[%c2_137, %c0_138, %c0_139] : memref<4x16x32xf32, #tpu.memory_space<vmem>>, vector<1x16x32xf32>
    %212 = vector.shape_cast %211 : vector<1x16x32xf32> to vector<16x32xf32>
    %cst_140 = arith.constant dense<0.000000e+00> : vector<16x32xf32>
    %213 = tpu.matmul %210, %212, %cst_140 {dimension_numbers = #tpu.dot_dimension_numbers<[1], [0], [0], [1], [0, 0, 1, 1], [], []>} : vector<16x16xf32>, vector<16x32xf32>, vector<16x32xf32> -> vector<16x32xf32>
    %214 = vector.broadcast %176 : vector<1x32xf32> to vector<16x32xf32>
    %215 = arith.addf %214, %213 : vector<16x32xf32>
    %c3 = arith.constant 3 : index
    %c0_141 = arith.constant 0 : index
    %c0_142 = arith.constant 0 : index
    %216 = vector.load %arg5[%c3, %c0_141, %c0_142] : memref<4x32x16xf32, #tpu.memory_space<vmem>>, vector<1x32x16xf32>
    %217 = vector.shape_cast %216 : vector<1x32x16xf32> to vector<32x16xf32>
    %cst_143 = arith.constant dense<0.000000e+00> : vector<16x16xf32>
    %218 = tpu.matmul %174, %217, %cst_143 {dimension_numbers = #tpu.dot_dimension_numbers<[1], [0], [0], [1], [0, 0, 1, 1], [], []>} : vector<16x32xf32>, vector<32x16xf32>, vector<16x16xf32> -> vector<16x16xf32>
    %c3_144 = arith.constant 3 : index
    %c0_145 = arith.constant 0 : index
    %c0_146 = arith.constant 0 : index
    %219 = vector.load %arg6[%c3_144, %c0_145, %c0_146] : memref<4x1x16xf32, #tpu.memory_space<vmem>>, vector<1x1x16xf32>
    %220 = vector.shape_cast %219 : vector<1x1x16xf32> to vector<1x16xf32>
    %221 = vector.broadcast %220 : vector<1x16xf32> to vector<16x16xf32>
    %222 = arith.addf %218, %221 : vector<16x16xf32>
    %c3_147 = arith.constant 3 : index
    %c0_148 = arith.constant 0 : index
    %c0_149 = arith.constant 0 : index
    %223 = vector.load %arg7[%c3_147, %c0_148, %c0_149] : memref<4x32x16xf32, #tpu.memory_space<vmem>>, vector<1x32x16xf32>
    %224 = vector.shape_cast %223 : vector<1x32x16xf32> to vector<32x16xf32>
    %cst_150 = arith.constant dense<0.000000e+00> : vector<16x16xf32>
    %225 = tpu.matmul %174, %224, %cst_150 {dimension_numbers = #tpu.dot_dimension_numbers<[1], [0], [0], [1], [0, 0, 1, 1], [], []>} : vector<16x32xf32>, vector<32x16xf32>, vector<16x16xf32> -> vector<16x16xf32>
    %c3_151 = arith.constant 3 : index
    %c0_152 = arith.constant 0 : index
    %c0_153 = arith.constant 0 : index
    %226 = vector.load %arg8[%c3_151, %c0_152, %c0_153] : memref<4x1x16xf32, #tpu.memory_space<vmem>>, vector<1x1x16xf32>
    %227 = vector.shape_cast %226 : vector<1x1x16xf32> to vector<1x16xf32>
    %228 = vector.broadcast %227 : vector<1x16xf32> to vector<16x16xf32>
    %229 = arith.addf %225, %228 : vector<16x16xf32>
    %c3_154 = arith.constant 3 : index
    %c0_155 = arith.constant 0 : index
    %c0_156 = arith.constant 0 : index
    %230 = vector.load %arg9[%c3_154, %c0_155, %c0_156] : memref<4x32x16xf32, #tpu.memory_space<vmem>>, vector<1x32x16xf32>
    %231 = vector.shape_cast %230 : vector<1x32x16xf32> to vector<32x16xf32>
    %cst_157 = arith.constant dense<0.000000e+00> : vector<16x16xf32>
    %232 = tpu.matmul %174, %231, %cst_157 {dimension_numbers = #tpu.dot_dimension_numbers<[1], [0], [0], [1], [0, 0, 1, 1], [], []>} : vector<16x32xf32>, vector<32x16xf32>, vector<16x16xf32> -> vector<16x16xf32>
    %c3_158 = arith.constant 3 : index
    %c0_159 = arith.constant 0 : index
    %c0_160 = arith.constant 0 : index
    %233 = vector.load %arg10[%c3_158, %c0_159, %c0_160] : memref<4x1x16xf32, #tpu.memory_space<vmem>>, vector<1x1x16xf32>
    %234 = vector.shape_cast %233 : vector<1x1x16xf32> to vector<1x16xf32>
    %235 = vector.broadcast %234 : vector<1x16xf32> to vector<16x16xf32>
    %236 = arith.addf %232, %235 : vector<16x16xf32>
    %cst_161 = arith.constant dense<0.000000e+00> : vector<16x16xf32>
    %237 = tpu.matmul %222, %229, %cst_161 {dimension_numbers = #tpu.dot_dimension_numbers<[1], [1], [0], [0], [0, 0, 1, 0], [], []>} : vector<16x16xf32>, vector<16x16xf32>, vector<16x16xf32> -> vector<16x16xf32>
    %238 = arith.addf %237, %23 : vector<16x16xf32>
    %cst_162 = arith.constant dense<0xFF800000> : vector<16xf32>
    %239 = vector.multi_reduction <maximumf>, %238, %cst_162 [1] : vector<16x16xf32> to vector<16xf32>
    %240 = vector.shape_cast %239 : vector<16xf32> to vector<16x1xf32>
    %241 = vector.broadcast %240 : vector<16x1xf32> to vector<16x16xf32>
    %242 = arith.subf %238, %241 : vector<16x16xf32>
    %243 = math.exp %242 : vector<16x16xf32>
    %cst_163 = arith.constant dense<0.000000e+00> : vector<16xf32>
    %244 = vector.multi_reduction <add>, %243, %cst_163 [1] : vector<16x16xf32> to vector<16xf32>
    %245 = vector.shape_cast %244 : vector<16xf32> to vector<16x1xf32>
    %246 = tpu.reciprocal %245 {approx = true} : vector<16x1xf32> -> vector<16x1xf32>
    %247 = vector.broadcast %246 : vector<16x1xf32> to vector<16x16xf32>
    %248 = arith.mulf %243, %247 : vector<16x16xf32>
    %cst_164 = arith.constant dense<0.000000e+00> : vector<16x16xf32>
    %249 = tpu.matmul %248, %236, %cst_164 {dimension_numbers = #tpu.dot_dimension_numbers<[1], [0], [0], [1], [0, 0, 1, 1], [], []>} : vector<16x16xf32>, vector<16x16xf32>, vector<16x16xf32> -> vector<16x16xf32>
    %c3_165 = arith.constant 3 : index
    %c0_166 = arith.constant 0 : index
    %c0_167 = arith.constant 0 : index
    %250 = vector.load %arg11[%c3_165, %c0_166, %c0_167] : memref<4x16x32xf32, #tpu.memory_space<vmem>>, vector<1x16x32xf32>
    %251 = vector.shape_cast %250 : vector<1x16x32xf32> to vector<16x32xf32>
    %cst_168 = arith.constant dense<0.000000e+00> : vector<16x32xf32>
    %252 = tpu.matmul %249, %251, %cst_168 {dimension_numbers = #tpu.dot_dimension_numbers<[1], [0], [0], [1], [0, 0, 1, 1], [], []>} : vector<16x16xf32>, vector<16x32xf32>, vector<16x32xf32> -> vector<16x32xf32>
    %253 = arith.addf %215, %252 : vector<16x32xf32>
    %254 = arith.addf %253, %174 : vector<16x32xf32>
    %c1_169 = arith.constant 1 : index
    %c0_170 = arith.constant 0 : index
    %c0_171 = arith.constant 0 : index
    %255 = vector.load %arg13[%c1_169, %c0_170, %c0_171] : memref<2x1x32xf32, #tpu.memory_space<vmem>>, vector<1x1x32xf32>
    %256 = vector.shape_cast %255 : vector<1x1x32xf32> to vector<1x32xf32>
    %c1_172 = arith.constant 1 : index
    %c0_173 = arith.constant 0 : index
    %c0_174 = arith.constant 0 : index
    %257 = vector.load %arg14[%c1_172, %c0_173, %c0_174] : memref<2x1x32xf32, #tpu.memory_space<vmem>>, vector<1x1x32xf32>
    %258 = vector.shape_cast %257 : vector<1x1x32xf32> to vector<1x32xf32>
    %cst_175 = arith.constant dense<0.000000e+00> : vector<16xf32>
    %259 = vector.multi_reduction <add>, %254, %cst_175 [1] : vector<16x32xf32> to vector<16xf32>
    %260 = vector.shape_cast %259 : vector<16xf32> to vector<16x1xf32>
    %cst_176 = arith.constant 3.200000e+01 : f32
    %261 = vector.broadcast %cst_176 : f32 to vector<16x1xf32>
    %262 = arith.divf %260, %261 : vector<16x1xf32>
    %263 = vector.broadcast %262 : vector<16x1xf32> to vector<16x32xf32>
    %264 = arith.subf %254, %263 : vector<16x32xf32>
    %265 = arith.mulf %264, %264 : vector<16x32xf32>
    %cst_177 = arith.constant dense<0.000000e+00> : vector<16xf32>
    %266 = vector.multi_reduction <add>, %265, %cst_177 [1] : vector<16x32xf32> to vector<16xf32>
    %267 = vector.shape_cast %266 : vector<16xf32> to vector<16x1xf32>
    %cst_178 = arith.constant 3.200000e+01 : f32
    %268 = vector.broadcast %cst_178 : f32 to vector<16x1xf32>
    %269 = arith.divf %267, %268 : vector<16x1xf32>
    %cst_179 = arith.constant 9.99999996E-13 : f32
    %270 = vector.broadcast %cst_179 : f32 to vector<16x1xf32>
    %271 = arith.addf %269, %270 : vector<16x1xf32>
    %272 = math.rsqrt %271 : vector<16x1xf32>
    %273 = vector.broadcast %272 : vector<16x1xf32> to vector<16x32xf32>
    %274 = arith.mulf %264, %273 : vector<16x32xf32>
    %275 = vector.broadcast %256 : vector<1x32xf32> to vector<16x32xf32>
    %276 = arith.mulf %274, %275 : vector<16x32xf32>
    %277 = vector.broadcast %258 : vector<1x32xf32> to vector<16x32xf32>
    %278 = arith.addf %276, %277 : vector<16x32xf32>
    %c1_180 = arith.constant 1 : index
    %c0_181 = arith.constant 0 : index
    %c0_182 = arith.constant 0 : index
    %279 = vector.load %arg15[%c1_180, %c0_181, %c0_182] : memref<2x32x64xf32, #tpu.memory_space<vmem>>, vector<1x32x64xf32>
    %280 = vector.shape_cast %279 : vector<1x32x64xf32> to vector<32x64xf32>
    %cst_183 = arith.constant dense<0.000000e+00> : vector<16x64xf32>
    %281 = tpu.matmul %278, %280, %cst_183 {dimension_numbers = #tpu.dot_dimension_numbers<[1], [0], [0], [1], [0, 0, 1, 1], [], []>} : vector<16x32xf32>, vector<32x64xf32>, vector<16x64xf32> -> vector<16x64xf32>
    %c1_184 = arith.constant 1 : index
    %c0_185 = arith.constant 0 : index
    %c0_186 = arith.constant 0 : index
    %282 = vector.load %arg16[%c1_184, %c0_185, %c0_186] : memref<2x1x64xf32, #tpu.memory_space<vmem>>, vector<1x1x64xf32>
    %283 = vector.shape_cast %282 : vector<1x1x64xf32> to vector<1x64xf32>
    %284 = vector.broadcast %283 : vector<1x64xf32> to vector<16x64xf32>
    %285 = arith.addf %281, %284 : vector<16x64xf32>
    %cst_187 = arith.constant 5.000000e-01 : f32
    %286 = vector.broadcast %cst_187 : f32 to vector<16x64xf32>
    %287 = arith.mulf %286, %285 : vector<16x64xf32>
    %cst_188 = arith.constant 0.707106769 : f32
    %288 = vector.broadcast %cst_188 : f32 to vector<16x64xf32>
    %289 = arith.mulf %285, %288 : vector<16x64xf32>
    %290 = math.erf %289 : vector<16x64xf32>
    %cst_189 = arith.constant 1.000000e+00 : f32
    %291 = vector.broadcast %cst_189 : f32 to vector<16x64xf32>
    %292 = arith.addf %291, %290 : vector<16x64xf32>
    %293 = arith.mulf %287, %292 : vector<16x64xf32>
    %c1_190 = arith.constant 1 : index
    %c0_191 = arith.constant 0 : index
    %c0_192 = arith.constant 0 : index
    %294 = vector.load %arg17[%c1_190, %c0_191, %c0_192] : memref<2x64x32xf32, #tpu.memory_space<vmem>>, vector<1x64x32xf32>
    %295 = vector.shape_cast %294 : vector<1x64x32xf32> to vector<64x32xf32>
    %cst_193 = arith.constant dense<0.000000e+00> : vector<16x32xf32>
    %296 = tpu.matmul %293, %295, %cst_193 {dimension_numbers = #tpu.dot_dimension_numbers<[1], [0], [0], [1], [0, 0, 1, 1], [], []>} : vector<16x64xf32>, vector<64x32xf32>, vector<16x32xf32> -> vector<16x32xf32>
    %c1_194 = arith.constant 1 : index
    %c0_195 = arith.constant 0 : index
    %c0_196 = arith.constant 0 : index
    %297 = vector.load %arg18[%c1_194, %c0_195, %c0_196] : memref<2x1x32xf32, #tpu.memory_space<vmem>>, vector<1x1x32xf32>
    %298 = vector.shape_cast %297 : vector<1x1x32xf32> to vector<1x32xf32>
    %299 = vector.broadcast %298 : vector<1x32xf32> to vector<16x32xf32>
    %300 = arith.addf %296, %299 : vector<16x32xf32>
    %301 = arith.addf %300, %278 : vector<16x32xf32>
    %c1_197 = arith.constant 1 : index
    %c0_198 = arith.constant 0 : index
    %c0_199 = arith.constant 0 : index
    %302 = vector.load %arg19[%c1_197, %c0_198, %c0_199] : memref<2x1x32xf32, #tpu.memory_space<vmem>>, vector<1x1x32xf32>
    %303 = vector.shape_cast %302 : vector<1x1x32xf32> to vector<1x32xf32>
    %c1_200 = arith.constant 1 : index
    %c0_201 = arith.constant 0 : index
    %c0_202 = arith.constant 0 : index
    %304 = vector.load %arg20[%c1_200, %c0_201, %c0_202] : memref<2x1x32xf32, #tpu.memory_space<vmem>>, vector<1x1x32xf32>
    %305 = vector.shape_cast %304 : vector<1x1x32xf32> to vector<1x32xf32>
    %cst_203 = arith.constant dense<0.000000e+00> : vector<16xf32>
    %306 = vector.multi_reduction <add>, %301, %cst_203 [1] : vector<16x32xf32> to vector<16xf32>
    %307 = vector.shape_cast %306 : vector<16xf32> to vector<16x1xf32>
    %cst_204 = arith.constant 3.200000e+01 : f32
    %308 = vector.broadcast %cst_204 : f32 to vector<16x1xf32>
    %309 = arith.divf %307, %308 : vector<16x1xf32>
    %310 = vector.broadcast %309 : vector<16x1xf32> to vector<16x32xf32>
    %311 = arith.subf %301, %310 : vector<16x32xf32>
    %312 = arith.mulf %311, %311 : vector<16x32xf32>
    %cst_205 = arith.constant dense<0.000000e+00> : vector<16xf32>
    %313 = vector.multi_reduction <add>, %312, %cst_205 [1] : vector<16x32xf32> to vector<16xf32>
    %314 = vector.shape_cast %313 : vector<16xf32> to vector<16x1xf32>
    %cst_206 = arith.constant 3.200000e+01 : f32
    %315 = vector.broadcast %cst_206 : f32 to vector<16x1xf32>
    %316 = arith.divf %314, %315 : vector<16x1xf32>
    %cst_207 = arith.constant 9.99999996E-13 : f32
    %317 = vector.broadcast %cst_207 : f32 to vector<16x1xf32>
    %318 = arith.addf %316, %317 : vector<16x1xf32>
    %319 = math.rsqrt %318 : vector<16x1xf32>
    %320 = vector.broadcast %319 : vector<16x1xf32> to vector<16x32xf32>
    %321 = arith.mulf %311, %320 : vector<16x32xf32>
    %322 = vector.broadcast %303 : vector<1x32xf32> to vector<16x32xf32>
    %323 = arith.mulf %321, %322 : vector<16x32xf32>
    %324 = vector.broadcast %305 : vector<1x32xf32> to vector<16x32xf32>
    %325 = arith.addf %323, %324 : vector<16x32xf32>
    %c0_208 = arith.constant 0 : index
    %c0_209 = arith.constant 0 : index
    %326 = vector.load %arg2[%c0_208, %c0_209] : memref<2x16xf32, #tpu.memory_space<vmem>>, vector<2x16xf32>
    %cst_210 = arith.constant dense<0.000000e+00> : vector<2x32xf32>
    %327 = tpu.matmul %326, %325, %cst_210 {dimension_numbers = #tpu.dot_dimension_numbers<[1], [0], [0], [1], [0, 0, 1, 1], [], []>} : vector<2x16xf32>, vector<16x32xf32>, vector<2x32xf32> -> vector<2x32xf32>
    %c0_211 = arith.constant 0 : index
    %c0_212 = arith.constant 0 : index
    %328 = vector.load %arg21[%c0_211, %c0_212] : memref<32x32xf32, #tpu.memory_space<vmem>>, vector<32x32xf32>
    %cst_213 = arith.constant dense<0.000000e+00> : vector<2x32xf32>
    %329 = tpu.matmul %327, %328, %cst_213 {dimension_numbers = #tpu.dot_dimension_numbers<[1], [0], [0], [1], [0, 0, 1, 1], [], []>} : vector<2x32xf32>, vector<32x32xf32>, vector<2x32xf32> -> vector<2x32xf32>
    %c0_214 = arith.constant 0 : index
    %c0_215 = arith.constant 0 : index
    %330 = vector.load %arg22[%c0_214, %c0_215] : memref<1x32xf32, #tpu.memory_space<vmem>>, vector<1x32xf32>
    %331 = vector.broadcast %330 : vector<1x32xf32> to vector<2x32xf32>
    %332 = arith.addf %329, %331 : vector<2x32xf32>
    %333 = math.tanh %332 : vector<2x32xf32>
    %c0_216 = arith.constant 0 : index
    %c0_217 = arith.constant 0 : index
    %334 = vector.load %arg23[%c0_216, %c0_217] : memref<32x128xf32, #tpu.memory_space<vmem>>, vector<32x128xf32>
    %cst_218 = arith.constant dense<0.000000e+00> : vector<2x128xf32>
    %335 = tpu.matmul %333, %334, %cst_218 {dimension_numbers = #tpu.dot_dimension_numbers<[1], [0], [0], [1], [0, 0, 1, 1], [], []>} : vector<2x32xf32>, vector<32x128xf32>, vector<2x128xf32> -> vector<2x128xf32>
    %c0_219 = arith.constant 0 : index
    %c0_220 = arith.constant 0 : index
    %336 = vector.load %arg24[%c0_219, %c0_220] : memref<1x128xf32, #tpu.memory_space<vmem>>, vector<1x128xf32>
    %337 = vector.broadcast %336 : vector<1x128xf32> to vector<2x128xf32>
    %338 = arith.addf %335, %337 : vector<2x128xf32>
    %c0_221 = arith.constant 0 : index
    %c0_222 = arith.constant 0 : index
    %339 = vector.load %arg25[%c0_221, %c0_222] : memref<2x128xf32, #tpu.memory_space<vmem>>, vector<2x128xf32>
    tpu.vector_store %arg25[%c0_221, %c0_222], %338 {strides = array<i32>} : memref<2x128xf32, #tpu.memory_space<vmem>>, vector<2x128xf32>,
    return
  }
}

</mosaic_0001>

<llo_original>
// kernel: mul.9
$region0: #{mul.9}
  %s0 = inlined_call_operand.vmem [shape: f32[2,8], index: 0, kind: input, shape index: {}]
  %s1 = inlined_call_operand.vmem [shape: f32[16], index: 1, kind: output, shape index: {}]
  $region1: #{mul.9} parent=0
    #allocation0 [shape = 'u8[4096]{0}', space=vmem, size = 0x1000, scoped, tag = 'scoped mem for output reshape']
    #allocation1 [shape = 'u8[4096]{0}', space=vmem, size = 0x1000, scoped, tag = 'scoped mem for input reshape']
    %s3 = sshllo.u32 0, 2
    %v4 = vld [vmem:[%s0] sm:%s3]
    %5 = vst [vmem:[#allocation1] sm:%s3] %v4
    %v6 = vld [vmem:[#allocation1] sm:$0x1]
    %vm7 = vcmask 64512
    %8 = vst.msk [vmem:[#allocation0] sm:$0x1] %vm7, %v6
    %s9 = scalar_lea.vmem [#allocation1], 1
    %v10 = vld [vmem:[%s9] sm:$0x1]
    %11 = vrot.lane.b32.xlu0 %v10, 8
    %v12 = vpop.permute.xlu0 %11
    %vm13 = vcmask 130112
    %14 = vst.msk [vmem:[#allocation0] sm:$0x1] %vm13, %v12
    %s16 = sshllo.u32 0, 1
    %v18 = vld [vmem:[#allocation0] sm:%s16]
    %s19 = sshllo.u32 0, 1
    %20 = vst [vmem:[%s1] sm:%s19] %v18

// kernel: bert_sequence_classifier.1
$region0: #{bert_sequence_classifier.1}
  #allocation0 [shape = 'u32[]', space=smem, size = 0x4, offset = 0x4, fixed_abs, tag = 'smem constant byte address 0x4 - core index']
  #allocation1 [shape = 'u32[144,128]{1,0:T(1,128)}', space=vmem, size = 0x12000, scoped, tag = 'internal scratch']
  %s0 = inlined_call_operand.vmem [shape: f32[16,32], index: 0, kind: input, shape index: {}]
  %s1 = inlined_call_operand.vmem [shape: f32[16,16], index: 1, kind: input, shape index: {}]
  %s2 = inlined_call_operand.vmem [shape: f32[2,16], index: 2, kind: input, shape index: {}]
  %s3 = inlined_call_operand.vmem [shape: f32[1,32], index: 3, kind: input, shape index: {}]
  %s4 = inlined_call_operand.vmem [shape: f32[1,32], index: 4, kind: input, shape index: {}]
  %s5 = inlined_call_operand.vmem [shape: f32[4,32,16], index: 5, kind: input, shape index: {}]
  %s6 = inlined_call_operand.vmem [shape: f32[4,1,16], index: 6, kind: input, shape index: {}]
  %s7 = inlined_call_operand.vmem [shape: f32[4,32,16], index: 7, kind: input, shape index: {}]
  %s8 = inlined_call_operand.vmem [shape: f32[4,1,16], index: 8, kind: input, shape index: {}]
  %s9 = inlined_call_operand.vmem [shape: f32[4,32,16], index: 9, kind: input, shape index: {}]
  %s10 = inlined_call_operand.vmem [shape: f32[4,1,16], index: 10, kind: input, shape index: {}]
  %s11 = inlined_call_operand.vmem [shape: f32[4,16,32], index: 11, kind: input, shape index: {}]
  %s12 = inlined_call_operand.vmem [shape: f32[2,1,32], index: 12, kind: input, shape index: {}]
  %s13 = inlined_call_operand.vmem [shape: f32[2,1,32], index: 13, kind: input, shape index: {}, may-alias: {13,19}]
  %s14 = inlined_call_operand.vmem [shape: f32[2,1,32], index: 14, kind: input, shape index: {}, may-alias: {14,20}]
  %s15 = inlined_call_operand.vmem [shape: f32[2,32,64], index: 15, kind: input, shape index: {}]
  %s16 = inlined_call_operand.vmem [shape: f32[2,1,64], index: 16, kind: input, shape index: {}]
  %s17 = inlined_call_operand.vmem [shape: f32[2,64,32], index: 17, kind: input, shape index: {}]
  %s18 = inlined_call_operand.vmem [shape: f32[2,1,32], index: 18, kind: input, shape index: {}]
  %s19 = inlined_call_operand.vmem [shape: f32[2,1,32], index: 19, kind: input, shape index: {}, may-alias: {13,19}]
  %s20 = inlined_call_operand.vmem [shape: f32[2,1,32], index: 20, kind: input, shape index: {}, may-alias: {14,20}]
  %s21 = inlined_call_operand.vmem [shape: f32[32,32], index: 21, kind: input, shape index: {}]
  %s22 = inlined_call_operand.vmem [shape: f32[1,32], index: 22, kind: input, shape index: {}]
  %s23 = inlined_call_operand.vmem [shape: f32[32,128], index: 23, kind: input, shape index: {}]
  %s24 = inlined_call_operand.vmem [shape: f32[1,128], index: 24, kind: input, shape index: {}]
  %s25 = inlined_call_operand.hbm [shape: f32[2,128], index: 25, kind: output, shape index: {}]
  %s26 = sld [smem:[#allocation0]]
  $region110: #{bert_sequence_classifier.1} parent=0
    _
  %s28 = ssub.s32 1, %s26
  %s29 = scalar_select 0, %s28, %s26
  $region1: #{bert_sequence_classifier.1} parent=0
    #allocation2 [shape = 'u8[1024]{0}', space=vmem, size = 0x400, scoped, tag = 'output window, operand 0, single buffered']
    #allocation3 [shape = 's32[1]{0}', space=sflag, size = 0x4, scoped, tag = 'scoped memory for bert_sequence_classifier.1']
    %30 = vsyncpa [#allocation3], 0
    // Predicated region
    $region2: #{bert_sequence_classifier.1} parent=1 // pred_check
      _
    $region3: #{bert_sequence_classifier.1} parent=1 // pred_check_branch
      %32 = sbr.rel (0) target = $region5
    $region4: #{bert_sequence_classifier.1} parent=1 // pred_region
      _
    $region5: #{bert_sequence_classifier.1} parent=1 // pred_fallthru
      _
    // Predicated region
    $region6: #{bert_sequence_classifier.1} parent=1 // pred_check
      _
    $region7: #{bert_sequence_classifier.1} parent=1 // pred_check_branch
      %34 = sbr.rel (0) target = $region9
    $region8: #{bert_sequence_classifier.1} parent=1 // pred_region
      _
    $region9: #{bert_sequence_classifier.1} parent=1 // pred_fallthru
      _
    // Predicated region
    $region10: #{bert_sequence_classifier.1} parent=1 // pred_check
      _
    $region11: #{bert_sequence_classifier.1} parent=1 // pred_check_branch
      %36 = sbr.rel (0) target = $region13
    $region12: #{bert_sequence_classifier.1} parent=1 // pred_region
      _
    $region13: #{bert_sequence_classifier.1} parent=1 // pred_fallthru
      _
    // Predicated region
    $region14: #{bert_sequence_classifier.1} parent=1 // pred_check
      _
    $region15: #{bert_sequence_classifier.1} parent=1 // pred_check_branch
      %38 = sbr.rel (0) target = $region17
    $region16: #{bert_sequence_classifier.1} parent=1 // pred_region
      _
    $region17: #{bert_sequence_classifier.1} parent=1 // pred_fallthru
      _
    // Predicated region
    $region18: #{bert_sequence_classifier.1} parent=1 // pred_check
      _
    $region19: #{bert_sequence_classifier.1} parent=1 // pred_check_branch
      %40 = sbr.rel (0) target = $region21
    $region20: #{bert_sequence_classifier.1} parent=1 // pred_region
      _
    $region21: #{bert_sequence_classifier.1} parent=1 // pred_fallthru
      _
    // Predicated region
    $region22: #{bert_sequence_classifier.1} parent=1 // pred_check
      _
    $region23: #{bert_sequence_classifier.1} parent=1 // pred_check_branch
      %42 = sbr.rel (0) target = $region25
    $region24: #{bert_sequence_classifier.1} parent=1 // pred_region
      _
    $region25: #{bert_sequence_classifier.1} parent=1 // pred_fallthru
      _
    // Predicated region
    $region26: #{bert_sequence_classifier.1} parent=1 // pred_check
      _
    $region27: #{bert_sequence_classifier.1} parent=1 // pred_check_branch
      %44 = sbr.rel (0) target = $region29
    $region28: #{bert_sequence_classifier.1} parent=1 // pred_region
      _
    $region29: #{bert_sequence_classifier.1} parent=1 // pred_fallthru
      _
    // Predicated region
    $region30: #{bert_sequence_classifier.1} parent=1 // pred_check
      _
    $region31: #{bert_sequence_classifier.1} parent=1 // pred_check_branch
      %46 = sbr.rel (0) target = $region33
    $region32: #{bert_sequence_classifier.1} parent=1 // pred_region
      _
    $region33: #{bert_sequence_classifier.1} parent=1 // pred_fallthru
      _
    // Predicated region
    $region34: #{bert_sequence_classifier.1} parent=1 // pred_check
      _
    $region35: #{bert_sequence_classifier.1} parent=1 // pred_check_branch
      %48 = sbr.rel (0) target = $region37
    $region36: #{bert_sequence_classifier.1} parent=1 // pred_region
      _
    $region37: #{bert_sequence_classifier.1} parent=1 // pred_fallthru
      _
    // Predicated region
    $region38: #{bert_sequence_classifier.1} parent=1 // pred_check
      _
    $region39: #{bert_sequence_classifier.1} parent=1 // pred_check_branch
      %50 = sbr.rel (0) target = $region41
    $region40: #{bert_sequence_classifier.1} parent=1 // pred_region
      _
    $region41: #{bert_sequence_classifier.1} parent=1 // pred_fallthru
      _
    // Predicated region
    $region42: #{bert_sequence_classifier.1} parent=1 // pred_check
      _
    $region43: #{bert_sequence_classifier.1} parent=1 // pred_check_branch
      %52 = sbr.rel (0) target = $region45
    $region44: #{bert_sequence_classifier.1} parent=1 // pred_region
      _
    $region45: #{bert_sequence_classifier.1} parent=1 // pred_fallthru
      _
    // Predicated region
    $region46: #{bert_sequence_classifier.1} parent=1 // pred_check
      _
    $region47: #{bert_sequence_classifier.1} parent=1 // pred_check_branch
      %54 = sbr.rel (0) target = $region49
    $region48: #{bert_sequence_classifier.1} parent=1 // pred_region
      _
    $region49: #{bert_sequence_classifier.1} parent=1 // pred_fallthru
      _
    // Predicated region
    $region50: #{bert_sequence_classifier.1} parent=1 // pred_check
      _
    $region51: #{bert_sequence_classifier.1} parent=1 // pred_check_branch
      %56 = sbr.rel (0) target = $region53
    $region52: #{bert_sequence_classifier.1} parent=1 // pred_region
      _
    $region53: #{bert_sequence_classifier.1} parent=1 // pred_fallthru
      _
    // Predicated region
    $region54: #{bert_sequence_classifier.1} parent=1 // pred_check
      _
    $region55: #{bert_sequence_classifier.1} parent=1 // pred_check_branch
      %58 = sbr.rel (0) target = $region57
    $region56: #{bert_sequence_classifier.1} parent=1 // pred_region
      _
    $region57: #{bert_sequence_classifier.1} parent=1 // pred_fallthru
      _
    // Predicated region
    $region58: #{bert_sequence_classifier.1} parent=1 // pred_check
      _
    $region59: #{bert_sequence_classifier.1} parent=1 // pred_check_branch
      %60 = sbr.rel (0) target = $region61
    $region60: #{bert_sequence_classifier.1} parent=1 // pred_region
      _
    $region61: #{bert_sequence_classifier.1} parent=1 // pred_fallthru
      _
    // Predicated region
    $region62: #{bert_sequence_classifier.1} parent=1 // pred_check
      _
    $region63: #{bert_sequence_classifier.1} parent=1 // pred_check_branch
      %62 = sbr.rel (0) target = $region65
    $region64: #{bert_sequence_classifier.1} parent=1 // pred_region
      _
    $region65: #{bert_sequence_classifier.1} parent=1 // pred_fallthru
      _
    // Predicated region
    $region66: #{bert_sequence_classifier.1} parent=1 // pred_check
      _
    $region67: #{bert_sequence_classifier.1} parent=1 // pred_check_branch
      %64 = sbr.rel (0) target = $region69
    $region68: #{bert_sequence_classifier.1} parent=1 // pred_region
      _
    $region69: #{bert_sequence_classifier.1} parent=1 // pred_fallthru
      _
    // Predicated region
    $region70: #{bert_sequence_classifier.1} parent=1 // pred_check
      _
    $region71: #{bert_sequence_classifier.1} parent=1 // pred_check_branch
      %66 = sbr.rel (0) target = $region73
    $region72: #{bert_sequence_classifier.1} parent=1 // pred_region
      _
    $region73: #{bert_sequence_classifier.1} parent=1 // pred_fallthru
      _
    // Predicated region
    $region74: #{bert_sequence_classifier.1} parent=1 // pred_check
      _
    $region75: #{bert_sequence_classifier.1} parent=1 // pred_check_branch
      %68 = sbr.rel (0) target = $region77
    $region76: #{bert_sequence_classifier.1} parent=1 // pred_region
      _
    $region77: #{bert_sequence_classifier.1} parent=1 // pred_fallthru
      _
    // Predicated region
    $region78: #{bert_sequence_classifier.1} parent=1 // pred_check
      _
    $region79: #{bert_sequence_classifier.1} parent=1 // pred_check_branch
      %70 = sbr.rel (0) target = $region81
    $region80: #{bert_sequence_classifier.1} parent=1 // pred_region
      _
    $region81: #{bert_sequence_classifier.1} parent=1 // pred_fallthru
      _
    // Predicated region
    $region82: #{bert_sequence_classifier.1} parent=1 // pred_check
      _
    $region83: #{bert_sequence_classifier.1} parent=1 // pred_check_branch
      %72 = sbr.rel (0) target = $region85
    $region84: #{bert_sequence_classifier.1} parent=1 // pred_region
      _
    $region85: #{bert_sequence_classifier.1} parent=1 // pred_fallthru
      _
    // Predicated region
    $region86: #{bert_sequence_classifier.1} parent=1 // pred_check
      _
    $region87: #{bert_sequence_classifier.1} parent=1 // pred_check_branch
      %74 = sbr.rel (0) target = $region89
    $region88: #{bert_sequence_classifier.1} parent=1 // pred_region
      _
    $region89: #{bert_sequence_classifier.1} parent=1 // pred_fallthru
      _
    // Predicated region
    $region90: #{bert_sequence_classifier.1} parent=1 // pred_check
      _
    $region91: #{bert_sequence_classifier.1} parent=1 // pred_check_branch
      %76 = sbr.rel (0) target = $region93
    $region92: #{bert_sequence_classifier.1} parent=1 // pred_region
      _
    $region93: #{bert_sequence_classifier.1} parent=1 // pred_fallthru
      _
    // Predicated region
    $region94: #{bert_sequence_classifier.1} parent=1 // pred_check
      _
    $region95: #{bert_sequence_classifier.1} parent=1 // pred_check_branch
      %78 = sbr.rel (0) target = $region97
    $region96: #{bert_sequence_classifier.1} parent=1 // pred_region
      _
    $region97: #{bert_sequence_classifier.1} parent=1 // pred_fallthru
      _
    // Predicated region
    $region98: #{bert_sequence_classifier.1} parent=1 // pred_check
      _
    $region99: #{bert_sequence_classifier.1} parent=1 // pred_check_branch
      %80 = sbr.rel (0) target = $region101
    $region100: #{bert_sequence_classifier.1} parent=1 // pred_region
      _
    $region101: #{bert_sequence_classifier.1} parent=1 // pred_fallthru
      _
    %v81 = vld [vmem:[%s0] sm:$0xff]
    %v82 = vld [vmem:[%s0 + $0x8] sm:$0xff]
    %v83 = vld [vmem:[%s3] sm:$0x1]
    %v84 = vld [vmem:[%s4] sm:$0x1]
    %vm85 = vcmask 261120
    %v86 = vsel %vm85, %v81, 0.0
    %87 = vadd.xlane.f32.xlu0 %v86
    %v88 = vpop.xlane.xlu0 %87
    %v89 = vsel %vm85, %v82, 0.0
    %90 = vadd.xlane.f32.xlu0 %v89
    %v91 = vpop.xlane.xlu0 %90
    %v92 = vrcp.pop 32.0
    %v93 = vmul.f32 %v88, %v92
    %v94 = vmul.f32 %v91, %v92
    %v95 = vsub.f32 %v81, %v93
    %v96 = vsub.f32 %v82, %v94
    %v97 = vmul.f32 %v95, %v95
    %v98 = vmul.f32 %v96, %v96
    %v99 = vsel %vm85, %v97, 0.0
    %100 = vadd.xlane.f32.xlu0 %v99
    %v101 = vpop.xlane.xlu0 %100
    %v102 = vsel %vm85, %v98, 0.0
    %103 = vadd.xlane.f32.xlu0 %v102
    %v104 = vpop.xlane.xlu0 %103
    %v105 = vmul.f32 %v101, %v92
    %v106 = vmul.f32 %v104, %v92
    %v107 = vadd.f32 %v105, 1e-12
    %v108 = vadd.f32 %v106, 1e-12
    %v109 = vrsqrt.pop %v107
    %v110 = vrsqrt.pop %v108
    %v111 = vmul.f32 %v95, %v109
    %v112 = vmul.f32 %v96, %v110
    %v114 = vlaneseq
    %v115 = vshrl.u32 %v114, 7
    %v116 = vsub.s32 0, %v115
    %v117 = vrot.slane %v83, %v116
    %v119 = vmul.f32 %v111, %v117
    %v120 = vmul.f32 %v112, %v117
    %v122 = vlaneseq
    %v123 = vshrl.u32 %v122, 7
    %v124 = vsub.s32 0, %v123
    %v125 = vrot.slane %v84, %v124
    %v127 = vadd.f32 %v119, %v125
    %v128 = vadd.f32 %v120, %v125
    %v129 = vld [vmem:[%s1] sm:$0xff]
    %v130 = vld [vmem:[%s1 + $0x8] sm:$0xff]
    %v131 = vld [vmem:[%s12] sm:$0x1]
    %v132 = vld [vmem:[%s5] sm:$0xff]
    %v133 = vld [vmem:[%s5 + $0x8] sm:$0xff]
    %v134 = vld [vmem:[%s5 + $0x10] sm:$0xff]
    %v135 = vld [vmem:[%s5 + $0x18] sm:$0xff]
    %v136 = vld [vmem:[%s6] sm:$0x1]
    %v138 = vlaneseq
    %v139 = vshrl.u32 %v138, 7
    %v140 = vsub.s32 0, %v139
    %v141 = vrot.slane %v136, %v140
    %v144 = vsel %vm85, %v127, 0
    %v147 = vsel %vm85, %v128, 0
    %149 = vmatprep.subr.mxu0 0.0
    %150 = vmatpush1.msra.mxu0 %v132
    %151 = vmatprep.subr.mxu0 0.0
    %152 = vmatpush1.msra.mxu0 %v133
    %153 = vmatprep.subr.mxu0 0.0
    %154 = vmatpush1.msra.mxu0 %v134
    %155 = vmatprep.subr.mxu0 0.0
    %156 = vmatpush1.msra.mxu0 %v135
    %157 = vmatprep.subr.mxu0 0.0
    %158 = vmatpush1.msra.mxu0 0.0
    %159 = vmatprep.subr.mxu0 0.0
    %160 = vmatpush1.msra.mxu0 0.0
    %161 = vmatprep.subr.mxu0 0.0
    %162 = vmatpush1.msra.mxu0 0.0
    %163 = vmatprep.subr.mxu0 0.0
    %164 = vmatpush1.msra.mxu0 0.0
    %165 = vmatprep.subr.mxu0 0.0
    %166 = vmatpush1.msra.mxu0 0.0
    %167 = vmatprep.subr.mxu0 0.0
    %168 = vmatpush1.msra.mxu0 0.0
    %169 = vmatprep.subr.mxu0 0.0
    %170 = vmatpush1.msra.mxu0 0.0
    %171 = vmatprep.subr.mxu0 0.0
    %172 = vmatpush1.msra.mxu0 0.0
    %173 = vmatprep.subr.mxu0 0.0
    %174 = vmatpush1.msra.mxu0 0.0
    %175 = vmatprep.subr.mxu0 0.0
    %176 = vmatpush1.msra.mxu0 0.0
    %177 = vmatprep.subr.mxu0 0.0
    %178 = vmatpush1.msra.mxu0 0.0
    %179 = vmatprep.subr.mxu0 0.0
    %180 = vmatpush1.msra.mxu0 0.0
    %181 = vmatprep.subr.mxu0 0.0
    %182 = vmatpush1.msra.mxu0 0.0
    %183 = vmatprep.subr.mxu0 0.0
    %184 = vmatpush1.msra.mxu0 0.0
    %185 = vmatprep.subr.mxu0 0.0
    %186 = vmatpush1.msra.mxu0 0.0
    %187 = vmatprep.subr.mxu0 0.0
    %188 = vmatpush1.msra.mxu0 0.0
    %189 = vmatprep.subr.mxu0 0.0
    %190 = vmatpush1.msra.mxu0 0.0
    %191 = vmatprep.subr.mxu0 0.0
    %192 = vmatpush1.msra.mxu0 0.0
    %193 = vmatprep.subr.mxu0 0.0
    %194 = vmatpush1.msra.mxu0 0.0
    %195 = vmatprep.subr.mxu0 0.0
    %196 = vmatpush1.msra.mxu0 0.0
    %197 = vmatprep.subr.mxu0 0.0
    %198 = vmatpush1.msra.mxu0 0.0
    %199 = vmatprep.subr.mxu0 0.0
    %200 = vmatpush1.msra.mxu0 0.0
    %201 = vmatprep.subr.mxu0 0.0
    %202 = vmatpush1.msra.mxu0 0.0
    %203 = vmatprep.subr.mxu0 0.0
    %204 = vmatpush1.msra.mxu0 0.0
    %205 = vmatprep.subr.mxu0 0.0
    %206 = vmatpush1.msra.mxu0 0.0
    %207 = vmatprep.subr.mxu0 0.0
    %208 = vmatpush1.msra.mxu0 0.0
    %209 = vmatprep.subr.mxu0 0.0
    %210 = vmatpush1.msra.mxu0 0.0
    %211 = vmatprep.subr.mxu0 0.0
    %212 = vmatpush1.msra.mxu0 0.0
    %213 = vmatprep.mubr.f32.mxu0 0.0
    %214 = vmatmul.mubr.f32.gmra.mrb[0].mxu0 %v144
    %v215 = vpop.f32.mrb[0].mxu0
    %v216 = vadd.f32 %v141, %v215
    %v217 = vpop.f32.mrb[0].mxu0
    %218 = vmatprep.mubr.f32.mxu0 0.0
    %219 = vmatmul.mubr.f32.gmra.mrb[0].mxu0 %v147
    %v220 = vpop.f32.mrb[0].mxu0
    %v221 = vadd.f32 %v141, %v220
    %v222 = vpop.f32.mrb[0].mxu0
    %223 = vdwg.mxu0
    %v224 = vld [vmem:[%s7] sm:$0xff]
    %v225 = vld [vmem:[%s7 + $0x8] sm:$0xff]
    %v226 = vld [vmem:[%s7 + $0x10] sm:$0xff]
    %v227 = vld [vmem:[%s7 + $0x18] sm:$0xff]
    %v228 = vld [vmem:[%s8] sm:$0x1]
    %v230 = vlaneseq
    %v231 = vshrl.u32 %v230, 7
    %v232 = vsub.s32 0, %v231
    %v233 = vrot.slane %v228, %v232
    %235 = vmatprep.subr.mxu0 0.0
    %236 = vmatpush1.msra.mxu0 %v224
    %237 = vmatprep.subr.mxu0 0.0
    %238 = vmatpush1.msra.mxu0 %v225
    %239 = vmatprep.subr.mxu0 0.0
    %240 = vmatpush1.msra.mxu0 %v226
    %241 = vmatprep.subr.mxu0 0.0
    %242 = vmatpush1.msra.mxu0 %v227
    %243 = vmatprep.subr.mxu0 0.0
    %244 = vmatpush1.msra.mxu0 0.0
    %245 = vmatprep.subr.mxu0 0.0
    %246 = vmatpush1.msra.mxu0 0.0
    %247 = vmatprep.subr.mxu0 0.0
    %248 = vmatpush1.msra.mxu0 0.0
    %249 = vmatprep.subr.mxu0 0.0
    %250 = vmatpush1.msra.mxu0 0.0
    %251 = vmatprep.subr.mxu0 0.0
    %252 = vmatpush1.msra.mxu0 0.0
    %253 = vmatprep.subr.mxu0 0.0
    %254 = vmatpush1.msra.mxu0 0.0
    %255 = vmatprep.subr.mxu0 0.0
    %256 = vmatpush1.msra.mxu0 0.0
    %257 = vmatprep.subr.mxu0 0.0
    %258 = vmatpush1.msra.mxu0 0.0
    %259 = vmatprep.subr.mxu0 0.0
    %260 = vmatpush1.msra.mxu0 0.0
    %261 = vmatprep.subr.mxu0 0.0
    %262 = vmatpush1.msra.mxu0 0.0
    %263 = vmatprep.subr.mxu0 0.0
    %264 = vmatpush1.msra.mxu0 0.0
    %265 = vmatprep.subr.mxu0 0.0
    %266 = vmatpush1.msra.mxu0 0.0
    %267 = vmatprep.subr.mxu0 0.0
    %268 = vmatpush1.msra.mxu0 0.0
    %269 = vmatprep.subr.mxu0 0.0
    %270 = vmatpush1.msra.mxu0 0.0
    %271 = vmatprep.subr.mxu0 0.0
    %272 = vmatpush1.msra.mxu0 0.0
    %273 = vmatprep.subr.mxu0 0.0
    %274 = vmatpush1.msra.mxu0 0.0
    %275 = vmatprep.subr.mxu0 0.0
    %276 = vmatpush1.msra.mxu0 0.0
    %277 = vmatprep.subr.mxu0 0.0
    %278 = vmatpush1.msra.mxu0 0.0
    %279 = vmatprep.subr.mxu0 0.0
    %280 = vmatpush1.msra.mxu0 0.0
    %281 = vmatprep.subr.mxu0 0.0
    %282 = vmatpush1.msra.mxu0 0.0
    %283 = vmatprep.subr.mxu0 0.0
    %284 = vmatpush1.msra.mxu0 0.0
    %285 = vmatprep.subr.mxu0 0.0
    %286 = vmatpush1.msra.mxu0 0.0
    %287 = vmatprep.subr.mxu0 0.0
    %288 = vmatpush1.msra.mxu0 0.0
    %289 = vmatprep.subr.mxu0 0.0
    %290 = vmatpush1.msra.mxu0 0.0
    %291 = vmatprep.subr.mxu0 0.0
    %292 = vmatpush1.msra.mxu0 0.0
    %293 = vmatprep.subr.mxu0 0.0
    %294 = vmatpush1.msra.mxu0 0.0
    %295 = vmatprep.subr.mxu0 0.0
    %296 = vmatpush1.msra.mxu0 0.0
    %297 = vmatprep.subr.mxu0 0.0
    %298 = vmatpush1.msra.mxu0 0.0
    %299 = vmatprep.mubr.f32.mxu0 0.0
    %300 = vmatmul.mubr.f32.gmra.mrb[0].mxu0 %v144
    %v301 = vpop.f32.mrb[0].mxu0
    %v302 = vadd.f32 %v233, %v301
    %v303 = vpop.f32.mrb[0].mxu0
    %304 = vmatprep.mubr.f32.mxu0 0.0
    %305 = vmatmul.mubr.f32.gmra.mrb[0].mxu0 %v147
    %v306 = vpop.f32.mrb[0].mxu0
    %v307 = vadd.f32 %v233, %v306
    %v308 = vpop.f32.mrb[0].mxu0
    %309 = vdwg.mxu0
    %v310 = vld [vmem:[%s9] sm:$0xff]
    %v311 = vld [vmem:[%s9 + $0x8] sm:$0xff]
    %v312 = vld [vmem:[%s9 + $0x10] sm:$0xff]
    %v313 = vld [vmem:[%s9 + $0x18] sm:$0xff]
    %v314 = vld [vmem:[%s10] sm:$0x1]
    %v316 = vlaneseq
    %v317 = vshrl.u32 %v316, 7
    %v318 = vsub.s32 0, %v317
    %v319 = vrot.slane %v314, %v318
    %321 = vmatprep.subr.mxu0 0.0
    %322 = vmatpush1.msra.mxu0 %v310
    %323 = vmatprep.subr.mxu0 0.0
    %324 = vmatpush1.msra.mxu0 %v311
    %325 = vmatprep.subr.mxu0 0.0
    %326 = vmatpush1.msra.mxu0 %v312
    %327 = vmatprep.subr.mxu0 0.0
    %328 = vmatpush1.msra.mxu0 %v313
    %329 = vmatprep.subr.mxu0 0.0
    %330 = vmatpush1.msra.mxu0 0.0
    %331 = vmatprep.subr.mxu0 0.0
    %332 = vmatpush1.msra.mxu0 0.0
    %333 = vmatprep.subr.mxu0 0.0
    %334 = vmatpush1.msra.mxu0 0.0
    %335 = vmatprep.subr.mxu0 0.0
    %336 = vmatpush1.msra.mxu0 0.0
    %337 = vmatprep.subr.mxu0 0.0
    %338 = vmatpush1.msra.mxu0 0.0
    %339 = vmatprep.subr.mxu0 0.0
    %340 = vmatpush1.msra.mxu0 0.0
    %341 = vmatprep.subr.mxu0 0.0
    %342 = vmatpush1.msra.mxu0 0.0
    %343 = vmatprep.subr.mxu0 0.0
    %344 = vmatpush1.msra.mxu0 0.0
    %345 = vmatprep.subr.mxu0 0.0
    %346 = vmatpush1.msra.mxu0 0.0
    %347 = vmatprep.subr.mxu0 0.0
    %348 = vmatpush1.msra.mxu0 0.0
    %349 = vmatprep.subr.mxu0 0.0
    %350 = vmatpush1.msra.mxu0 0.0
    %351 = vmatprep.subr.mxu0 0.0
    %352 = vmatpush1.msra.mxu0 0.0
    %353 = vmatprep.subr.mxu0 0.0
    %354 = vmatpush1.msra.mxu0 0.0
    %355 = vmatprep.subr.mxu0 0.0
    %356 = vmatpush1.msra.mxu0 0.0
    %357 = vmatprep.subr.mxu0 0.0
    %358 = vmatpush1.msra.mxu0 0.0
    %359 = vmatprep.subr.mxu0 0.0
    %360 = vmatpush1.msra.mxu0 0.0
    %361 = vmatprep.subr.mxu0 0.0
    %362 = vmatpush1.msra.mxu0 0.0
    %363 = vmatprep.subr.mxu0 0.0
    %364 = vmatpush1.msra.mxu0 0.0
    %365 = vmatprep.subr.mxu0 0.0
    %366 = vmatpush1.msra.mxu0 0.0
    %367 = vmatprep.subr.mxu0 0.0
    %368 = vmatpush1.msra.mxu0 0.0
    %369 = vmatprep.subr.mxu0 0.0
    %370 = vmatpush1.msra.mxu0 0.0
    %371 = vmatprep.subr.mxu0 0.0
    %372 = vmatpush1.msra.mxu0 0.0
    %373 = vmatprep.subr.mxu0 0.0
    %374 = vmatpush1.msra.mxu0 0.0
    %375 = vmatprep.subr.mxu0 0.0
    %376 = vmatpush1.msra.mxu0 0.0
    %377 = vmatprep.subr.mxu0 0.0
    %378 = vmatpush1.msra.mxu0 0.0
    %379 = vmatprep.subr.mxu0 0.0
    %380 = vmatpush1.msra.mxu0 0.0
    %381 = vmatprep.subr.mxu0 0.0
    %382 = vmatpush1.msra.mxu0 0.0
    %383 = vmatprep.subr.mxu0 0.0
    %384 = vmatpush1.msra.mxu0 0.0
    %385 = vmatprep.mubr.f32.mxu0 0.0
    %386 = vmatmul.mubr.f32.gmra.mrb[0].mxu0 %v144
    %v387 = vpop.f32.mrb[0].mxu0
    %v388 = vadd.f32 %v319, %v387
    %v389 = vpop.f32.mrb[0].mxu0
    %390 = vmatprep.mubr.f32.mxu0 0.0
    %391 = vmatmul.mubr.f32.gmra.mrb[0].mxu0 %v147
    %v392 = vpop.f32.mrb[0].mxu0
    %v393 = vadd.f32 %v319, %v392
    %v394 = vpop.f32.mrb[0].mxu0
    %395 = vdwg.mxu0
    %vm396 = vcmask 130048
    %v398 = vsel %vm396, %v216, 0
    %v401 = vsel %vm396, %v221, 0
    %v404 = vsel %vm396, %v302, 0
    %v407 = vsel %vm396, %v307, 0
    %409 = vmatprep.subr.mxu0 0.0
    %410 = vmatpush1.xpose.msra.mxu0 %v404
    %411 = vmatprep.subr.mxu0 0.0
    %412 = vmatpush1.xpose.msra.mxu0 %v407
    %413 = vmatprep.subr.mxu0 0.0
    %414 = vmatpush1.xpose.msra.mxu0 0.0
    %415 = vmatprep.subr.mxu0 0.0
    %416 = vmatpush1.xpose.msra.mxu0 0.0
    %417 = vmatprep.subr.mxu0 0.0
    %418 = vmatpush1.xpose.msra.mxu0 0.0
    %419 = vmatprep.subr.mxu0 0.0
    %420 = vmatpush1.xpose.msra.mxu0 0.0
    %421 = vmatprep.subr.mxu0 0.0
    %422 = vmatpush1.xpose.msra.mxu0 0.0
    %423 = vmatprep.subr.mxu0 0.0
    %424 = vmatpush1.xpose.msra.mxu0 0.0
    %425 = vmatprep.subr.mxu0 0.0
    %426 = vmatpush1.xpose.msra.mxu0 0.0
    %427 = vmatprep.subr.mxu0 0.0
    %428 = vmatpush1.xpose.msra.mxu0 0.0
    %429 = vmatprep.subr.mxu0 0.0
    %430 = vmatpush1.xpose.msra.mxu0 0.0
    %431 = vmatprep.subr.mxu0 0.0
    %432 = vmatpush1.xpose.msra.mxu0 0.0
    %433 = vmatprep.subr.mxu0 0.0
    %434 = vmatpush1.xpose.msra.mxu0 0.0
    %435 = vmatprep.subr.mxu0 0.0
    %436 = vmatpush1.xpose.msra.mxu0 0.0
    %437 = vmatprep.subr.mxu0 0.0
    %438 = vmatpush1.xpose.msra.mxu0 0.0
    %439 = vmatprep.subr.mxu0 0.0
    %440 = vmatpush1.xpose.msra.mxu0 0.0
    %441 = vmatprep.subr.mxu0 0.0
    %442 = vmatpush1.xpose.msra.mxu0 0.0
    %443 = vmatprep.subr.mxu0 0.0
    %444 = vmatpush1.xpose.msra.mxu0 0.0
    %445 = vmatprep.subr.mxu0 0.0
    %446 = vmatpush1.xpose.msra.mxu0 0.0
    %447 = vmatprep.subr.mxu0 0.0
    %448 = vmatpush1.xpose.msra.mxu0 0.0
    %449 = vmatprep.subr.mxu0 0.0
    %450 = vmatpush1.xpose.msra.mxu0 0.0
    %451 = vmatprep.subr.mxu0 0.0
    %452 = vmatpush1.xpose.msra.mxu0 0.0
    %453 = vmatprep.subr.mxu0 0.0
    %454 = vmatpush1.xpose.msra.mxu0 0.0
    %455 = vmatprep.subr.mxu0 0.0
    %456 = vmatpush1.xpose.msra.mxu0 0.0
    %457 = vmatprep.subr.mxu0 0.0
    %458 = vmatpush1.xpose.msra.mxu0 0.0
    %459 = vmatprep.subr.mxu0 0.0
    %460 = vmatpush1.xpose.msra.mxu0 0.0
    %461 = vmatprep.subr.mxu0 0.0
    %462 = vmatpush1.xpose.msra.mxu0 0.0
    %463 = vmatprep.subr.mxu0 0.0
    %464 = vmatpush1.xpose.msra.mxu0 0.0
    %465 = vmatprep.subr.mxu0 0.0
    %466 = vmatpush1.xpose.msra.mxu0 0.0
    %467 = vmatprep.subr.mxu0 0.0
    %468 = vmatpush1.xpose.msra.mxu0 0.0
    %469 = vmatprep.subr.mxu0 0.0
    %470 = vmatpush1.xpose.msra.mxu0 0.0
    %471 = vmatprep.subr.mxu0 0.0
    %472 = vmatpush1.xpose.msra.mxu0 0.0
    %473 = vmatprep.mubr.f32.mxu0 0.0
    %474 = vmatmul.mubr.f32.gmra.mrb[0].mxu0 %v398
    %v475 = vpop.f32.mrb[0].mxu0
    %v476 = vadd.f32 %v129, %v475
    %v477 = vpop.f32.mrb[0].mxu0
    %478 = vmatprep.mubr.f32.mxu0 0.0
    %479 = vmatmul.mubr.f32.gmra.mrb[0].mxu0 %v401
    %v480 = vpop.f32.mrb[0].mxu0
    %v481 = vadd.f32 %v130, %v480
    %v482 = vpop.f32.mrb[0].mxu0
    %483 = vdwg.mxu0
    %v484 = vsel %vm396, %v476, -inf
    %485 = vmax.xlane.f32.xlu0 %v484
    %v486 = vpop.xlane.xlu0 %485
    %v487 = vsel %vm396, %v481, -inf
    %488 = vmax.xlane.f32.xlu0 %v487
    %v489 = vpop.xlane.xlu0 %488
    %v490 = vsub.f32 %v476, %v486
    %v491 = vsub.f32 %v481, %v489
    %v492 = vmul.f32 %v490, 1.442695
    %v493 = vpow.pop %v492
    %v494 = vmul.f32 %v491, 1.442695
    %v495 = vpow.pop %v494
    %v496 = vsel %vm396, %v493, 0.0
    %497 = vadd.xlane.f32.xlu0 %v496
    %v498 = vpop.xlane.xlu0 %497
    %v499 = vsel %vm396, %v495, 0.0
    %500 = vadd.xlane.f32.xlu0 %v499
    %v501 = vpop.xlane.xlu0 %500
    %v502 = vrcp.pop %v498
    %v503 = vrcp.pop %v501
    %v504 = vmul.f32 %v493, %v502
    %v505 = vmul.f32 %v495, %v503
    %v507 = vsel %vm396, %v504, 0
    %v510 = vsel %vm396, %v505, 0
    %512 = vmatprep.subr.mxu0 0.0
    %513 = vmatpush1.msra.mxu0 %v388
    %514 = vmatprep.subr.mxu0 0.0
    %515 = vmatpush1.msra.mxu0 %v393
    %516 = vmatprep.subr.mxu0 0.0
    %517 = vmatpush1.msra.mxu0 0.0
    %518 = vmatprep.subr.mxu0 0.0
    %519 = vmatpush1.msra.mxu0 0.0
    %520 = vmatprep.subr.mxu0 0.0
    %521 = vmatpush1.msra.mxu0 0.0
    %522 = vmatprep.subr.mxu0 0.0
    %523 = vmatpush1.msra.mxu0 0.0
    %524 = vmatprep.subr.mxu0 0.0
    %525 = vmatpush1.msra.mxu0 0.0
    %526 = vmatprep.subr.mxu0 0.0
    %527 = vmatpush1.msra.mxu0 0.0
    %528 = vmatprep.subr.mxu0 0.0
    %529 = vmatpush1.msra.mxu0 0.0
    %530 = vmatprep.subr.mxu0 0.0
    %531 = vmatpush1.msra.mxu0 0.0
    %532 = vmatprep.subr.mxu0 0.0
    %533 = vmatpush1.msra.mxu0 0.0
    %534 = vmatprep.subr.mxu0 0.0
    %535 = vmatpush1.msra.mxu0 0.0
    %536 = vmatprep.subr.mxu0 0.0
    %537 = vmatpush1.msra.mxu0 0.0
    %538 = vmatprep.subr.mxu0 0.0
    %539 = vmatpush1.msra.mxu0 0.0
    %540 = vmatprep.subr.mxu0 0.0
    %541 = vmatpush1.msra.mxu0 0.0
    %542 = vmatprep.subr.mxu0 0.0
    %543 = vmatpush1.msra.mxu0 0.0
    %544 = vmatprep.subr.mxu0 0.0
    %545 = vmatpush1.msra.mxu0 0.0
    %546 = vmatprep.subr.mxu0 0.0
    %547 = vmatpush1.msra.mxu0 0.0
    %548 = vmatprep.subr.mxu0 0.0
    %549 = vmatpush1.msra.mxu0 0.0
    %550 = vmatprep.subr.mxu0 0.0
    %551 = vmatpush1.msra.mxu0 0.0
    %552 = vmatprep.subr.mxu0 0.0
    %553 = vmatpush1.msra.mxu0 0.0
    %554 = vmatprep.subr.mxu0 0.0
    %555 = vmatpush1.msra.mxu0 0.0
    %556 = vmatprep.subr.mxu0 0.0
    %557 = vmatpush1.msra.mxu0 0.0
    %558 = vmatprep.subr.mxu0 0.0
    %559 = vmatpush1.msra.mxu0 0.0
    %560 = vmatprep.subr.mxu0 0.0
    %561 = vmatpush1.msra.mxu0 0.0
    %562 = vmatprep.subr.mxu0 0.0
    %563 = vmatpush1.msra.mxu0 0.0
    %564 = vmatprep.subr.mxu0 0.0
    %565 = vmatpush1.msra.mxu0 0.0
    %566 = vmatprep.subr.mxu0 0.0
    %567 = vmatpush1.msra.mxu0 0.0
    %568 = vmatprep.subr.mxu0 0.0
    %569 = vmatpush1.msra.mxu0 0.0
    %570 = vmatprep.subr.mxu0 0.0
    %571 = vmatpush1.msra.mxu0 0.0
    %572 = vmatprep.subr.mxu0 0.0
    %573 = vmatpush1.msra.mxu0 0.0
    %574 = vmatprep.subr.mxu0 0.0
    %575 = vmatpush1.msra.mxu0 0.0
    %576 = vmatprep.mubr.f32.mxu0 0.0
    %577 = vmatmul.mubr.f32.gmra.mrb[0].mxu0 %v507
    %v578 = vpop.f32.mrb[0].mxu0
    %v579 = vadd.f32 0.0, %v578
    %v580 = vpop.f32.mrb[0].mxu0
    %581 = vmatprep.mubr.f32.mxu0 0.0
    %582 = vmatmul.mubr.f32.gmra.mrb[0].mxu0 %v510
    %v583 = vpop.f32.mrb[0].mxu0
    %v584 = vadd.f32 0.0, %v583
    %v585 = vpop.f32.mrb[0].mxu0
    %586 = vdwg.mxu0
    %v587 = vld [vmem:[%s11] sm:$0xff]
    %v588 = vld [vmem:[%s11 + $0x8] sm:$0xff]
    %v590 = vsel %vm396, %v579, 0
    %v593 = vsel %vm396, %v584, 0
    %595 = vmatprep.subr.mxu0 0.0
    %596 = vmatpush1.msra.mxu0 %v587
    %597 = vmatprep.subr.mxu0 0.0
    %598 = vmatpush1.msra.mxu0 %v588
    %599 = vmatprep.subr.mxu0 0.0
    %600 = vmatpush1.msra.mxu0 0.0
    %601 = vmatprep.subr.mxu0 0.0
    %602 = vmatpush1.msra.mxu0 0.0
    %603 = vmatprep.subr.mxu0 0.0
    %604 = vmatpush1.msra.mxu0 0.0
    %605 = vmatprep.subr.mxu0 0.0
    %606 = vmatpush1.msra.mxu0 0.0
    %607 = vmatprep.subr.mxu0 0.0
    %608 = vmatpush1.msra.mxu0 0.0
    %609 = vmatprep.subr.mxu0 0.0
    %610 = vmatpush1.msra.mxu0 0.0
    %611 = vmatprep.subr.mxu0 0.0
    %612 = vmatpush1.msra.mxu0 0.0
    %613 = vmatprep.subr.mxu0 0.0
    %614 = vmatpush1.msra.mxu0 0.0
    %615 = vmatprep.subr.mxu0 0.0
    %616 = vmatpush1.msra.mxu0 0.0
    %617 = vmatprep.subr.mxu0 0.0
    %618 = vmatpush1.msra.mxu0 0.0
    %619 = vmatprep.subr.mxu0 0.0
    %620 = vmatpush1.msra.mxu0 0.0
    %621 = vmatprep.subr.mxu0 0.0
    %622 = vmatpush1.msra.mxu0 0.0
    %623 = vmatprep.subr.mxu0 0.0
    %624 = vmatpush1.msra.mxu0 0.0
    %625 = vmatprep.subr.mxu0 0.0
    %626 = vmatpush1.msra.mxu0 0.0
    %627 = vmatprep.subr.mxu0 0.0
    %628 = vmatpush1.msra.mxu0 0.0
    %629 = vmatprep.subr.mxu0 0.0
    %630 = vmatpush1.msra.mxu0 0.0
    %631 = vmatprep.subr.mxu0 0.0
    %632 = vmatpush1.msra.mxu0 0.0
    %633 = vmatprep.subr.mxu0 0.0
    %634 = vmatpush1.msra.mxu0 0.0
    %635 = vmatprep.subr.mxu0 0.0
    %636 = vmatpush1.msra.mxu0 0.0
    %637 = vmatprep.subr.mxu0 0.0
    %638 = vmatpush1.msra.mxu0 0.0
    %639 = vmatprep.subr.mxu0 0.0
    %640 = vmatpush1.msra.mxu0 0.0
    %641 = vmatprep.subr.mxu0 0.0
    %642 = vmatpush1.msra.mxu0 0.0
    %643 = vmatprep.subr.mxu0 0.0
    %644 = vmatpush1.msra.mxu0 0.0
    %645 = vmatprep.subr.mxu0 0.0
    %646 = vmatpush1.msra.mxu0 0.0
    %647 = vmatprep.subr.mxu0 0.0
    %648 = vmatpush1.msra.mxu0 0.0
    %649 = vmatprep.subr.mxu0 0.0
    %650 = vmatpush1.msra.mxu0 0.0
    %651 = vmatprep.subr.mxu0 0.0
    %652 = vmatpush1.msra.mxu0 0.0
    %653 = vmatprep.subr.mxu0 0.0
    %654 = vmatpush1.msra.mxu0 0.0
    %655 = vmatprep.subr.mxu0 0.0
    %656 = vmatpush1.msra.mxu0 0.0
    %657 = vmatprep.subr.mxu0 0.0
    %658 = vmatpush1.msra.mxu0 0.0
    %659 = vmatprep.mubr.f32.mxu0 0.0
    %660 = vmatmul.mubr.f32.gmra.mrb[0].mxu0 %v590
    %v661 = vpop.f32.mrb[0].mxu0
    %v662 = vadd.f32 0.0, %v661
    %v663 = vpop.f32.mrb[0].mxu0
    %664 = vmatprep.mubr.f32.mxu0 0.0
    %665 = vmatmul.mubr.f32.gmra.mrb[0].mxu0 %v593
    %v666 = vpop.f32.mrb[0].mxu0
    %v667 = vadd.f32 0.0, %v666
    %v668 = vpop.f32.mrb[0].mxu0
    %669 = vdwg.mxu0
    %v671 = vlaneseq
    %v672 = vshrl.u32 %v671, 7
    %v673 = vsub.s32 0, %v672
    %v674 = vrot.slane %v131, %v673
    %v676 = vadd.f32 %v674, %v662
    %v677 = vadd.f32 %v674, %v667
    %s678 = scalar_lea.vmem %s5, 32
    %v679 = vld [vmem:[%s678] sm:$0xff]
    %v680 = vld [vmem:[%s678 + $0x8] sm:$0xff]
    %v681 = vld [vmem:[%s678 + $0x10] sm:$0xff]
    %v682 = vld [vmem:[%s678 + $0x18] sm:$0xff]
    %s683 = scalar_lea.vmem %s6, 1
    %v684 = vld [vmem:[%s683] sm:$0x1]
    %v686 = vlaneseq
    %v687 = vshrl.u32 %v686, 7
    %v688 = vsub.s32 0, %v687
    %v689 = vrot.slane %v684, %v688
    %691 = vmatprep.subr.mxu0 0.0
    %692 = vmatpush1.msra.mxu0 %v679
    %693 = vmatprep.subr.mxu0 0.0
    %694 = vmatpush1.msra.mxu0 %v680
    %695 = vmatprep.subr.mxu0 0.0
    %696 = vmatpush1.msra.mxu0 %v681
    %697 = vmatprep.subr.mxu0 0.0
    %698 = vmatpush1.msra.mxu0 %v682
    %699 = vmatprep.subr.mxu0 0.0
    %700 = vmatpush1.msra.mxu0 0.0
    %701 = vmatprep.subr.mxu0 0.0
    %702 = vmatpush1.msra.mxu0 0.0
    %703 = vmatprep.subr.mxu0 0.0
    %704 = vmatpush1.msra.mxu0 0.0
    %705 = vmatprep.subr.mxu0 0.0
    %706 = vmatpush1.msra.mxu0 0.0
    %707 = vmatprep.subr.mxu0 0.0
    %708 = vmatpush1.msra.mxu0 0.0
    %709 = vmatprep.subr.mxu0 0.0
    %710 = vmatpush1.msra.mxu0 0.0
    %711 = vmatprep.subr.mxu0 0.0
    %712 = vmatpush1.msra.mxu0 0.0
    %713 = vmatprep.subr.mxu0 0.0
    %714 = vmatpush1.msra.mxu0 0.0
    %715 = vmatprep.subr.mxu0 0.0
    %716 = vmatpush1.msra.mxu0 0.0
    %717 = vmatprep.subr.mxu0 0.0
    %718 = vmatpush1.msra.mxu0 0.0
    %719 = vmatprep.subr.mxu0 0.0
    %720 = vmatpush1.msra.mxu0 0.0
    %721 = vmatprep.subr.mxu0 0.0
    %722 = vmatpush1.msra.mxu0 0.0
    %723 = vmatprep.subr.mxu0 0.0
    %724 = vmatpush1.msra.mxu0 0.0
    %725 = vmatprep.subr.mxu0 0.0
    %726 = vmatpush1.msra.mxu0 0.0
    %727 = vmatprep.subr.mxu0 0.0
    %728 = vmatpush1.msra.mxu0 0.0
    %729 = vmatprep.subr.mxu0 0.0
    %730 = vmatpush1.msra.mxu0 0.0
    %731 = vmatprep.subr.mxu0 0.0
    %732 = vmatpush1.msra.mxu0 0.0
    %733 = vmatprep.subr.mxu0 0.0
    %734 = vmatpush1.msra.mxu0 0.0
    %735 = vmatprep.subr.mxu0 0.0
    %736 = vmatpush1.msra.mxu0 0.0
    %737 = vmatprep.subr.mxu0 0.0
    %738 = vmatpush1.msra.mxu0 0.0
    %739 = vmatprep.subr.mxu0 0.0
    %740 = vmatpush1.msra.mxu0 0.0
    %741 = vmatprep.subr.mxu0 0.0
    %742 = vmatpush1.msra.mxu0 0.0
    %743 = vmatprep.subr.mxu0 0.0
    %744 = vmatpush1.msra.mxu0 0.0
    %745 = vmatprep.subr.mxu0 0.0
    %746 = vmatpush1.msra.mxu0 0.0
    %747 = vmatprep.subr.mxu0 0.0
    %748 = vmatpush1.msra.mxu0 0.0
    %749 = vmatprep.subr.mxu0 0.0
    %750 = vmatpush1.msra.mxu0 0.0
    %751 = vmatprep.subr.mxu0 0.0
    %752 = vmatpush1.msra.mxu0 0.0
    %753 = vmatprep.subr.mxu0 0.0
    %754 = vmatpush1.msra.mxu0 0.0
    %755 = vmatprep.mubr.f32.mxu0 0.0
    %756 = vmatmul.mubr.f32.gmra.mrb[0].mxu0 %v144
    %v757 = vpop.f32.mrb[0].mxu0
    %v758 = vadd.f32 %v689, %v757
    %v759 = vpop.f32.mrb[0].mxu0
    %760 = vmatprep.mubr.f32.mxu0 0.0
    %761 = vmatmul.mubr.f32.gmra.mrb[0].mxu0 %v147
    %v762 = vpop.f32.mrb[0].mxu0
    %v763 = vadd.f32 %v689, %v762
    %v764 = vpop.f32.mrb[0].mxu0
    %765 = vdwg.mxu0
    %s766 = scalar_lea.vmem %s7, 32
    %v767 = vld [vmem:[%s766] sm:$0xff]
    %v768 = vld [vmem:[%s766 + $0x8] sm:$0xff]
    %v769 = vld [vmem:[%s766 + $0x10] sm:$0xff]
    %v770 = vld [vmem:[%s766 + $0x18] sm:$0xff]
    %s771 = scalar_lea.vmem %s8, 1
    %v772 = vld [vmem:[%s771] sm:$0x1]
    %v774 = vlaneseq
    %v775 = vshrl.u32 %v774, 7
    %v776 = vsub.s32 0, %v775
    %v777 = vrot.slane %v772, %v776
    %779 = vmatprep.subr.mxu0 0.0
    %780 = vmatpush1.msra.mxu0 %v767
    %781 = vmatprep.subr.mxu0 0.0
    %782 = vmatpush1.msra.mxu0 %v768
    %783 = vmatprep.subr.mxu0 0.0
    %784 = vmatpush1.msra.mxu0 %v769
    %785 = vmatprep.subr.mxu0 0.0
    %786 = vmatpush1.msra.mxu0 %v770
    %787 = vmatprep.subr.mxu0 0.0
    %788 = vmatpush1.msra.mxu0 0.0
    %789 = vmatprep.subr.mxu0 0.0
    %790 = vmatpush1.msra.mxu0 0.0
    %791 = vmatprep.subr.mxu0 0.0
    %792 = vmatpush1.msra.mxu0 0.0
    %793 = vmatprep.subr.mxu0 0.0
    %794 = vmatpush1.msra.mxu0 0.0
    %795 = vmatprep.subr.mxu0 0.0
    %796 = vmatpush1.msra.mxu0 0.0
    %797 = vmatprep.subr.mxu0 0.0
    %798 = vmatpush1.msra.mxu0 0.0
    %799 = vmatprep.subr.mxu0 0.0
    %800 = vmatpush1.msra.mxu0 0.0
    %801 = vmatprep.subr.mxu0 0.0
    %802 = vmatpush1.msra.mxu0 0.0
    %803 = vmatprep.subr.mxu0 0.0
    %804 = vmatpush1.msra.mxu0 0.0
    %805 = vmatprep.subr.mxu0 0.0
    %806 = vmatpush1.msra.mxu0 0.0
    %807 = vmatprep.subr.mxu0 0.0
    %808 = vmatpush1.msra.mxu0 0.0
    %809 = vmatprep.subr.mxu0 0.0
    %810 = vmatpush1.msra.mxu0 0.0
    %811 = vmatprep.subr.mxu0 0.0
    %812 = vmatpush1.msra.mxu0 0.0
    %813 = vmatprep.subr.mxu0 0.0
    %814 = vmatpush1.msra.mxu0 0.0
    %815 = vmatprep.subr.mxu0 0.0
    %816 = vmatpush1.msra.mxu0 0.0
    %817 = vmatprep.subr.mxu0 0.0
    %818 = vmatpush1.msra.mxu0 0.0
    %819 = vmatprep.subr.mxu0 0.0
    %820 = vmatpush1.msra.mxu0 0.0
    %821 = vmatprep.subr.mxu0 0.0
    %822 = vmatpush1.msra.mxu0 0.0
    %823 = vmatprep.subr.mxu0 0.0
    %824 = vmatpush1.msra.mxu0 0.0
    %825 = vmatprep.subr.mxu0 0.0
    %826 = vmatpush1.msra.mxu0 0.0
    %827 = vmatprep.subr.mxu0 0.0
    %828 = vmatpush1.msra.mxu0 0.0
    %829 = vmatprep.subr.mxu0 0.0
    %830 = vmatpush1.msra.mxu0 0.0
    %831 = vmatprep.subr.mxu0 0.0
    %832 = vmatpush1.msra.mxu0 0.0
    %833 = vmatprep.subr.mxu0 0.0
    %834 = vmatpush1.msra.mxu0 0.0
    %835 = vmatprep.subr.mxu0 0.0
    %836 = vmatpush1.msra.mxu0 0.0
    %837 = vmatprep.subr.mxu0 0.0
    %838 = vmatpush1.msra.mxu0 0.0
    %839 = vmatprep.subr.mxu0 0.0
    %840 = vmatpush1.msra.mxu0 0.0
    %841 = vmatprep.subr.mxu0 0.0
    %842 = vmatpush1.msra.mxu0 0.0
    %843 = vmatprep.mubr.f32.mxu0 0.0
    %844 = vmatmul.mubr.f32.gmra.mrb[0].mxu0 %v144
    %v845 = vpop.f32.mrb[0].mxu0
    %v846 = vadd.f32 %v777, %v845
    %v847 = vpop.f32.mrb[0].mxu0
    %848 = vmatprep.mubr.f32.mxu0 0.0
    %849 = vmatmul.mubr.f32.gmra.mrb[0].mxu0 %v147
    %v850 = vpop.f32.mrb[0].mxu0
    %v851 = vadd.f32 %v777, %v850
    %v852 = vpop.f32.mrb[0].mxu0
    %853 = vdwg.mxu0
    %s854 = scalar_lea.vmem %s9, 32
    %v855 = vld [vmem:[%s854] sm:$0xff]
    %v856 = vld [vmem:[%s854 + $0x8] sm:$0xff]
    %v857 = vld [vmem:[%s854 + $0x10] sm:$0xff]
    %v858 = vld [vmem:[%s854 + $0x18] sm:$0xff]
    %s859 = scalar_lea.vmem %s10, 1
    %v860 = vld [vmem:[%s859] sm:$0x1]
    %v862 = vlaneseq
    %v863 = vshrl.u32 %v862, 7
    %v864 = vsub.s32 0, %v863
    %v865 = vrot.slane %v860, %v864
    %867 = vmatprep.subr.mxu0 0.0
    %868 = vmatpush1.msra.mxu0 %v855
    %869 = vmatprep.subr.mxu0 0.0
    %870 = vmatpush1.msra.mxu0 %v856
    %871 = vmatprep.subr.mxu0 0.0
    %872 = vmatpush1.msra.mxu0 %v857
    %873 = vmatprep.subr.mxu0 0.0
    %874 = vmatpush1.msra.mxu0 %v858
    %875 = vmatprep.subr.mxu0 0.0
    %876 = vmatpush1.msra.mxu0 0.0
    %877 = vmatprep.subr.mxu0 0.0
    %878 = vmatpush1.msra.mxu0 0.0
    %879 = vmatprep.subr.mxu0 0.0
    %880 = vmatpush1.msra.mxu0 0.0
    %881 = vmatprep.subr.mxu0 0.0
    %882 = vmatpush1.msra.mxu0 0.0
    %883 = vmatprep.subr.mxu0 0.0
    %884 = vmatpush1.msra.mxu0 0.0
    %885 = vmatprep.subr.mxu0 0.0
    %886 = vmatpush1.msra.mxu0 0.0
    %887 = vmatprep.subr.mxu0 0.0
    %888 = vmatpush1.msra.mxu0 0.0
    %889 = vmatprep.subr.mxu0 0.0
    %890 = vmatpush1.msra.mxu0 0.0
    %891 = vmatprep.subr.mxu0 0.0
    %892 = vmatpush1.msra.mxu0 0.0
    %893 = vmatprep.subr.mxu0 0.0
    %894 = vmatpush1.msra.mxu0 0.0
    %895 = vmatprep.subr.mxu0 0.0
    %896 = vmatpush1.msra.mxu0 0.0
    %897 = vmatprep.subr.mxu0 0.0
    %898 = vmatpush1.msra.mxu0 0.0
    %899 = vmatprep.subr.mxu0 0.0
    %900 = vmatpush1.msra.mxu0 0.0
    %901 = vmatprep.subr.mxu0 0.0
    %902 = vmatpush1.msra.mxu0 0.0
    %903 = vmatprep.subr.mxu0 0.0
    %904 = vmatpush1.msra.mxu0 0.0
    %905 = vmatprep.subr.mxu0 0.0
    %906 = vmatpush1.msra.mxu0 0.0
    %907 = vmatprep.subr.mxu0 0.0
    %908 = vmatpush1.msra.mxu0 0.0
    %909 = vmatprep.subr.mxu0 0.0
    %910 = vmatpush1.msra.mxu0 0.0
    %911 = vmatprep.subr.mxu0 0.0
    %912 = vmatpush1.msra.mxu0 0.0
    %913 = vmatprep.subr.mxu0 0.0
    %914 = vmatpush1.msra.mxu0 0.0
    %915 = vmatprep.subr.mxu0 0.0
    %916 = vmatpush1.msra.mxu0 0.0
    %917 = vmatprep.subr.mxu0 0.0
    %918 = vmatpush1.msra.mxu0 0.0
    %919 = vmatprep.subr.mxu0 0.0
    %920 = vmatpush1.msra.mxu0 0.0
    %921 = vmatprep.subr.mxu0 0.0
    %922 = vmatpush1.msra.mxu0 0.0
    %923 = vmatprep.subr.mxu0 0.0
    %924 = vmatpush1.msra.mxu0 0.0
    %925 = vmatprep.subr.mxu0 0.0
    %926 = vmatpush1.msra.mxu0 0.0
    %927 = vmatprep.subr.mxu0 0.0
    %928 = vmatpush1.msra.mxu0 0.0
    %929 = vmatprep.subr.mxu0 0.0
    %930 = vmatpush1.msra.mxu0 0.0
    %931 = vmatprep.mubr.f32.mxu0 0.0
    %932 = vmatmul.mubr.f32.gmra.mrb[0].mxu0 %v144
    %v933 = vpop.f32.mrb[0].mxu0
    %v934 = vadd.f32 %v865, %v933
    %v935 = vpop.f32.mrb[0].mxu0
    %936 = vmatprep.mubr.f32.mxu0 0.0
    %937 = vmatmul.mubr.f32.gmra.mrb[0].mxu0 %v147
    %v938 = vpop.f32.mrb[0].mxu0
    %v939 = vadd.f32 %v865, %v938
    %v940 = vpop.f32.mrb[0].mxu0
    %941 = vdwg.mxu0
    %v943 = vsel %vm396, %v758, 0
    %v946 = vsel %vm396, %v763, 0
    %v949 = vsel %vm396, %v846, 0
    %v952 = vsel %vm396, %v851, 0
    %954 = vmatprep.subr.mxu0 0.0
    %955 = vmatpush1.xpose.msra.mxu0 %v949
    %956 = vmatprep.subr.mxu0 0.0
    %957 = vmatpush1.xpose.msra.mxu0 %v952
    %958 = vmatprep.subr.mxu0 0.0
    %959 = vmatpush1.xpose.msra.mxu0 0.0
    %960 = vmatprep.subr.mxu0 0.0
    %961 = vmatpush1.xpose.msra.mxu0 0.0
    %962 = vmatprep.subr.mxu0 0.0
    %963 = vmatpush1.xpose.msra.mxu0 0.0
    %964 = vmatprep.subr.mxu0 0.0
    %965 = vmatpush1.xpose.msra.mxu0 0.0
    %966 = vmatprep.subr.mxu0 0.0
    %967 = vmatpush1.xpose.msra.mxu0 0.0
    %968 = vmatprep.subr.mxu0 0.0
    %969 = vmatpush1.xpose.msra.mxu0 0.0
    %970 = vmatprep.subr.mxu0 0.0
    %971 = vmatpush1.xpose.msra.mxu0 0.0
    %972 = vmatprep.subr.mxu0 0.0
    %973 = vmatpush1.xpose.msra.mxu0 0.0
    %974 = vmatprep.subr.mxu0 0.0
    %975 = vmatpush1.xpose.msra.mxu0 0.0
    %976 = vmatprep.subr.mxu0 0.0
    %977 = vmatpush1.xpose.msra.mxu0 0.0
    %978 = vmatprep.subr.mxu0 0.0
    %979 = vmatpush1.xpose.msra.mxu0 0.0
    %980 = vmatprep.subr.mxu0 0.0
    %981 = vmatpush1.xpose.msra.mxu0 0.0
    %982 = vmatprep.subr.mxu0 0.0
    %983 = vmatpush1.xpose.msra.mxu0 0.0
    %984 = vmatprep.subr.mxu0 0.0
    %985 = vmatpush1.xpose.msra.mxu0 0.0
    %986 = vmatprep.subr.mxu0 0.0
    %987 = vmatpush1.xpose.msra.mxu0 0.0
    %988 = vmatprep.subr.mxu0 0.0
    %989 = vmatpush1.xpose.msra.mxu0 0.0
    %990 = vmatprep.subr.mxu0 0.0
    %991 = vmatpush1.xpose.msra.mxu0 0.0
    %992 = vmatprep.subr.mxu0 0.0
    %993 = vmatpush1.xpose.msra.mxu0 0.0
    %994 = vmatprep.subr.mxu0 0.0
    %995 = vmatpush1.xpose.msra.mxu0 0.0
    %996 = vmatprep.subr.mxu0 0.0
    %997 = vmatpush1.xpose.msra.mxu0 0.0
    %998 = vmatprep.subr.mxu0 0.0
    %999 = vmatpush1.xpose.msra.mxu0 0.0
    %1000 = vmatprep.subr.mxu0 0.0
    %1001 = vmatpush1.xpose.msra.mxu0 0.0
    %1002 = vmatprep.subr.mxu0 0.0
    %1003 = vmatpush1.xpose.msra.mxu0 0.0
    %1004 = vmatprep.subr.mxu0 0.0
    %1005 = vmatpush1.xpose.msra.mxu0 0.0
    %1006 = vmatprep.subr.mxu0 0.0
    %1007 = vmatpush1.xpose.msra.mxu0 0.0
    %1008 = vmatprep.subr.mxu0 0.0
    %1009 = vmatpush1.xpose.msra.mxu0 0.0
    %1010 = vmatprep.subr.mxu0 0.0
    %1011 = vmatpush1.xpose.msra.mxu0 0.0
    %1012 = vmatprep.subr.mxu0 0.0
    %1013 = vmatpush1.xpose.msra.mxu0 0.0
    %1014 = vmatprep.subr.mxu0 0.0
    %1015 = vmatpush1.xpose.msra.mxu0 0.0
    %1016 = vmatprep.subr.mxu0 0.0
    %1017 = vmatpush1.xpose.msra.mxu0 0.0
    %1018 = vmatprep.mubr.f32.mxu0 0.0
    %1019 = vmatmul.mubr.f32.gmra.mrb[0].mxu0 %v943
    %v1020 = vpop.f32.mrb[0].mxu0
    %v1021 = vadd.f32 %v129, %v1020
    %v1022 = vpop.f32.mrb[0].mxu0
    %1023 = vmatprep.mubr.f32.mxu0 0.0
    %1024 = vmatmul.mubr.f32.gmra.mrb[0].mxu0 %v946
    %v1025 = vpop.f32.mrb[0].mxu0
    %v1026 = vadd.f32 %v130, %v1025
    %v1027 = vpop.f32.mrb[0].mxu0
    %1028 = vdwg.mxu0
    %v1029 = vsel %vm396, %v1021, -inf
    %1030 = vmax.xlane.f32.xlu0 %v1029
    %v1031 = vpop.xlane.xlu0 %1030
    %v1032 = vsel %vm396, %v1026, -inf
    %1033 = vmax.xlane.f32.xlu0 %v1032
    %v1034 = vpop.xlane.xlu0 %1033
    %v1035 = vsub.f32 %v1021, %v1031
    %v1036 = vsub.f32 %v1026, %v1034
    %v1037 = vmul.f32 %v1035, 1.442695
    %v1038 = vpow.pop %v1037
    %v1039 = vmul.f32 %v1036, 1.442695
    %v1040 = vpow.pop %v1039
    %v1041 = vsel %vm396, %v1038, 0.0
    %1042 = vadd.xlane.f32.xlu0 %v1041
    %v1043 = vpop.xlane.xlu0 %1042
    %v1044 = vsel %vm396, %v1040, 0.0
    %1045 = vadd.xlane.f32.xlu0 %v1044
    %v1046 = vpop.xlane.xlu0 %1045
    %v1047 = vrcp.pop %v1043
    %v1048 = vrcp.pop %v1046
    %v1049 = vmul.f32 %v1038, %v1047
    %v1050 = vmul.f32 %v1040, %v1048
    %v1052 = vsel %vm396, %v1049, 0
    %v1055 = vsel %vm396, %v1050, 0
    %1057 = vmatprep.subr.mxu0 0.0
    %1058 = vmatpush1.msra.mxu0 %v934
    %1059 = vmatprep.subr.mxu0 0.0
    %1060 = vmatpush1.msra.mxu0 %v939
    %1061 = vmatprep.subr.mxu0 0.0
    %1062 = vmatpush1.msra.mxu0 0.0
    %1063 = vmatprep.subr.mxu0 0.0
    %1064 = vmatpush1.msra.mxu0 0.0
    %1065 = vmatprep.subr.mxu0 0.0
    %1066 = vmatpush1.msra.mxu0 0.0
    %1067 = vmatprep.subr.mxu0 0.0
    %1068 = vmatpush1.msra.mxu0 0.0
    %1069 = vmatprep.subr.mxu0 0.0
    %1070 = vmatpush1.msra.mxu0 0.0
    %1071 = vmatprep.subr.mxu0 0.0
    %1072 = vmatpush1.msra.mxu0 0.0
    %1073 = vmatprep.subr.mxu0 0.0
    %1074 = vmatpush1.msra.mxu0 0.0
    %1075 = vmatprep.subr.mxu0 0.0
    %1076 = vmatpush1.msra.mxu0 0.0
    %1077 = vmatprep.subr.mxu0 0.0
    %1078 = vmatpush1.msra.mxu0 0.0
    %1079 = vmatprep.subr.mxu0 0.0
    %1080 = vmatpush1.msra.mxu0 0.0
    %1081 = vmatprep.subr.mxu0 0.0
    %1082 = vmatpush1.msra.mxu0 0.0
    %1083 = vmatprep.subr.mxu0 0.0
    %1084 = vmatpush1.msra.mxu0 0.0
    %1085 = vmatprep.subr.mxu0 0.0
    %1086 = vmatpush1.msra.mxu0 0.0
    %1087 = vmatprep.subr.mxu0 0.0
    %1088 = vmatpush1.msra.mxu0 0.0
    %1089 = vmatprep.subr.mxu0 0.0
    %1090 = vmatpush1.msra.mxu0 0.0
    %1091 = vmatprep.subr.mxu0 0.0
    %1092 = vmatpush1.msra.mxu0 0.0
    %1093 = vmatprep.subr.mxu0 0.0
    %1094 = vmatpush1.msra.mxu0 0.0
    %1095 = vmatprep.subr.mxu0 0.0
    %1096 = vmatpush1.msra.mxu0 0.0
    %1097 = vmatprep.subr.mxu0 0.0
    %1098 = vmatpush1.msra.mxu0 0.0
    %1099 = vmatprep.subr.mxu0 0.0
    %1100 = vmatpush1.msra.mxu0 0.0
    %1101 = vmatprep.subr.mxu0 0.0
    %1102 = vmatpush1.msra.mxu0 0.0
    %1103 = vmatprep.subr.mxu0 0.0
    %1104 = vmatpush1.msra.mxu0 0.0
    %1105 = vmatprep.subr.mxu0 0.0
    %1106 = vmatpush1.msra.mxu0 0.0
    %1107 = vmatprep.subr.mxu0 0.0
    %1108 = vmatpush1.msra.mxu0 0.0
    %1109 = vmatprep.subr.mxu0 0.0
    %1110 = vmatpush1.msra.mxu0 0.0
    %1111 = vmatprep.subr.mxu0 0.0
    %1112 = vmatpush1.msra.mxu0 0.0
    %1113 = vmatprep.subr.mxu0 0.0
    %1114 = vmatpush1.msra.mxu0 0.0
    %1115 = vmatprep.subr.mxu0 0.0
    %1116 = vmatpush1.msra.mxu0 0.0
    %1117 = vmatprep.subr.mxu0 0.0
    %1118 = vmatpush1.msra.mxu0 0.0
    %1119 = vmatprep.subr.mxu0 0.0
    %1120 = vmatpush1.msra.mxu0 0.0
    %1121 = vmatprep.mubr.f32.mxu0 0.0
    %1122 = vmatmul.mubr.f32.gmra.mrb[0].mxu0 %v1052
    %v1123 = vpop.f32.mrb[0].mxu0
    %v1124 = vadd.f32 0.0, %v1123
    %v1125 = vpop.f32.mrb[0].mxu0
    %1126 = vmatprep.mubr.f32.mxu0 0.0
    %1127 = vmatmul.mubr.f32.gmra.mrb[0].mxu0 %v1055
    %v1128 = vpop.f32.mrb[0].mxu0
    %v1129 = vadd.f32 0.0, %v1128
    %v1130 = vpop.f32.mrb[0].mxu0
    %1131 = vdwg.mxu0
    %s1132 = scalar_lea.vmem %s11, 16
    %v1133 = vld [vmem:[%s1132] sm:$0xff]
    %v1134 = vld [vmem:[%s1132 + $0x8] sm:$0xff]
    %v1136 = vsel %vm396, %v1124, 0
    %v1139 = vsel %vm396, %v1129, 0
    %1141 = vmatprep.subr.mxu0 0.0
    %1142 = vmatpush1.msra.mxu0 %v1133
    %1143 = vmatprep.subr.mxu0 0.0
    %1144 = vmatpush1.msra.mxu0 %v1134
    %1145 = vmatprep.subr.mxu0 0.0
    %1146 = vmatpush1.msra.mxu0 0.0
    %1147 = vmatprep.subr.mxu0 0.0
    %1148 = vmatpush1.msra.mxu0 0.0
    %1149 = vmatprep.subr.mxu0 0.0
    %1150 = vmatpush1.msra.mxu0 0.0
    %1151 = vmatprep.subr.mxu0 0.0
    %1152 = vmatpush1.msra.mxu0 0.0
    %1153 = vmatprep.subr.mxu0 0.0
    %1154 = vmatpush1.msra.mxu0 0.0
    %1155 = vmatprep.subr.mxu0 0.0
    %1156 = vmatpush1.msra.mxu0 0.0
    %1157 = vmatprep.subr.mxu0 0.0
    %1158 = vmatpush1.msra.mxu0 0.0
    %1159 = vmatprep.subr.mxu0 0.0
    %1160 = vmatpush1.msra.mxu0 0.0
    %1161 = vmatprep.subr.mxu0 0.0
    %1162 = vmatpush1.msra.mxu0 0.0
    %1163 = vmatprep.subr.mxu0 0.0
    %1164 = vmatpush1.msra.mxu0 0.0
    %1165 = vmatprep.subr.mxu0 0.0
    %1166 = vmatpush1.msra.mxu0 0.0
    %1167 = vmatprep.subr.mxu0 0.0
    %1168 = vmatpush1.msra.mxu0 0.0
    %1169 = vmatprep.subr.mxu0 0.0
    %1170 = vmatpush1.msra.mxu0 0.0
    %1171 = vmatprep.subr.mxu0 0.0
    %1172 = vmatpush1.msra.mxu0 0.0
    %1173 = vmatprep.subr.mxu0 0.0
    %1174 = vmatpush1.msra.mxu0 0.0
    %1175 = vmatprep.subr.mxu0 0.0
    %1176 = vmatpush1.msra.mxu0 0.0
    %1177 = vmatprep.subr.mxu0 0.0
    %1178 = vmatpush1.msra.mxu0 0.0
    %1179 = vmatprep.subr.mxu0 0.0
    %1180 = vmatpush1.msra.mxu0 0.0
    %1181 = vmatprep.subr.mxu0 0.0
    %1182 = vmatpush1.msra.mxu0 0.0
    %1183 = vmatprep.subr.mxu0 0.0
    %1184 = vmatpush1.msra.mxu0 0.0
    %1185 = vmatprep.subr.mxu0 0.0
    %1186 = vmatpush1.msra.mxu0 0.0
    %1187 = vmatprep.subr.mxu0 0.0
    %1188 = vmatpush1.msra.mxu0 0.0
    %1189 = vmatprep.subr.mxu0 0.0
    %1190 = vmatpush1.msra.mxu0 0.0
    %1191 = vmatprep.subr.mxu0 0.0
    %1192 = vmatpush1.msra.mxu0 0.0
    %1193 = vmatprep.subr.mxu0 0.0
    %1194 = vmatpush1.msra.mxu0 0.0
    %1195 = vmatprep.subr.mxu0 0.0
    %1196 = vmatpush1.msra.mxu0 0.0
    %1197 = vmatprep.subr.mxu0 0.0
    %1198 = vmatpush1.msra.mxu0 0.0
    %1199 = vmatprep.subr.mxu0 0.0
    %1200 = vmatpush1.msra.mxu0 0.0
    %1201 = vmatprep.subr.mxu0 0.0
    %1202 = vmatpush1.msra.mxu0 0.0
    %1203 = vmatprep.subr.mxu0 0.0
    %1204 = vmatpush1.msra.mxu0 0.0
    %1205 = vmatprep.mubr.f32.mxu0 0.0
    %1206 = vmatmul.mubr.f32.gmra.mrb[0].mxu0 %v1136
    %v1207 = vpop.f32.mrb[0].mxu0
    %v1208 = vadd.f32 0.0, %v1207
    %v1209 = vpop.f32.mrb[0].mxu0
    %1210 = vmatprep.mubr.f32.mxu0 0.0
    %1211 = vmatmul.mubr.f32.gmra.mrb[0].mxu0 %v1139
    %v1212 = vpop.f32.mrb[0].mxu0
    %v1213 = vadd.f32 0.0, %v1212
    %v1214 = vpop.f32.mrb[0].mxu0
    %1215 = vdwg.mxu0
    %v1216 = vadd.f32 %v676, %v1208
    %v1217 = vadd.f32 %v677, %v1213
    %v1218 = vadd.f32 %v1216, %v127
    %v1219 = vadd.f32 %v1217, %v128
    %v1220 = vld [vmem:[%s13] sm:$0x1]
    %v1221 = vld [vmem:[%s14] sm:$0x1]
    %v1222 = vsel %vm85, %v1218, 0.0
    %1223 = vadd.xlane.f32.xlu0 %v1222
    %v1224 = vpop.xlane.xlu0 %1223
    %v1225 = vsel %vm85, %v1219, 0.0
    %1226 = vadd.xlane.f32.xlu0 %v1225
    %v1227 = vpop.xlane.xlu0 %1226
    %v1228 = vmul.f32 %v1224, %v92
    %v1229 = vmul.f32 %v1227, %v92
    %v1230 = vsub.f32 %v1218, %v1228
    %v1231 = vsub.f32 %v1219, %v1229
    %v1232 = vmul.f32 %v1230, %v1230
    %v1233 = vmul.f32 %v1231, %v1231
    %v1234 = vsel %vm85, %v1232, 0.0
    %1235 = vadd.xlane.f32.xlu0 %v1234
    %v1236 = vpop.xlane.xlu0 %1235
    %v1237 = vsel %vm85, %v1233, 0.0
    %1238 = vadd.xlane.f32.xlu0 %v1237
    %v1239 = vpop.xlane.xlu0 %1238
    %v1240 = vmul.f32 %v1236, %v92
    %v1241 = vmul.f32 %v1239, %v92
    %v1242 = vadd.f32 %v1240, 1e-12
    %v1243 = vadd.f32 %v1241, 1e-12
    %v1244 = vrsqrt.pop %v1242
    %v1245 = vrsqrt.pop %v1243
    %v1246 = vmul.f32 %v1230, %v1244
    %v1247 = vmul.f32 %v1231, %v1245
    %v1249 = vlaneseq
    %v1250 = vshrl.u32 %v1249, 7
    %v1251 = vsub.s32 0, %v1250
    %v1252 = vrot.slane %v1220, %v1251
    %v1254 = vmul.f32 %v1246, %v1252
    %v1255 = vmul.f32 %v1247, %v1252
    %v1257 = vlaneseq
    %v1258 = vshrl.u32 %v1257, 7
    %v1259 = vsub.s32 0, %v1258
    %v1260 = vrot.slane %v1221, %v1259
    %v1262 = vadd.f32 %v1254, %v1260
    %v1263 = vadd.f32 %v1255, %v1260
    %v1264 = vld [vmem:[%s15] sm:$0xff]
    %v1265 = vld [vmem:[%s15 + $0x8] sm:$0xff]
    %v1266 = vld [vmem:[%s15 + $0x10] sm:$0xff]
    %v1267 = vld [vmem:[%s15 + $0x18] sm:$0xff]
    %v1268 = vld [vmem:[%s16] sm:$0x1]
    %v1270 = vlaneseq
    %v1271 = vshrl.u32 %v1270, 7
    %v1272 = vsub.s32 0, %v1271
    %v1273 = vrot.slane %v1268, %v1272
    %v1276 = vsel %vm85, %v1262, 0
    %v1279 = vsel %vm85, %v1263, 0
    %1281 = vmatprep.subr.mxu0 0.0
    %1282 = vmatpush1.msra.mxu0 %v1264
    %1283 = vmatprep.subr.mxu0 0.0
    %1284 = vmatpush1.msra.mxu0 %v1265
    %1285 = vmatprep.subr.mxu0 0.0
    %1286 = vmatpush1.msra.mxu0 %v1266
    %1287 = vmatprep.subr.mxu0 0.0
    %1288 = vmatpush1.msra.mxu0 %v1267
    %1289 = vmatprep.subr.mxu0 0.0
    %1290 = vmatpush1.msra.mxu0 0.0
    %1291 = vmatprep.subr.mxu0 0.0
    %1292 = vmatpush1.msra.mxu0 0.0
    %1293 = vmatprep.subr.mxu0 0.0
    %1294 = vmatpush1.msra.mxu0 0.0
    %1295 = vmatprep.subr.mxu0 0.0
    %1296 = vmatpush1.msra.mxu0 0.0
    %1297 = vmatprep.subr.mxu0 0.0
    %1298 = vmatpush1.msra.mxu0 0.0
    %1299 = vmatprep.subr.mxu0 0.0
    %1300 = vmatpush1.msra.mxu0 0.0
    %1301 = vmatprep.subr.mxu0 0.0
    %1302 = vmatpush1.msra.mxu0 0.0
    %1303 = vmatprep.subr.mxu0 0.0
    %1304 = vmatpush1.msra.mxu0 0.0
    %1305 = vmatprep.subr.mxu0 0.0
    %1306 = vmatpush1.msra.mxu0 0.0
    %1307 = vmatprep.subr.mxu0 0.0
    %1308 = vmatpush1.msra.mxu0 0.0
    %1309 = vmatprep.subr.mxu0 0.0
    %1310 = vmatpush1.msra.mxu0 0.0
    %1311 = vmatprep.subr.mxu0 0.0
    %1312 = vmatpush1.msra.mxu0 0.0
    %1313 = vmatprep.subr.mxu0 0.0
    %1314 = vmatpush1.msra.mxu0 0.0
    %1315 = vmatprep.subr.mxu0 0.0
    %1316 = vmatpush1.msra.mxu0 0.0
    %1317 = vmatprep.subr.mxu0 0.0
    %1318 = vmatpush1.msra.mxu0 0.0
    %1319 = vmatprep.subr.mxu0 0.0
    %1320 = vmatpush1.msra.mxu0 0.0
    %1321 = vmatprep.subr.mxu0 0.0
    %1322 = vmatpush1.msra.mxu0 0.0
    %1323 = vmatprep.subr.mxu0 0.0
    %1324 = vmatpush1.msra.mxu0 0.0
    %1325 = vmatprep.subr.mxu0 0.0
    %1326 = vmatpush1.msra.mxu0 0.0
    %1327 = vmatprep.subr.mxu0 0.0
    %1328 = vmatpush1.msra.mxu0 0.0
    %1329 = vmatprep.subr.mxu0 0.0
    %1330 = vmatpush1.msra.mxu0 0.0
    %1331 = vmatprep.subr.mxu0 0.0
    %1332 = vmatpush1.msra.mxu0 0.0
    %1333 = vmatprep.subr.mxu0 0.0
    %1334 = vmatpush1.msra.mxu0 0.0
    %1335 = vmatprep.subr.mxu0 0.0
    %1336 = vmatpush1.msra.mxu0 0.0
    %1337 = vmatprep.subr.mxu0 0.0
    %1338 = vmatpush1.msra.mxu0 0.0
    %1339 = vmatprep.subr.mxu0 0.0
    %1340 = vmatpush1.msra.mxu0 0.0
    %1341 = vmatprep.subr.mxu0 0.0
    %1342 = vmatpush1.msra.mxu0 0.0
    %1343 = vmatprep.subr.mxu0 0.0
    %1344 = vmatpush1.msra.mxu0 0.0
    %1345 = vmatprep.mubr.f32.mxu0 0.0
    %1346 = vmatmul.mubr.f32.gmra.mrb[0].mxu0 %v1276
    %v1347 = vpop.f32.mrb[0].mxu0
    %v1348 = vadd.f32 %v1273, %v1347
    %v1349 = vpop.f32.mrb[0].mxu0
    %1350 = vmatprep.mubr.f32.mxu0 0.0
    %1351 = vmatmul.mubr.f32.gmra.mrb[0].mxu0 %v1279
    %v1352 = vpop.f32.mrb[0].mxu0
    %v1353 = vadd.f32 %v1273, %v1352
    %v1354 = vpop.f32.mrb[0].mxu0
    %1355 = vdwg.mxu0
    %v1356 = vmul.f32 %v1348, 0.5
    %v1357 = vmul.f32 %v1353, 0.5
    %v1358 = vmul.f32 %v1348, 0.70710677
    %v1359 = vmul.f32 %v1353, 0.70710677
    %v1360 = verf.f32.pop %v1358
    %v1361 = verf.f32.pop %v1359
    %v1362 = vadd.f32 %v1360, 1.0
    %v1363 = vadd.f32 %v1361, 1.0
    %v1364 = vmul.f32 %v1356, %v1362
    %v1365 = vmul.f32 %v1357, %v1363
    %v1366 = vld [vmem:[%s17] sm:$0xff]
    %v1367 = vld [vmem:[%s17 + $0x8] sm:$0xff]
    %v1368 = vld [vmem:[%s17 + $0x10] sm:$0xff]
    %v1369 = vld [vmem:[%s17 + $0x18] sm:$0xff]
    %v1370 = vld [vmem:[%s17 + $0x20] sm:$0xff]
    %v1371 = vld [vmem:[%s17 + $0x28] sm:$0xff]
    %v1372 = vld [vmem:[%s17 + $0x30] sm:$0xff]
    %v1373 = vld [vmem:[%s17 + $0x38] sm:$0xff]
    %v1374 = vld [vmem:[%s18] sm:$0x1]
    %v1376 = vlaneseq
    %v1377 = vshrl.u32 %v1376, 7
    %v1378 = vsub.s32 0, %v1377
    %v1379 = vrot.slane %v1374, %v1378
    %vm1381 = vcmask 523264
    %v1383 = vsel %vm1381, %v1364, 0
    %v1386 = vsel %vm1381, %v1365, 0
    %1388 = vmatprep.subr.mxu0 0.0
    %1389 = vmatpush1.msra.mxu0 %v1366
    %1390 = vmatprep.subr.mxu0 0.0
    %1391 = vmatpush1.msra.mxu0 %v1367
    %1392 = vmatprep.subr.mxu0 0.0
    %1393 = vmatpush1.msra.mxu0 %v1368
    %1394 = vmatprep.subr.mxu0 0.0
    %1395 = vmatpush1.msra.mxu0 %v1369
    %1396 = vmatprep.subr.mxu0 0.0
    %1397 = vmatpush1.msra.mxu0 %v1370
    %1398 = vmatprep.subr.mxu0 0.0
    %1399 = vmatpush1.msra.mxu0 %v1371
    %1400 = vmatprep.subr.mxu0 0.0
    %1401 = vmatpush1.msra.mxu0 %v1372
    %1402 = vmatprep.subr.mxu0 0.0
    %1403 = vmatpush1.msra.mxu0 %v1373
    %1404 = vmatprep.subr.mxu0 0.0
    %1405 = vmatpush1.msra.mxu0 0.0
    %1406 = vmatprep.subr.mxu0 0.0
    %1407 = vmatpush1.msra.mxu0 0.0
    %1408 = vmatprep.subr.mxu0 0.0
    %1409 = vmatpush1.msra.mxu0 0.0
    %1410 = vmatprep.subr.mxu0 0.0
    %1411 = vmatpush1.msra.mxu0 0.0
    %1412 = vmatprep.subr.mxu0 0.0
    %1413 = vmatpush1.msra.mxu0 0.0
    %1414 = vmatprep.subr.mxu0 0.0
    %1415 = vmatpush1.msra.mxu0 0.0
    %1416 = vmatprep.subr.mxu0 0.0
    %1417 = vmatpush1.msra.mxu0 0.0
    %1418 = vmatprep.subr.mxu0 0.0
    %1419 = vmatpush1.msra.mxu0 0.0
    %1420 = vmatprep.subr.mxu0 0.0
    %1421 = vmatpush1.msra.mxu0 0.0
    %1422 = vmatprep.subr.mxu0 0.0
    %1423 = vmatpush1.msra.mxu0 0.0
    %1424 = vmatprep.subr.mxu0 0.0
    %1425 = vmatpush1.msra.mxu0 0.0
    %1426 = vmatprep.subr.mxu0 0.0
    %1427 = vmatpush1.msra.mxu0 0.0
    %1428 = vmatprep.subr.mxu0 0.0
    %1429 = vmatpush1.msra.mxu0 0.0
    %1430 = vmatprep.subr.mxu0 0.0
    %1431 = vmatpush1.msra.mxu0 0.0
    %1432 = vmatprep.subr.mxu0 0.0
    %1433 = vmatpush1.msra.mxu0 0.0
    %1434 = vmatprep.subr.mxu0 0.0
    %1435 = vmatpush1.msra.mxu0 0.0
    %1436 = vmatprep.subr.mxu0 0.0
    %1437 = vmatpush1.msra.mxu0 0.0
    %1438 = vmatprep.subr.mxu0 0.0
    %1439 = vmatpush1.msra.mxu0 0.0
    %1440 = vmatprep.subr.mxu0 0.0
    %1441 = vmatpush1.msra.mxu0 0.0
    %1442 = vmatprep.subr.mxu0 0.0
    %1443 = vmatpush1.msra.mxu0 0.0
    %1444 = vmatprep.subr.mxu0 0.0
    %1445 = vmatpush1.msra.mxu0 0.0
    %1446 = vmatprep.subr.mxu0 0.0
    %1447 = vmatpush1.msra.mxu0 0.0
    %1448 = vmatprep.subr.mxu0 0.0
    %1449 = vmatpush1.msra.mxu0 0.0
    %1450 = vmatprep.subr.mxu0 0.0
    %1451 = vmatpush1.msra.mxu0 0.0
    %1452 = vmatprep.mubr.f32.mxu0 0.0
    %1453 = vmatmul.mubr.f32.gmra.mrb[0].mxu0 %v1383
    %v1454 = vpop.f32.mrb[0].mxu0
    %v1455 = vadd.f32 %v1379, %v1454
    %v1456 = vpop.f32.mrb[0].mxu0
    %1457 = vmatprep.mubr.f32.mxu0 0.0
    %1458 = vmatmul.mubr.f32.gmra.mrb[0].mxu0 %v1386
    %v1459 = vpop.f32.mrb[0].mxu0
    %v1460 = vadd.f32 %v1379, %v1459
    %v1461 = vpop.f32.mrb[0].mxu0
    %1462 = vdwg.mxu0
    %v1463 = vadd.f32 %v1455, %v1262
    %v1464 = vadd.f32 %v1460, %v1263
    %v1465 = vld [vmem:[%s19] sm:$0x1]
    %v1466 = vld [vmem:[%s20] sm:$0x1]
    %v1467 = vsel %vm85, %v1463, 0.0
    %1468 = vadd.xlane.f32.xlu0 %v1467
    %v1469 = vpop.xlane.xlu0 %1468
    %v1470 = vsel %vm85, %v1464, 0.0
    %1471 = vadd.xlane.f32.xlu0 %v1470
    %v1472 = vpop.xlane.xlu0 %1471
    %v1473 = vmul.f32 %v1469, %v92
    %v1474 = vmul.f32 %v1472, %v92
    %v1475 = vsub.f32 %v1463, %v1473
    %v1476 = vsub.f32 %v1464, %v1474
    %v1477 = vmul.f32 %v1475, %v1475
    %v1478 = vmul.f32 %v1476, %v1476
    %v1479 = vsel %vm85, %v1477, 0.0
    %1480 = vadd.xlane.f32.xlu0 %v1479
    %v1481 = vpop.xlane.xlu0 %1480
    %v1482 = vsel %vm85, %v1478, 0.0
    %1483 = vadd.xlane.f32.xlu0 %v1482
    %v1484 = vpop.xlane.xlu0 %1483
    %v1485 = vmul.f32 %v1481, %v92
    %v1486 = vmul.f32 %v1484, %v92
    %v1487 = vadd.f32 %v1485, 1e-12
    %v1488 = vadd.f32 %v1486, 1e-12
    %v1489 = vrsqrt.pop %v1487
    %v1490 = vrsqrt.pop %v1488
    %v1491 = vmul.f32 %v1475, %v1489
    %v1492 = vmul.f32 %v1476, %v1490
    %v1494 = vlaneseq
    %v1495 = vshrl.u32 %v1494, 7
    %v1496 = vsub.s32 0, %v1495
    %v1497 = vrot.slane %v1465, %v1496
    %v1499 = vmul.f32 %v1491, %v1497
    %v1500 = vmul.f32 %v1492, %v1497
    %v1502 = vlaneseq
    %v1503 = vshrl.u32 %v1502, 7
    %v1504 = vsub.s32 0, %v1503
    %v1505 = vrot.slane %v1466, %v1504
    %v1507 = vadd.f32 %v1499, %v1505
    %v1508 = vadd.f32 %v1500, %v1505
    %s1509 = scalar_lea.vmem %s12, 1
    %v1510 = vld [vmem:[%s1509] sm:$0x1]
    %s1511 = scalar_lea.vmem %s5, 64
    %v1512 = vld [vmem:[%s1511] sm:$0xff]
    %v1513 = vld [vmem:[%s1511 + $0x8] sm:$0xff]
    %v1514 = vld [vmem:[%s1511 + $0x10] sm:$0xff]
    %v1515 = vld [vmem:[%s1511 + $0x18] sm:$0xff]
    %s1516 = scalar_lea.vmem %s6, 2
    %v1517 = vld [vmem:[%s1516] sm:$0x1]
    %v1519 = vlaneseq
    %v1520 = vshrl.u32 %v1519, 7
    %v1521 = vsub.s32 0, %v1520
    %v1522 = vrot.slane %v1517, %v1521
    %v1525 = vsel %vm85, %v1507, 0
    %v1528 = vsel %vm85, %v1508, 0
    %1530 = vmatprep.subr.mxu0 0.0
    %1531 = vmatpush1.msra.mxu0 %v1512
    %1532 = vmatprep.subr.mxu0 0.0
    %1533 = vmatpush1.msra.mxu0 %v1513
    %1534 = vmatprep.subr.mxu0 0.0
    %1535 = vmatpush1.msra.mxu0 %v1514
    %1536 = vmatprep.subr.mxu0 0.0
    %1537 = vmatpush1.msra.mxu0 %v1515
    %1538 = vmatprep.subr.mxu0 0.0
    %1539 = vmatpush1.msra.mxu0 0.0
    %1540 = vmatprep.subr.mxu0 0.0
    %1541 = vmatpush1.msra.mxu0 0.0
    %1542 = vmatprep.subr.mxu0 0.0
    %1543 = vmatpush1.msra.mxu0 0.0
    %1544 = vmatprep.subr.mxu0 0.0
    %1545 = vmatpush1.msra.mxu0 0.0
    %1546 = vmatprep.subr.mxu0 0.0
    %1547 = vmatpush1.msra.mxu0 0.0
    %1548 = vmatprep.subr.mxu0 0.0
    %1549 = vmatpush1.msra.mxu0 0.0
    %1550 = vmatprep.subr.mxu0 0.0
    %1551 = vmatpush1.msra.mxu0 0.0
    %1552 = vmatprep.subr.mxu0 0.0
    %1553 = vmatpush1.msra.mxu0 0.0
    %1554 = vmatprep.subr.mxu0 0.0
    %1555 = vmatpush1.msra.mxu0 0.0
    %1556 = vmatprep.subr.mxu0 0.0
    %1557 = vmatpush1.msra.mxu0 0.0
    %1558 = vmatprep.subr.mxu0 0.0
    %1559 = vmatpush1.msra.mxu0 0.0
    %1560 = vmatprep.subr.mxu0 0.0
    %1561 = vmatpush1.msra.mxu0 0.0
    %1562 = vmatprep.subr.mxu0 0.0
    %1563 = vmatpush1.msra.mxu0 0.0
    %1564 = vmatprep.subr.mxu0 0.0
    %1565 = vmatpush1.msra.mxu0 0.0
    %1566 = vmatprep.subr.mxu0 0.0
    %1567 = vmatpush1.msra.mxu0 0.0
    %1568 = vmatprep.subr.mxu0 0.0
    %1569 = vmatpush1.msra.mxu0 0.0
    %1570 = vmatprep.subr.mxu0 0.0
    %1571 = vmatpush1.msra.mxu0 0.0
    %1572 = vmatprep.subr.mxu0 0.0
    %1573 = vmatpush1.msra.mxu0 0.0
    %1574 = vmatprep.subr.mxu0 0.0
    %1575 = vmatpush1.msra.mxu0 0.0
    %1576 = vmatprep.subr.mxu0 0.0
    %1577 = vmatpush1.msra.mxu0 0.0
    %1578 = vmatprep.subr.mxu0 0.0
    %1579 = vmatpush1.msra.mxu0 0.0
    %1580 = vmatprep.subr.mxu0 0.0
    %1581 = vmatpush1.msra.mxu0 0.0
    %1582 = vmatprep.subr.mxu0 0.0
    %1583 = vmatpush1.msra.mxu0 0.0
    %1584 = vmatprep.subr.mxu0 0.0
    %1585 = vmatpush1.msra.mxu0 0.0
    %1586 = vmatprep.subr.mxu0 0.0
    %1587 = vmatpush1.msra.mxu0 0.0
    %1588 = vmatprep.subr.mxu0 0.0
    %1589 = vmatpush1.msra.mxu0 0.0
    %1590 = vmatprep.subr.mxu0 0.0
    %1591 = vmatpush1.msra.mxu0 0.0
    %1592 = vmatprep.subr.mxu0 0.0
    %1593 = vmatpush1.msra.mxu0 0.0
    %1594 = vmatprep.mubr.f32.mxu0 0.0
    %1595 = vmatmul.mubr.f32.gmra.mrb[0].mxu0 %v1525
    %v1596 = vpop.f32.mrb[0].mxu0
    %v1597 = vadd.f32 %v1522, %v1596
    %v1598 = vpop.f32.mrb[0].mxu0
    %1599 = vmatprep.mubr.f32.mxu0 0.0
    %1600 = vmatmul.mubr.f32.gmra.mrb[0].mxu0 %v1528
    %v1601 = vpop.f32.mrb[0].mxu0
    %v1602 = vadd.f32 %v1522, %v1601
    %v1603 = vpop.f32.mrb[0].mxu0
    %1604 = vdwg.mxu0
    %s1605 = scalar_lea.vmem %s7, 64
    %v1606 = vld [vmem:[%s1605] sm:$0xff]
    %v1607 = vld [vmem:[%s1605 + $0x8] sm:$0xff]
    %v1608 = vld [vmem:[%s1605 + $0x10] sm:$0xff]
    %v1609 = vld [vmem:[%s1605 + $0x18] sm:$0xff]
    %s1610 = scalar_lea.vmem %s8, 2
    %v1611 = vld [vmem:[%s1610] sm:$0x1]
    %v1613 = vlaneseq
    %v1614 = vshrl.u32 %v1613, 7
    %v1615 = vsub.s32 0, %v1614
    %v1616 = vrot.slane %v1611, %v1615
    %1618 = vmatprep.subr.mxu0 0.0
    %1619 = vmatpush1.msra.mxu0 %v1606
    %1620 = vmatprep.subr.mxu0 0.0
    %1621 = vmatpush1.msra.mxu0 %v1607
    %1622 = vmatprep.subr.mxu0 0.0
    %1623 = vmatpush1.msra.mxu0 %v1608
    %1624 = vmatprep.subr.mxu0 0.0
    %1625 = vmatpush1.msra.mxu0 %v1609
    %1626 = vmatprep.subr.mxu0 0.0
    %1627 = vmatpush1.msra.mxu0 0.0
    %1628 = vmatprep.subr.mxu0 0.0
    %1629 = vmatpush1.msra.mxu0 0.0
    %1630 = vmatprep.subr.mxu0 0.0
    %1631 = vmatpush1.msra.mxu0 0.0
    %1632 = vmatprep.subr.mxu0 0.0
    %1633 = vmatpush1.msra.mxu0 0.0
    %1634 = vmatprep.subr.mxu0 0.0
    %1635 = vmatpush1.msra.mxu0 0.0
    %1636 = vmatprep.subr.mxu0 0.0
    %1637 = vmatpush1.msra.mxu0 0.0
    %1638 = vmatprep.subr.mxu0 0.0
    %1639 = vmatpush1.msra.mxu0 0.0
    %1640 = vmatprep.subr.mxu0 0.0
    %1641 = vmatpush1.msra.mxu0 0.0
    %1642 = vmatprep.subr.mxu0 0.0
    %1643 = vmatpush1.msra.mxu0 0.0
    %1644 = vmatprep.subr.mxu0 0.0
    %1645 = vmatpush1.msra.mxu0 0.0
    %1646 = vmatprep.subr.mxu0 0.0
    %1647 = vmatpush1.msra.mxu0 0.0
    %1648 = vmatprep.subr.mxu0 0.0
    %1649 = vmatpush1.msra.mxu0 0.0
    %1650 = vmatprep.subr.mxu0 0.0
    %1651 = vmatpush1.msra.mxu0 0.0
    %1652 = vmatprep.subr.mxu0 0.0
    %1653 = vmatpush1.msra.mxu0 0.0
    %1654 = vmatprep.subr.mxu0 0.0
    %1655 = vmatpush1.msra.mxu0 0.0
    %1656 = vmatprep.subr.mxu0 0.0
    %1657 = vmatpush1.msra.mxu0 0.0
    %1658 = vmatprep.subr.mxu0 0.0
    %1659 = vmatpush1.msra.mxu0 0.0
    %1660 = vmatprep.subr.mxu0 0.0
    %1661 = vmatpush1.msra.mxu0 0.0
    %1662 = vmatprep.subr.mxu0 0.0
    %1663 = vmatpush1.msra.mxu0 0.0
    %1664 = vmatprep.subr.mxu0 0.0
    %1665 = vmatpush1.msra.mxu0 0.0
    %1666 = vmatprep.subr.mxu0 0.0
    %1667 = vmatpush1.msra.mxu0 0.0
    %1668 = vmatprep.subr.mxu0 0.0
    %1669 = vmatpush1.msra.mxu0 0.0
    %1670 = vmatprep.subr.mxu0 0.0
    %1671 = vmatpush1.msra.mxu0 0.0
    %1672 = vmatprep.subr.mxu0 0.0
    %1673 = vmatpush1.msra.mxu0 0.0
    %1674 = vmatprep.subr.mxu0 0.0
    %1675 = vmatpush1.msra.mxu0 0.0
    %1676 = vmatprep.subr.mxu0 0.0
    %1677 = vmatpush1.msra.mxu0 0.0
    %1678 = vmatprep.subr.mxu0 0.0
    %1679 = vmatpush1.msra.mxu0 0.0
    %1680 = vmatprep.subr.mxu0 0.0
    %1681 = vmatpush1.msra.mxu0 0.0
    %1682 = vmatprep.mubr.f32.mxu0 0.0
    %1683 = vmatmul.mubr.f32.gmra.mrb[0].mxu0 %v1525
    %v1684 = vpop.f32.mrb[0].mxu0
    %v1685 = vadd.f32 %v1616, %v1684
    %v1686 = vpop.f32.mrb[0].mxu0
    %1687 = vmatprep.mubr.f32.mxu0 0.0
    %1688 = vmatmul.mubr.f32.gmra.mrb[0].mxu0 %v1528
    %v1689 = vpop.f32.mrb[0].mxu0
    %v1690 = vadd.f32 %v1616, %v1689
    %v1691 = vpop.f32.mrb[0].mxu0
    %1692 = vdwg.mxu0
    %s1693 = scalar_lea.vmem %s9, 64
    %v1694 = vld [vmem:[%s1693] sm:$0xff]
    %v1695 = vld [vmem:[%s1693 + $0x8] sm:$0xff]
    %v1696 = vld [vmem:[%s1693 + $0x10] sm:$0xff]
    %v1697 = vld [vmem:[%s1693 + $0x18] sm:$0xff]
    %s1698 = scalar_lea.vmem %s10, 2
    %v1699 = vld [vmem:[%s1698] sm:$0x1]
    %v1701 = vlaneseq
    %v1702 = vshrl.u32 %v1701, 7
    %v1703 = vsub.s32 0, %v1702
    %v1704 = vrot.slane %v1699, %v1703
    %1706 = vmatprep.subr.mxu0 0.0
    %1707 = vmatpush1.msra.mxu0 %v1694
    %1708 = vmatprep.subr.mxu0 0.0
    %1709 = vmatpush1.msra.mxu0 %v1695
    %1710 = vmatprep.subr.mxu0 0.0
    %1711 = vmatpush1.msra.mxu0 %v1696
    %1712 = vmatprep.subr.mxu0 0.0
    %1713 = vmatpush1.msra.mxu0 %v1697
    %1714 = vmatprep.subr.mxu0 0.0
    %1715 = vmatpush1.msra.mxu0 0.0
    %1716 = vmatprep.subr.mxu0 0.0
    %1717 = vmatpush1.msra.mxu0 0.0
    %1718 = vmatprep.subr.mxu0 0.0
    %1719 = vmatpush1.msra.mxu0 0.0
    %1720 = vmatprep.subr.mxu0 0.0
    %1721 = vmatpush1.msra.mxu0 0.0
    %1722 = vmatprep.subr.mxu0 0.0
    %1723 = vmatpush1.msra.mxu0 0.0
    %1724 = vmatprep.subr.mxu0 0.0
    %1725 = vmatpush1.msra.mxu0 0.0
    %1726 = vmatprep.subr.mxu0 0.0
    %1727 = vmatpush1.msra.mxu0 0.0
    %1728 = vmatprep.subr.mxu0 0.0
    %1729 = vmatpush1.msra.mxu0 0.0
    %1730 = vmatprep.subr.mxu0 0.0
    %1731 = vmatpush1.msra.mxu0 0.0
    %1732 = vmatprep.subr.mxu0 0.0
    %1733 = vmatpush1.msra.mxu0 0.0
    %1734 = vmatprep.subr.mxu0 0.0
    %1735 = vmatpush1.msra.mxu0 0.0
    %1736 = vmatprep.subr.mxu0 0.0
    %1737 = vmatpush1.msra.mxu0 0.0
    %1738 = vmatprep.subr.mxu0 0.0
    %1739 = vmatpush1.msra.mxu0 0.0
    %1740 = vmatprep.subr.mxu0 0.0
    %1741 = vmatpush1.msra.mxu0 0.0
    %1742 = vmatprep.subr.mxu0 0.0
    %1743 = vmatpush1.msra.mxu0 0.0
    %1744 = vmatprep.subr.mxu0 0.0
    %1745 = vmatpush1.msra.mxu0 0.0
    %1746 = vmatprep.subr.mxu0 0.0
    %1747 = vmatpush1.msra.mxu0 0.0
    %1748 = vmatprep.subr.mxu0 0.0
    %1749 = vmatpush1.msra.mxu0 0.0
    %1750 = vmatprep.subr.mxu0 0.0
    %1751 = vmatpush1.msra.mxu0 0.0
    %1752 = vmatprep.subr.mxu0 0.0
    %1753 = vmatpush1.msra.mxu0 0.0
    %1754 = vmatprep.subr.mxu0 0.0
    %1755 = vmatpush1.msra.mxu0 0.0
    %1756 = vmatprep.subr.mxu0 0.0
    %1757 = vmatpush1.msra.mxu0 0.0
    %1758 = vmatprep.subr.mxu0 0.0
    %1759 = vmatpush1.msra.mxu0 0.0
    %1760 = vmatprep.subr.mxu0 0.0
    %1761 = vmatpush1.msra.mxu0 0.0
    %1762 = vmatprep.subr.mxu0 0.0
    %1763 = vmatpush1.msra.mxu0 0.0
    %1764 = vmatprep.subr.mxu0 0.0
    %1765 = vmatpush1.msra.mxu0 0.0
    %1766 = vmatprep.subr.mxu0 0.0
    %1767 = vmatpush1.msra.mxu0 0.0
    %1768 = vmatprep.subr.mxu0 0.0
    %1769 = vmatpush1.msra.mxu0 0.0
    %1770 = vmatprep.mubr.f32.mxu0 0.0
    %1771 = vmatmul.mubr.f32.gmra.mrb[0].mxu0 %v1525
    %v1772 = vpop.f32.mrb[0].mxu0
    %v1773 = vadd.f32 %v1704, %v1772
    %v1774 = vpop.f32.mrb[0].mxu0
    %1775 = vmatprep.mubr.f32.mxu0 0.0
    %1776 = vmatmul.mubr.f32.gmra.mrb[0].mxu0 %v1528
    %v1777 = vpop.f32.mrb[0].mxu0
    %v1778 = vadd.f32 %v1704, %v1777
    %v1779 = vpop.f32.mrb[0].mxu0
    %1780 = vdwg.mxu0
    %v1782 = vsel %vm396, %v1597, 0
    %v1785 = vsel %vm396, %v1602, 0
    %v1788 = vsel %vm396, %v1685, 0
    %v1791 = vsel %vm396, %v1690, 0
    %1793 = vmatprep.subr.mxu0 0.0
    %1794 = vmatpush1.xpose.msra.mxu0 %v1788
    %1795 = vmatprep.subr.mxu0 0.0
    %1796 = vmatpush1.xpose.msra.mxu0 %v1791
    %1797 = vmatprep.subr.mxu0 0.0
    %1798 = vmatpush1.xpose.msra.mxu0 0.0
    %1799 = vmatprep.subr.mxu0 0.0
    %1800 = vmatpush1.xpose.msra.mxu0 0.0
    %1801 = vmatprep.subr.mxu0 0.0
    %1802 = vmatpush1.xpose.msra.mxu0 0.0
    %1803 = vmatprep.subr.mxu0 0.0
    %1804 = vmatpush1.xpose.msra.mxu0 0.0
    %1805 = vmatprep.subr.mxu0 0.0
    %1806 = vmatpush1.xpose.msra.mxu0 0.0
    %1807 = vmatprep.subr.mxu0 0.0
    %1808 = vmatpush1.xpose.msra.mxu0 0.0
    %1809 = vmatprep.subr.mxu0 0.0
    %1810 = vmatpush1.xpose.msra.mxu0 0.0
    %1811 = vmatprep.subr.mxu0 0.0
    %1812 = vmatpush1.xpose.msra.mxu0 0.0
    %1813 = vmatprep.subr.mxu0 0.0
    %1814 = vmatpush1.xpose.msra.mxu0 0.0
    %1815 = vmatprep.subr.mxu0 0.0
    %1816 = vmatpush1.xpose.msra.mxu0 0.0
    %1817 = vmatprep.subr.mxu0 0.0
    %1818 = vmatpush1.xpose.msra.mxu0 0.0
    %1819 = vmatprep.subr.mxu0 0.0
    %1820 = vmatpush1.xpose.msra.mxu0 0.0
    %1821 = vmatprep.subr.mxu0 0.0
    %1822 = vmatpush1.xpose.msra.mxu0 0.0
    %1823 = vmatprep.subr.mxu0 0.0
    %1824 = vmatpush1.xpose.msra.mxu0 0.0
    %1825 = vmatprep.subr.mxu0 0.0
    %1826 = vmatpush1.xpose.msra.mxu0 0.0
    %1827 = vmatprep.subr.mxu0 0.0
    %1828 = vmatpush1.xpose.msra.mxu0 0.0
    %1829 = vmatprep.subr.mxu0 0.0
    %1830 = vmatpush1.xpose.msra.mxu0 0.0
    %1831 = vmatprep.subr.mxu0 0.0
    %1832 = vmatpush1.xpose.msra.mxu0 0.0
    %1833 = vmatprep.subr.mxu0 0.0
    %1834 = vmatpush1.xpose.msra.mxu0 0.0
    %1835 = vmatprep.subr.mxu0 0.0
    %1836 = vmatpush1.xpose.msra.mxu0 0.0
    %1837 = vmatprep.subr.mxu0 0.0
    %1838 = vmatpush1.xpose.msra.mxu0 0.0
    %1839 = vmatprep.subr.mxu0 0.0
    %1840 = vmatpush1.xpose.msra.mxu0 0.0
    %1841 = vmatprep.subr.mxu0 0.0
    %1842 = vmatpush1.xpose.msra.mxu0 0.0
    %1843 = vmatprep.subr.mxu0 0.0
    %1844 = vmatpush1.xpose.msra.mxu0 0.0
    %1845 = vmatprep.subr.mxu0 0.0
    %1846 = vmatpush1.xpose.msra.mxu0 0.0
    %1847 = vmatprep.subr.mxu0 0.0
    %1848 = vmatpush1.xpose.msra.mxu0 0.0
    %1849 = vmatprep.subr.mxu0 0.0
    %1850 = vmatpush1.xpose.msra.mxu0 0.0
    %1851 = vmatprep.subr.mxu0 0.0
    %1852 = vmatpush1.xpose.msra.mxu0 0.0
    %1853 = vmatprep.subr.mxu0 0.0
    %1854 = vmatpush1.xpose.msra.mxu0 0.0
    %1855 = vmatprep.subr.mxu0 0.0
    %1856 = vmatpush1.xpose.msra.mxu0 0.0
    %1857 = vmatprep.mubr.f32.mxu0 0.0
    %1858 = vmatmul.mubr.f32.gmra.mrb[0].mxu0 %v1782
    %v1859 = vpop.f32.mrb[0].mxu0
    %v1860 = vadd.f32 %v129, %v1859
    %v1861 = vpop.f32.mrb[0].mxu0
    %1862 = vmatprep.mubr.f32.mxu0 0.0
    %1863 = vmatmul.mubr.f32.gmra.mrb[0].mxu0 %v1785
    %v1864 = vpop.f32.mrb[0].mxu0
    %v1865 = vadd.f32 %v130, %v1864
    %v1866 = vpop.f32.mrb[0].mxu0
    %1867 = vdwg.mxu0
    %v1868 = vsel %vm396, %v1860, -inf
    %1869 = vmax.xlane.f32.xlu0 %v1868
    %v1870 = vpop.xlane.xlu0 %1869
    %v1871 = vsel %vm396, %v1865, -inf
    %1872 = vmax.xlane.f32.xlu0 %v1871
    %v1873 = vpop.xlane.xlu0 %1872
    %v1874 = vsub.f32 %v1860, %v1870
    %v1875 = vsub.f32 %v1865, %v1873
    %v1876 = vmul.f32 %v1874, 1.442695
    %v1877 = vpow.pop %v1876
    %v1878 = vmul.f32 %v1875, 1.442695
    %v1879 = vpow.pop %v1878
    %v1880 = vsel %vm396, %v1877, 0.0
    %1881 = vadd.xlane.f32.xlu0 %v1880
    %v1882 = vpop.xlane.xlu0 %1881
    %v1883 = vsel %vm396, %v1879, 0.0
    %1884 = vadd.xlane.f32.xlu0 %v1883
    %v1885 = vpop.xlane.xlu0 %1884
    %v1886 = vrcp.pop %v1882
    %v1887 = vrcp.pop %v1885
    %v1888 = vmul.f32 %v1877, %v1886
    %v1889 = vmul.f32 %v1879, %v1887
    %v1891 = vsel %vm396, %v1888, 0
    %v1894 = vsel %vm396, %v1889, 0
    %1896 = vmatprep.subr.mxu0 0.0
    %1897 = vmatpush1.msra.mxu0 %v1773
    %1898 = vmatprep.subr.mxu0 0.0
    %1899 = vmatpush1.msra.mxu0 %v1778
    %1900 = vmatprep.subr.mxu0 0.0
    %1901 = vmatpush1.msra.mxu0 0.0
    %1902 = vmatprep.subr.mxu0 0.0
    %1903 = vmatpush1.msra.mxu0 0.0
    %1904 = vmatprep.subr.mxu0 0.0
    %1905 = vmatpush1.msra.mxu0 0.0
    %1906 = vmatprep.subr.mxu0 0.0
    %1907 = vmatpush1.msra.mxu0 0.0
    %1908 = vmatprep.subr.mxu0 0.0
    %1909 = vmatpush1.msra.mxu0 0.0
    %1910 = vmatprep.subr.mxu0 0.0
    %1911 = vmatpush1.msra.mxu0 0.0
    %1912 = vmatprep.subr.mxu0 0.0
    %1913 = vmatpush1.msra.mxu0 0.0
    %1914 = vmatprep.subr.mxu0 0.0
    %1915 = vmatpush1.msra.mxu0 0.0
    %1916 = vmatprep.subr.mxu0 0.0
    %1917 = vmatpush1.msra.mxu0 0.0
    %1918 = vmatprep.subr.mxu0 0.0
    %1919 = vmatpush1.msra.mxu0 0.0
    %1920 = vmatprep.subr.mxu0 0.0
    %1921 = vmatpush1.msra.mxu0 0.0
    %1922 = vmatprep.subr.mxu0 0.0
    %1923 = vmatpush1.msra.mxu0 0.0
    %1924 = vmatprep.subr.mxu0 0.0
    %1925 = vmatpush1.msra.mxu0 0.0
    %1926 = vmatprep.subr.mxu0 0.0
    %1927 = vmatpush1.msra.mxu0 0.0
    %1928 = vmatprep.subr.mxu0 0.0
    %1929 = vmatpush1.msra.mxu0 0.0
    %1930 = vmatprep.subr.mxu0 0.0
    %1931 = vmatpush1.msra.mxu0 0.0
    %1932 = vmatprep.subr.mxu0 0.0
    %1933 = vmatpush1.msra.mxu0 0.0
    %1934 = vmatprep.subr.mxu0 0.0
    %1935 = vmatpush1.msra.mxu0 0.0
    %1936 = vmatprep.subr.mxu0 0.0
    %1937 = vmatpush1.msra.mxu0 0.0
    %1938 = vmatprep.subr.mxu0 0.0
    %1939 = vmatpush1.msra.mxu0 0.0
    %1940 = vmatprep.subr.mxu0 0.0
    %1941 = vmatpush1.msra.mxu0 0.0
    %1942 = vmatprep.subr.mxu0 0.0
    %1943 = vmatpush1.msra.mxu0 0.0
    %1944 = vmatprep.subr.mxu0 0.0
    %1945 = vmatpush1.msra.mxu0 0.0
    %1946 = vmatprep.subr.mxu0 0.0
    %1947 = vmatpush1.msra.mxu0 0.0
    %1948 = vmatprep.subr.mxu0 0.0
    %1949 = vmatpush1.msra.mxu0 0.0
    %1950 = vmatprep.subr.mxu0 0.0
    %1951 = vmatpush1.msra.mxu0 0.0
    %1952 = vmatprep.subr.mxu0 0.0
    %1953 = vmatpush1.msra.mxu0 0.0
    %1954 = vmatprep.subr.mxu0 0.0
    %1955 = vmatpush1.msra.mxu0 0.0
    %1956 = vmatprep.subr.mxu0 0.0
    %1957 = vmatpush1.msra.mxu0 0.0
    %1958 = vmatprep.subr.mxu0 0.0
    %1959 = vmatpush1.msra.mxu0 0.0
    %1960 = vmatprep.mubr.f32.mxu0 0.0
    %1961 = vmatmul.mubr.f32.gmra.mrb[0].mxu0 %v1891
    %v1962 = vpop.f32.mrb[0].mxu0
    %v1963 = vadd.f32 0.0, %v1962
    %v1964 = vpop.f32.mrb[0].mxu0
    %1965 = vmatprep.mubr.f32.mxu0 0.0
    %1966 = vmatmul.mubr.f32.gmra.mrb[0].mxu0 %v1894
    %v1967 = vpop.f32.mrb[0].mxu0
    %v1968 = vadd.f32 0.0, %v1967
    %v1969 = vpop.f32.mrb[0].mxu0
    %1970 = vdwg.mxu0
    %s1971 = scalar_lea.vmem %s11, 32
    %v1972 = vld [vmem:[%s1971] sm:$0xff]
    %v1973 = vld [vmem:[%s1971 + $0x8] sm:$0xff]
    %v1975 = vsel %vm396, %v1963, 0
    %v1978 = vsel %vm396, %v1968, 0
    %1980 = vmatprep.subr.mxu0 0.0
    %1981 = vmatpush1.msra.mxu0 %v1972
    %1982 = vmatprep.subr.mxu0 0.0
    %1983 = vmatpush1.msra.mxu0 %v1973
    %1984 = vmatprep.subr.mxu0 0.0
    %1985 = vmatpush1.msra.mxu0 0.0
    %1986 = vmatprep.subr.mxu0 0.0
    %1987 = vmatpush1.msra.mxu0 0.0
    %1988 = vmatprep.subr.mxu0 0.0
    %1989 = vmatpush1.msra.mxu0 0.0
    %1990 = vmatprep.subr.mxu0 0.0
    %1991 = vmatpush1.msra.mxu0 0.0
    %1992 = vmatprep.subr.mxu0 0.0
    %1993 = vmatpush1.msra.mxu0 0.0
    %1994 = vmatprep.subr.mxu0 0.0
    %1995 = vmatpush1.msra.mxu0 0.0
    %1996 = vmatprep.subr.mxu0 0.0
    %1997 = vmatpush1.msra.mxu0 0.0
    %1998 = vmatprep.subr.mxu0 0.0
    %1999 = vmatpush1.msra.mxu0 0.0
    %2000 = vmatprep.subr.mxu0 0.0
    %2001 = vmatpush1.msra.mxu0 0.0
    %2002 = vmatprep.subr.mxu0 0.0
    %2003 = vmatpush1.msra.mxu0 0.0
    %2004 = vmatprep.subr.mxu0 0.0
    %2005 = vmatpush1.msra.mxu0 0.0
    %2006 = vmatprep.subr.mxu0 0.0
    %2007 = vmatpush1.msra.mxu0 0.0
    %2008 = vmatprep.subr.mxu0 0.0
    %2009 = vmatpush1.msra.mxu0 0.0
    %2010 = vmatprep.subr.mxu0 0.0
    %2011 = vmatpush1.msra.mxu0 0.0
    %2012 = vmatprep.subr.mxu0 0.0
    %2013 = vmatpush1.msra.mxu0 0.0
    %2014 = vmatprep.subr.mxu0 0.0
    %2015 = vmatpush1.msra.mxu0 0.0
    %2016 = vmatprep.subr.mxu0 0.0
    %2017 = vmatpush1.msra.mxu0 0.0
    %2018 = vmatprep.subr.mxu0 0.0
    %2019 = vmatpush1.msra.mxu0 0.0
    %2020 = vmatprep.subr.mxu0 0.0
    %2021 = vmatpush1.msra.mxu0 0.0
    %2022 = vmatprep.subr.mxu0 0.0
    %2023 = vmatpush1.msra.mxu0 0.0
    %2024 = vmatprep.subr.mxu0 0.0
    %2025 = vmatpush1.msra.mxu0 0.0
    %2026 = vmatprep.subr.mxu0 0.0
    %2027 = vmatpush1.msra.mxu0 0.0
    %2028 = vmatprep.subr.mxu0 0.0
    %2029 = vmatpush1.msra.mxu0 0.0
    %2030 = vmatprep.subr.mxu0 0.0
    %2031 = vmatpush1.msra.mxu0 0.0
    %2032 = vmatprep.subr.mxu0 0.0
    %2033 = vmatpush1.msra.mxu0 0.0
    %2034 = vmatprep.subr.mxu0 0.0
    %2035 = vmatpush1.msra.mxu0 0.0
    %2036 = vmatprep.subr.mxu0 0.0
    %2037 = vmatpush1.msra.mxu0 0.0
    %2038 = vmatprep.subr.mxu0 0.0
    %2039 = vmatpush1.msra.mxu0 0.0
    %2040 = vmatprep.subr.mxu0 0.0
    %2041 = vmatpush1.msra.mxu0 0.0
    %2042 = vmatprep.subr.mxu0 0.0
    %2043 = vmatpush1.msra.mxu0 0.0
    %2044 = vmatprep.mubr.f32.mxu0 0.0
    %2045 = vmatmul.mubr.f32.gmra.mrb[0].mxu0 %v1975
    %v2046 = vpop.f32.mrb[0].mxu0
    %v2047 = vadd.f32 0.0, %v2046
    %v2048 = vpop.f32.mrb[0].mxu0
    %2049 = vmatprep.mubr.f32.mxu0 0.0
    %2050 = vmatmul.mubr.f32.gmra.mrb[0].mxu0 %v1978
    %v2051 = vpop.f32.mrb[0].mxu0
    %v2052 = vadd.f32 0.0, %v2051
    %v2053 = vpop.f32.mrb[0].mxu0
    %2054 = vdwg.mxu0
    %v2056 = vlaneseq
    %v2057 = vshrl.u32 %v2056, 7
    %v2058 = vsub.s32 0, %v2057
    %v2059 = vrot.slane %v1510, %v2058
    %v2061 = vadd.f32 %v2059, %v2047
    %v2062 = vadd.f32 %v2059, %v2052
    %s2063 = scalar_lea.vmem %s5, 96
    %v2064 = vld [vmem:[%s2063] sm:$0xff]
    %v2065 = vld [vmem:[%s2063 + $0x8] sm:$0xff]
    %v2066 = vld [vmem:[%s2063 + $0x10] sm:$0xff]
    %v2067 = vld [vmem:[%s2063 + $0x18] sm:$0xff]
    %s2068 = scalar_lea.vmem %s6, 3
    %v2069 = vld [vmem:[%s2068] sm:$0x1]
    %v2071 = vlaneseq
    %v2072 = vshrl.u32 %v2071, 7
    %v2073 = vsub.s32 0, %v2072
    %v2074 = vrot.slane %v2069, %v2073
    %2076 = vmatprep.subr.mxu0 0.0
    %2077 = vmatpush1.msra.mxu0 %v2064
    %2078 = vmatprep.subr.mxu0 0.0
    %2079 = vmatpush1.msra.mxu0 %v2065
    %2080 = vmatprep.subr.mxu0 0.0
    %2081 = vmatpush1.msra.mxu0 %v2066
    %2082 = vmatprep.subr.mxu0 0.0
    %2083 = vmatpush1.msra.mxu0 %v2067
    %2084 = vmatprep.subr.mxu0 0.0
    %2085 = vmatpush1.msra.mxu0 0.0
    %2086 = vmatprep.subr.mxu0 0.0
    %2087 = vmatpush1.msra.mxu0 0.0
    %2088 = vmatprep.subr.mxu0 0.0
    %2089 = vmatpush1.msra.mxu0 0.0
    %2090 = vmatprep.subr.mxu0 0.0
    %2091 = vmatpush1.msra.mxu0 0.0
    %2092 = vmatprep.subr.mxu0 0.0
    %2093 = vmatpush1.msra.mxu0 0.0
    %2094 = vmatprep.subr.mxu0 0.0
    %2095 = vmatpush1.msra.mxu0 0.0
    %2096 = vmatprep.subr.mxu0 0.0
    %2097 = vmatpush1.msra.mxu0 0.0
    %2098 = vmatprep.subr.mxu0 0.0
    %2099 = vmatpush1.msra.mxu0 0.0
    %2100 = vmatprep.subr.mxu0 0.0
    %2101 = vmatpush1.msra.mxu0 0.0
    %2102 = vmatprep.subr.mxu0 0.0
    %2103 = vmatpush1.msra.mxu0 0.0
    %2104 = vmatprep.subr.mxu0 0.0
    %2105 = vmatpush1.msra.mxu0 0.0
    %2106 = vmatprep.subr.mxu0 0.0
    %2107 = vmatpush1.msra.mxu0 0.0
    %2108 = vmatprep.subr.mxu0 0.0
    %2109 = vmatpush1.msra.mxu0 0.0
    %2110 = vmatprep.subr.mxu0 0.0
    %2111 = vmatpush1.msra.mxu0 0.0
    %2112 = vmatprep.subr.mxu0 0.0
    %2113 = vmatpush1.msra.mxu0 0.0
    %2114 = vmatprep.subr.mxu0 0.0
    %2115 = vmatpush1.msra.mxu0 0.0
    %2116 = vmatprep.subr.mxu0 0.0
    %2117 = vmatpush1.msra.mxu0 0.0
    %2118 = vmatprep.subr.mxu0 0.0
    %2119 = vmatpush1.msra.mxu0 0.0
    %2120 = vmatprep.subr.mxu0 0.0
    %2121 = vmatpush1.msra.mxu0 0.0
    %2122 = vmatprep.subr.mxu0 0.0
    %2123 = vmatpush1.msra.mxu0 0.0
    %2124 = vmatprep.subr.mxu0 0.0
    %2125 = vmatpush1.msra.mxu0 0.0
    %2126 = vmatprep.subr.mxu0 0.0
    %2127 = vmatpush1.msra.mxu0 0.0
    %2128 = vmatprep.subr.mxu0 0.0
    %2129 = vmatpush1.msra.mxu0 0.0
    %2130 = vmatprep.subr.mxu0 0.0
    %2131 = vmatpush1.msra.mxu0 0.0
    %2132 = vmatprep.subr.mxu0 0.0
    %2133 = vmatpush1.msra.mxu0 0.0
    %2134 = vmatprep.subr.mxu0 0.0
    %2135 = vmatpush1.msra.mxu0 0.0
    %2136 = vmatprep.subr.mxu0 0.0
    %2137 = vmatpush1.msra.mxu0 0.0
    %2138 = vmatprep.subr.mxu0 0.0
    %2139 = vmatpush1.msra.mxu0 0.0
    %2140 = vmatprep.mubr.f32.mxu0 0.0
    %2141 = vmatmul.mubr.f32.gmra.mrb[0].mxu0 %v1525
    %v2142 = vpop.f32.mrb[0].mxu0
    %v2143 = vadd.f32 %v2074, %v2142
    %v2144 = vpop.f32.mrb[0].mxu0
    %2145 = vmatprep.mubr.f32.mxu0 0.0
    %2146 = vmatmul.mubr.f32.gmra.mrb[0].mxu0 %v1528
    %v2147 = vpop.f32.mrb[0].mxu0
    %v2148 = vadd.f32 %v2074, %v2147
    %v2149 = vpop.f32.mrb[0].mxu0
    %2150 = vdwg.mxu0
    %s2151 = scalar_lea.vmem %s7, 96
    %v2152 = vld [vmem:[%s2151] sm:$0xff]
    %v2153 = vld [vmem:[%s2151 + $0x8] sm:$0xff]
    %v2154 = vld [vmem:[%s2151 + $0x10] sm:$0xff]
    %v2155 = vld [vmem:[%s2151 + $0x18] sm:$0xff]
    %s2156 = scalar_lea.vmem %s8, 3
    %v2157 = vld [vmem:[%s2156] sm:$0x1]
    %v2159 = vlaneseq
    %v2160 = vshrl.u32 %v2159, 7
    %v2161 = vsub.s32 0, %v2160
    %v2162 = vrot.slane %v2157, %v2161
    %2164 = vmatprep.subr.mxu0 0.0
    %2165 = vmatpush1.msra.mxu0 %v2152
    %2166 = vmatprep.subr.mxu0 0.0
    %2167 = vmatpush1.msra.mxu0 %v2153
    %2168 = vmatprep.subr.mxu0 0.0
    %2169 = vmatpush1.msra.mxu0 %v2154
    %2170 = vmatprep.subr.mxu0 0.0
    %2171 = vmatpush1.msra.mxu0 %v2155
    %2172 = vmatprep.subr.mxu0 0.0
    %2173 = vmatpush1.msra.mxu0 0.0
    %2174 = vmatprep.subr.mxu0 0.0
    %2175 = vmatpush1.msra.mxu0 0.0
    %2176 = vmatprep.subr.mxu0 0.0
    %2177 = vmatpush1.msra.mxu0 0.0
    %2178 = vmatprep.subr.mxu0 0.0
    %2179 = vmatpush1.msra.mxu0 0.0
    %2180 = vmatprep.subr.mxu0 0.0
    %2181 = vmatpush1.msra.mxu0 0.0
    %2182 = vmatprep.subr.mxu0 0.0
    %2183 = vmatpush1.msra.mxu0 0.0
    %2184 = vmatprep.subr.mxu0 0.0
    %2185 = vmatpush1.msra.mxu0 0.0
    %2186 = vmatprep.subr.mxu0 0.0
    %2187 = vmatpush1.msra.mxu0 0.0
    %2188 = vmatprep.subr.mxu0 0.0
    %2189 = vmatpush1.msra.mxu0 0.0
    %2190 = vmatprep.subr.mxu0 0.0
    %2191 = vmatpush1.msra.mxu0 0.0
    %2192 = vmatprep.subr.mxu0 0.0
    %2193 = vmatpush1.msra.mxu0 0.0
    %2194 = vmatprep.subr.mxu0 0.0
    %2195 = vmatpush1.msra.mxu0 0.0
    %2196 = vmatprep.subr.mxu0 0.0
    %2197 = vmatpush1.msra.mxu0 0.0
    %2198 = vmatprep.subr.mxu0 0.0
    %2199 = vmatpush1.msra.mxu0 0.0
    %2200 = vmatprep.subr.mxu0 0.0
    %2201 = vmatpush1.msra.mxu0 0.0
    %2202 = vmatprep.subr.mxu0 0.0
    %2203 = vmatpush1.msra.mxu0 0.0
    %2204 = vmatprep.subr.mxu0 0.0
    %2205 = vmatpush1.msra.mxu0 0.0
    %2206 = vmatprep.subr.mxu0 0.0
    %2207 = vmatpush1.msra.mxu0 0.0
    %2208 = vmatprep.subr.mxu0 0.0
    %2209 = vmatpush1.msra.mxu0 0.0
    %2210 = vmatprep.subr.mxu0 0.0
    %2211 = vmatpush1.msra.mxu0 0.0
    %2212 = vmatprep.subr.mxu0 0.0
    %2213 = vmatpush1.msra.mxu0 0.0
    %2214 = vmatprep.subr.mxu0 0.0
    %2215 = vmatpush1.msra.mxu0 0.0
    %2216 = vmatprep.subr.mxu0 0.0
    %2217 = vmatpush1.msra.mxu0 0.0
    %2218 = vmatprep.subr.mxu0 0.0
    %2219 = vmatpush1.msra.mxu0 0.0
    %2220 = vmatprep.subr.mxu0 0.0
    %2221 = vmatpush1.msra.mxu0 0.0
    %2222 = vmatprep.subr.mxu0 0.0
    %2223 = vmatpush1.msra.mxu0 0.0
    %2224 = vmatprep.subr.mxu0 0.0
    %2225 = vmatpush1.msra.mxu0 0.0
    %2226 = vmatprep.subr.mxu0 0.0
    %2227 = vmatpush1.msra.mxu0 0.0
    %2228 = vmatprep.mubr.f32.mxu0 0.0
    %2229 = vmatmul.mubr.f32.gmra.mrb[0].mxu0 %v1525
    %v2230 = vpop.f32.mrb[0].mxu0
    %v2231 = vadd.f32 %v2162, %v2230
    %v2232 = vpop.f32.mrb[0].mxu0
    %2233 = vmatprep.mubr.f32.mxu0 0.0
    %2234 = vmatmul.mubr.f32.gmra.mrb[0].mxu0 %v1528
    %v2235 = vpop.f32.mrb[0].mxu0
    %v2236 = vadd.f32 %v2162, %v2235
    %v2237 = vpop.f32.mrb[0].mxu0
    %2238 = vdwg.mxu0
    %s2239 = scalar_lea.vmem %s9, 96
    %v2240 = vld [vmem:[%s2239] sm:$0xff]
    %v2241 = vld [vmem:[%s2239 + $0x8] sm:$0xff]
    %v2242 = vld [vmem:[%s2239 + $0x10] sm:$0xff]
    %v2243 = vld [vmem:[%s2239 + $0x18] sm:$0xff]
    %s2244 = scalar_lea.vmem %s10, 3
    %v2245 = vld [vmem:[%s2244] sm:$0x1]
    %v2247 = vlaneseq
    %v2248 = vshrl.u32 %v2247, 7
    %v2249 = vsub.s32 0, %v2248
    %v2250 = vrot.slane %v2245, %v2249
    %2252 = vmatprep.subr.mxu0 0.0
    %2253 = vmatpush1.msra.mxu0 %v2240
    %2254 = vmatprep.subr.mxu0 0.0
    %2255 = vmatpush1.msra.mxu0 %v2241
    %2256 = vmatprep.subr.mxu0 0.0
    %2257 = vmatpush1.msra.mxu0 %v2242
    %2258 = vmatprep.subr.mxu0 0.0
    %2259 = vmatpush1.msra.mxu0 %v2243
    %2260 = vmatprep.subr.mxu0 0.0
    %2261 = vmatpush1.msra.mxu0 0.0
    %2262 = vmatprep.subr.mxu0 0.0
    %2263 = vmatpush1.msra.mxu0 0.0
    %2264 = vmatprep.subr.mxu0 0.0
    %2265 = vmatpush1.msra.mxu0 0.0
    %2266 = vmatprep.subr.mxu0 0.0
    %2267 = vmatpush1.msra.mxu0 0.0
    %2268 = vmatprep.subr.mxu0 0.0
    %2269 = vmatpush1.msra.mxu0 0.0
    %2270 = vmatprep.subr.mxu0 0.0
    %2271 = vmatpush1.msra.mxu0 0.0
    %2272 = vmatprep.subr.mxu0 0.0
    %2273 = vmatpush1.msra.mxu0 0.0
    %2274 = vmatprep.subr.mxu0 0.0
    %2275 = vmatpush1.msra.mxu0 0.0
    %2276 = vmatprep.subr.mxu0 0.0
    %2277 = vmatpush1.msra.mxu0 0.0
    %2278 = vmatprep.subr.mxu0 0.0
    %2279 = vmatpush1.msra.mxu0 0.0
    %2280 = vmatprep.subr.mxu0 0.0
    %2281 = vmatpush1.msra.mxu0 0.0
    %2282 = vmatprep.subr.mxu0 0.0
    %2283 = vmatpush1.msra.mxu0 0.0
    %2284 = vmatprep.subr.mxu0 0.0
    %2285 = vmatpush1.msra.mxu0 0.0
    %2286 = vmatprep.subr.mxu0 0.0
    %2287 = vmatpush1.msra.mxu0 0.0
    %2288 = vmatprep.subr.mxu0 0.0
    %2289 = vmatpush1.msra.mxu0 0.0
    %2290 = vmatprep.subr.mxu0 0.0
    %2291 = vmatpush1.msra.mxu0 0.0
    %2292 = vmatprep.subr.mxu0 0.0
    %2293 = vmatpush1.msra.mxu0 0.0
    %2294 = vmatprep.subr.mxu0 0.0
    %2295 = vmatpush1.msra.mxu0 0.0
    %2296 = vmatprep.subr.mxu0 0.0
    %2297 = vmatpush1.msra.mxu0 0.0
    %2298 = vmatprep.subr.mxu0 0.0
    %2299 = vmatpush1.msra.mxu0 0.0
    %2300 = vmatprep.subr.mxu0 0.0
    %2301 = vmatpush1.msra.mxu0 0.0
    %2302 = vmatprep.subr.mxu0 0.0
    %2303 = vmatpush1.msra.mxu0 0.0
    %2304 = vmatprep.subr.mxu0 0.0
    %2305 = vmatpush1.msra.mxu0 0.0
    %2306 = vmatprep.subr.mxu0 0.0
    %2307 = vmatpush1.msra.mxu0 0.0
    %2308 = vmatprep.subr.mxu0 0.0
    %2309 = vmatpush1.msra.mxu0 0.0
    %2310 = vmatprep.subr.mxu0 0.0
    %2311 = vmatpush1.msra.mxu0 0.0
    %2312 = vmatprep.subr.mxu0 0.0
    %2313 = vmatpush1.msra.mxu0 0.0
    %2314 = vmatprep.subr.mxu0 0.0
    %2315 = vmatpush1.msra.mxu0 0.0
    %2316 = vmatprep.mubr.f32.mxu0 0.0
    %2317 = vmatmul.mubr.f32.gmra.mrb[0].mxu0 %v1525
    %v2318 = vpop.f32.mrb[0].mxu0
    %v2319 = vadd.f32 %v2250, %v2318
    %v2320 = vpop.f32.mrb[0].mxu0
    %2321 = vmatprep.mubr.f32.mxu0 0.0
    %2322 = vmatmul.mubr.f32.gmra.mrb[0].mxu0 %v1528
    %v2323 = vpop.f32.mrb[0].mxu0
    %v2324 = vadd.f32 %v2250, %v2323
    %v2325 = vpop.f32.mrb[0].mxu0
    %2326 = vdwg.mxu0
    %v2328 = vsel %vm396, %v2143, 0
    %v2331 = vsel %vm396, %v2148, 0
    %v2334 = vsel %vm396, %v2231, 0
    %v2337 = vsel %vm396, %v2236, 0
    %2339 = vmatprep.subr.mxu0 0.0
    %2340 = vmatpush1.xpose.msra.mxu0 %v2334
    %2341 = vmatprep.subr.mxu0 0.0
    %2342 = vmatpush1.xpose.msra.mxu0 %v2337
    %2343 = vmatprep.subr.mxu0 0.0
    %2344 = vmatpush1.xpose.msra.mxu0 0.0
    %2345 = vmatprep.subr.mxu0 0.0
    %2346 = vmatpush1.xpose.msra.mxu0 0.0
    %2347 = vmatprep.subr.mxu0 0.0
    %2348 = vmatpush1.xpose.msra.mxu0 0.0
    %2349 = vmatprep.subr.mxu0 0.0
    %2350 = vmatpush1.xpose.msra.mxu0 0.0
    %2351 = vmatprep.subr.mxu0 0.0
    %2352 = vmatpush1.xpose.msra.mxu0 0.0
    %2353 = vmatprep.subr.mxu0 0.0
    %2354 = vmatpush1.xpose.msra.mxu0 0.0
    %2355 = vmatprep.subr.mxu0 0.0
    %2356 = vmatpush1.xpose.msra.mxu0 0.0
    %2357 = vmatprep.subr.mxu0 0.0
    %2358 = vmatpush1.xpose.msra.mxu0 0.0
    %2359 = vmatprep.subr.mxu0 0.0
    %2360 = vmatpush1.xpose.msra.mxu0 0.0
    %2361 = vmatprep.subr.mxu0 0.0
    %2362 = vmatpush1.xpose.msra.mxu0 0.0
    %2363 = vmatprep.subr.mxu0 0.0
    %2364 = vmatpush1.xpose.msra.mxu0 0.0
    %2365 = vmatprep.subr.mxu0 0.0
    %2366 = vmatpush1.xpose.msra.mxu0 0.0
    %2367 = vmatprep.subr.mxu0 0.0
    %2368 = vmatpush1.xpose.msra.mxu0 0.0
    %2369 = vmatprep.subr.mxu0 0.0
    %2370 = vmatpush1.xpose.msra.mxu0 0.0
    %2371 = vmatprep.subr.mxu0 0.0
    %2372 = vmatpush1.xpose.msra.mxu0 0.0
    %2373 = vmatprep.subr.mxu0 0.0
    %2374 = vmatpush1.xpose.msra.mxu0 0.0
    %2375 = vmatprep.subr.mxu0 0.0
    %2376 = vmatpush1.xpose.msra.mxu0 0.0
    %2377 = vmatprep.subr.mxu0 0.0
    %2378 = vmatpush1.xpose.msra.mxu0 0.0
    %2379 = vmatprep.subr.mxu0 0.0
    %2380 = vmatpush1.xpose.msra.mxu0 0.0
    %2381 = vmatprep.subr.mxu0 0.0
    %2382 = vmatpush1.xpose.msra.mxu0 0.0
    %2383 = vmatprep.subr.mxu0 0.0
    %2384 = vmatpush1.xpose.msra.mxu0 0.0
    %2385 = vmatprep.subr.mxu0 0.0
    %2386 = vmatpush1.xpose.msra.mxu0 0.0
    %2387 = vmatprep.subr.mxu0 0.0
    %2388 = vmatpush1.xpose.msra.mxu0 0.0
    %2389 = vmatprep.subr.mxu0 0.0
    %2390 = vmatpush1.xpose.msra.mxu0 0.0
    %2391 = vmatprep.subr.mxu0 0.0
    %2392 = vmatpush1.xpose.msra.mxu0 0.0
    %2393 = vmatprep.subr.mxu0 0.0
    %2394 = vmatpush1.xpose.msra.mxu0 0.0
    %2395 = vmatprep.subr.mxu0 0.0
    %2396 = vmatpush1.xpose.msra.mxu0 0.0
    %2397 = vmatprep.subr.mxu0 0.0
    %2398 = vmatpush1.xpose.msra.mxu0 0.0
    %2399 = vmatprep.subr.mxu0 0.0
    %2400 = vmatpush1.xpose.msra.mxu0 0.0
    %2401 = vmatprep.subr.mxu0 0.0
    %2402 = vmatpush1.xpose.msra.mxu0 0.0
    %2403 = vmatprep.mubr.f32.mxu0 0.0
    %2404 = vmatmul.mubr.f32.gmra.mrb[0].mxu0 %v2328
    %v2405 = vpop.f32.mrb[0].mxu0
    %v2406 = vadd.f32 %v129, %v2405
    %v2407 = vpop.f32.mrb[0].mxu0
    %2408 = vmatprep.mubr.f32.mxu0 0.0
    %2409 = vmatmul.mubr.f32.gmra.mrb[0].mxu0 %v2331
    %v2410 = vpop.f32.mrb[0].mxu0
    %v2411 = vadd.f32 %v130, %v2410
    %v2412 = vpop.f32.mrb[0].mxu0
    %2413 = vdwg.mxu0
    %v2414 = vsel %vm396, %v2406, -inf
    %2415 = vmax.xlane.f32.xlu0 %v2414
    %v2416 = vpop.xlane.xlu0 %2415
    %v2417 = vsel %vm396, %v2411, -inf
    %2418 = vmax.xlane.f32.xlu0 %v2417
    %v2419 = vpop.xlane.xlu0 %2418
    %v2420 = vsub.f32 %v2406, %v2416
    %v2421 = vsub.f32 %v2411, %v2419
    %v2422 = vmul.f32 %v2420, 1.442695
    %v2423 = vpow.pop %v2422
    %v2424 = vmul.f32 %v2421, 1.442695
    %v2425 = vpow.pop %v2424
    %v2426 = vsel %vm396, %v2423, 0.0
    %2427 = vadd.xlane.f32.xlu0 %v2426
    %v2428 = vpop.xlane.xlu0 %2427
    %v2429 = vsel %vm396, %v2425, 0.0
    %2430 = vadd.xlane.f32.xlu0 %v2429
    %v2431 = vpop.xlane.xlu0 %2430
    %v2432 = vrcp.pop %v2428
    %v2433 = vrcp.pop %v2431
    %v2434 = vmul.f32 %v2423, %v2432
    %v2435 = vmul.f32 %v2425, %v2433
    %v2437 = vsel %vm396, %v2434, 0
    %v2440 = vsel %vm396, %v2435, 0
    %2442 = vmatprep.subr.mxu0 0.0
    %2443 = vmatpush1.msra.mxu0 %v2319
    %2444 = vmatprep.subr.mxu0 0.0
    %2445 = vmatpush1.msra.mxu0 %v2324
    %2446 = vmatprep.subr.mxu0 0.0
    %2447 = vmatpush1.msra.mxu0 0.0
    %2448 = vmatprep.subr.mxu0 0.0
    %2449 = vmatpush1.msra.mxu0 0.0
    %2450 = vmatprep.subr.mxu0 0.0
    %2451 = vmatpush1.msra.mxu0 0.0
    %2452 = vmatprep.subr.mxu0 0.0
    %2453 = vmatpush1.msra.mxu0 0.0
    %2454 = vmatprep.subr.mxu0 0.0
    %2455 = vmatpush1.msra.mxu0 0.0
    %2456 = vmatprep.subr.mxu0 0.0
    %2457 = vmatpush1.msra.mxu0 0.0
    %2458 = vmatprep.subr.mxu0 0.0
    %2459 = vmatpush1.msra.mxu0 0.0
    %2460 = vmatprep.subr.mxu0 0.0
    %2461 = vmatpush1.msra.mxu0 0.0
    %2462 = vmatprep.subr.mxu0 0.0
    %2463 = vmatpush1.msra.mxu0 0.0
    %2464 = vmatprep.subr.mxu0 0.0
    %2465 = vmatpush1.msra.mxu0 0.0
    %2466 = vmatprep.subr.mxu0 0.0
    %2467 = vmatpush1.msra.mxu0 0.0
    %2468 = vmatprep.subr.mxu0 0.0
    %2469 = vmatpush1.msra.mxu0 0.0
    %2470 = vmatprep.subr.mxu0 0.0
    %2471 = vmatpush1.msra.mxu0 0.0
    %2472 = vmatprep.subr.mxu0 0.0
    %2473 = vmatpush1.msra.mxu0 0.0
    %2474 = vmatprep.subr.mxu0 0.0
    %2475 = vmatpush1.msra.mxu0 0.0
    %2476 = vmatprep.subr.mxu0 0.0
    %2477 = vmatpush1.msra.mxu0 0.0
    %2478 = vmatprep.subr.mxu0 0.0
    %2479 = vmatpush1.msra.mxu0 0.0
    %2480 = vmatprep.subr.mxu0 0.0
    %2481 = vmatpush1.msra.mxu0 0.0
    %2482 = vmatprep.subr.mxu0 0.0
    %2483 = vmatpush1.msra.mxu0 0.0
    %2484 = vmatprep.subr.mxu0 0.0
    %2485 = vmatpush1.msra.mxu0 0.0
    %2486 = vmatprep.subr.mxu0 0.0
    %2487 = vmatpush1.msra.mxu0 0.0
    %2488 = vmatprep.subr.mxu0 0.0
    %2489 = vmatpush1.msra.mxu0 0.0
    %2490 = vmatprep.subr.mxu0 0.0
    %2491 = vmatpush1.msra.mxu0 0.0
    %2492 = vmatprep.subr.mxu0 0.0
    %2493 = vmatpush1.msra.mxu0 0.0
    %2494 = vmatprep.subr.mxu0 0.0
    %2495 = vmatpush1.msra.mxu0 0.0
    %2496 = vmatprep.subr.mxu0 0.0
    %2497 = vmatpush1.msra.mxu0 0.0
    %2498 = vmatprep.subr.mxu0 0.0
    %2499 = vmatpush1.msra.mxu0 0.0
    %2500 = vmatprep.subr.mxu0 0.0
    %2501 = vmatpush1.msra.mxu0 0.0
    %2502 = vmatprep.subr.mxu0 0.0
    %2503 = vmatpush1.msra.mxu0 0.0
    %2504 = vmatprep.subr.mxu0 0.0
    %2505 = vmatpush1.msra.mxu0 0.0
    %2506 = vmatprep.mubr.f32.mxu0 0.0
    %2507 = vmatmul.mubr.f32.gmra.mrb[0].mxu0 %v2437
    %v2508 = vpop.f32.mrb[0].mxu0
    %v2509 = vadd.f32 0.0, %v2508
    %v2510 = vpop.f32.mrb[0].mxu0
    %2511 = vmatprep.mubr.f32.mxu0 0.0
    %2512 = vmatmul.mubr.f32.gmra.mrb[0].mxu0 %v2440
    %v2513 = vpop.f32.mrb[0].mxu0
    %v2514 = vadd.f32 0.0, %v2513
    %v2515 = vpop.f32.mrb[0].mxu0
    %2516 = vdwg.mxu0
    %s2517 = scalar_lea.vmem %s11, 48
    %v2518 = vld [vmem:[%s2517] sm:$0xff]
    %v2519 = vld [vmem:[%s2517 + $0x8] sm:$0xff]
    %v2521 = vsel %vm396, %v2509, 0
    %v2524 = vsel %vm396, %v2514, 0
    %2526 = vmatprep.subr.mxu0 0.0
    %2527 = vmatpush1.msra.mxu0 %v2518
    %2528 = vmatprep.subr.mxu0 0.0
    %2529 = vmatpush1.msra.mxu0 %v2519
    %2530 = vmatprep.subr.mxu0 0.0
    %2531 = vmatpush1.msra.mxu0 0.0
    %2532 = vmatprep.subr.mxu0 0.0
    %2533 = vmatpush1.msra.mxu0 0.0
    %2534 = vmatprep.subr.mxu0 0.0
    %2535 = vmatpush1.msra.mxu0 0.0
    %2536 = vmatprep.subr.mxu0 0.0
    %2537 = vmatpush1.msra.mxu0 0.0
    %2538 = vmatprep.subr.mxu0 0.0
    %2539 = vmatpush1.msra.mxu0 0.0
    %2540 = vmatprep.subr.mxu0 0.0
    %2541 = vmatpush1.msra.mxu0 0.0
    %2542 = vmatprep.subr.mxu0 0.0
    %2543 = vmatpush1.msra.mxu0 0.0
    %2544 = vmatprep.subr.mxu0 0.0
    %2545 = vmatpush1.msra.mxu0 0.0
    %2546 = vmatprep.subr.mxu0 0.0
    %2547 = vmatpush1.msra.mxu0 0.0
    %2548 = vmatprep.subr.mxu0 0.0
    %2549 = vmatpush1.msra.mxu0 0.0
    %2550 = vmatprep.subr.mxu0 0.0
    %2551 = vmatpush1.msra.mxu0 0.0
    %2552 = vmatprep.subr.mxu0 0.0
    %2553 = vmatpush1.msra.mxu0 0.0
    %2554 = vmatprep.subr.mxu0 0.0
    %2555 = vmatpush1.msra.mxu0 0.0
    %2556 = vmatprep.subr.mxu0 0.0
    %2557 = vmatpush1.msra.mxu0 0.0
    %2558 = vmatprep.subr.mxu0 0.0
    %2559 = vmatpush1.msra.mxu0 0.0
    %2560 = vmatprep.subr.mxu0 0.0
    %2561 = vmatpush1.msra.mxu0 0.0
    %2562 = vmatprep.subr.mxu0 0.0
    %2563 = vmatpush1.msra.mxu0 0.0
    %2564 = vmatprep.subr.mxu0 0.0
    %2565 = vmatpush1.msra.mxu0 0.0
    %2566 = vmatprep.subr.mxu0 0.0
    %2567 = vmatpush1.msra.mxu0 0.0
    %2568 = vmatprep.subr.mxu0 0.0
    %2569 = vmatpush1.msra.mxu0 0.0
    %2570 = vmatprep.subr.mxu0 0.0
    %2571 = vmatpush1.msra.mxu0 0.0
    %2572 = vmatprep.subr.mxu0 0.0
    %2573 = vmatpush1.msra.mxu0 0.0
    %2574 = vmatprep.subr.mxu0 0.0
    %2575 = vmatpush1.msra.mxu0 0.0
    %2576 = vmatprep.subr.mxu0 0.0
    %2577 = vmatpush1.msra.mxu0 0.0
    %2578 = vmatprep.subr.mxu0 0.0
    %2579 = vmatpush1.msra.mxu0 0.0
    %2580 = vmatprep.subr.mxu0 0.0
    %2581 = vmatpush1.msra.mxu0 0.0
    %2582 = vmatprep.subr.mxu0 0.0
    %2583 = vmatpush1.msra.mxu0 0.0
    %2584 = vmatprep.subr.mxu0 0.0
    %2585 = vmatpush1.msra.mxu0 0.0
    %2586 = vmatprep.subr.mxu0 0.0
    %2587 = vmatpush1.msra.mxu0 0.0
    %2588 = vmatprep.subr.mxu0 0.0
    %2589 = vmatpush1.msra.mxu0 0.0
    %2590 = vmatprep.mubr.f32.mxu0 0.0
    %2591 = vmatmul.mubr.f32.gmra.mrb[0].mxu0 %v2521
    %v2592 = vpop.f32.mrb[0].mxu0
    %v2593 = vadd.f32 0.0, %v2592
    %v2594 = vpop.f32.mrb[0].mxu0
    %2595 = vmatprep.mubr.f32.mxu0 0.0
    %2596 = vmatmul.mubr.f32.gmra.mrb[0].mxu0 %v2524
    %v2597 = vpop.f32.mrb[0].mxu0
    %v2598 = vadd.f32 0.0, %v2597
    %v2599 = vpop.f32.mrb[0].mxu0
    %2600 = vdwg.mxu0
    %v2601 = vadd.f32 %v2061, %v2593
    %v2602 = vadd.f32 %v2062, %v2598
    %v2603 = vadd.f32 %v2601, %v1507
    %v2604 = vadd.f32 %v2602, %v1508
    %s2605 = scalar_lea.vmem %s13, 1
    %v2606 = vld [vmem:[%s2605] sm:$0x1]
    %s2607 = scalar_lea.vmem %s14, 1
    %v2608 = vld [vmem:[%s2607] sm:$0x1]
    %v2609 = vsel %vm85, %v2603, 0.0
    %2610 = vadd.xlane.f32.xlu0 %v2609
    %v2611 = vpop.xlane.xlu0 %2610
    %v2612 = vsel %vm85, %v2604, 0.0
    %2613 = vadd.xlane.f32.xlu0 %v2612
    %v2614 = vpop.xlane.xlu0 %2613
    %v2615 = vmul.f32 %v2611, %v92
    %v2616 = vmul.f32 %v2614, %v92
    %v2617 = vsub.f32 %v2603, %v2615
    %v2618 = vsub.f32 %v2604, %v2616
    %v2619 = vmul.f32 %v2617, %v2617
    %v2620 = vmul.f32 %v2618, %v2618
    %v2621 = vsel %vm85, %v2619, 0.0
    %2622 = vadd.xlane.f32.xlu0 %v2621
    %v2623 = vpop.xlane.xlu0 %2622
    %v2624 = vsel %vm85, %v2620, 0.0
    %2625 = vadd.xlane.f32.xlu0 %v2624
    %v2626 = vpop.xlane.xlu0 %2625
    %v2627 = vmul.f32 %v2623, %v92
    %v2628 = vmul.f32 %v2626, %v92
    %v2629 = vadd.f32 %v2627, 1e-12
    %v2630 = vadd.f32 %v2628, 1e-12
    %v2631 = vrsqrt.pop %v2629
    %v2632 = vrsqrt.pop %v2630
    %v2633 = vmul.f32 %v2617, %v2631
    %v2634 = vmul.f32 %v2618, %v2632
    %v2636 = vlaneseq
    %v2637 = vshrl.u32 %v2636, 7
    %v2638 = vsub.s32 0, %v2637
    %v2639 = vrot.slane %v2606, %v2638
    %v2641 = vmul.f32 %v2633, %v2639
    %v2642 = vmul.f32 %v2634, %v2639
    %v2644 = vlaneseq
    %v2645 = vshrl.u32 %v2644, 7
    %v2646 = vsub.s32 0, %v2645
    %v2647 = vrot.slane %v2608, %v2646
    %v2649 = vadd.f32 %v2641, %v2647
    %v2650 = vadd.f32 %v2642, %v2647
    %s2651 = scalar_lea.vmem %s15, 32
    %v2652 = vld [vmem:[%s2651] sm:$0xff]
    %v2653 = vld [vmem:[%s2651 + $0x8] sm:$0xff]
    %v2654 = vld [vmem:[%s2651 + $0x10] sm:$0xff]
    %v2655 = vld [vmem:[%s2651 + $0x18] sm:$0xff]
    %s2656 = scalar_lea.vmem %s16, 1
    %v2657 = vld [vmem:[%s2656] sm:$0x1]
    %v2659 = vlaneseq
    %v2660 = vshrl.u32 %v2659, 7
    %v2661 = vsub.s32 0, %v2660
    %v2662 = vrot.slane %v2657, %v2661
    %v2665 = vsel %vm85, %v2649, 0
    %v2668 = vsel %vm85, %v2650, 0
    %2670 = vmatprep.subr.mxu0 0.0
    %2671 = vmatpush1.msra.mxu0 %v2652
    %2672 = vmatprep.subr.mxu0 0.0
    %2673 = vmatpush1.msra.mxu0 %v2653
    %2674 = vmatprep.subr.mxu0 0.0
    %2675 = vmatpush1.msra.mxu0 %v2654
    %2676 = vmatprep.subr.mxu0 0.0
    %2677 = vmatpush1.msra.mxu0 %v2655
    %2678 = vmatprep.subr.mxu0 0.0
    %2679 = vmatpush1.msra.mxu0 0.0
    %2680 = vmatprep.subr.mxu0 0.0
    %2681 = vmatpush1.msra.mxu0 0.0
    %2682 = vmatprep.subr.mxu0 0.0
    %2683 = vmatpush1.msra.mxu0 0.0
    %2684 = vmatprep.subr.mxu0 0.0
    %2685 = vmatpush1.msra.mxu0 0.0
    %2686 = vmatprep.subr.mxu0 0.0
    %2687 = vmatpush1.msra.mxu0 0.0
    %2688 = vmatprep.subr.mxu0 0.0
    %2689 = vmatpush1.msra.mxu0 0.0
    %2690 = vmatprep.subr.mxu0 0.0
    %2691 = vmatpush1.msra.mxu0 0.0
    %2692 = vmatprep.subr.mxu0 0.0
    %2693 = vmatpush1.msra.mxu0 0.0
    %2694 = vmatprep.subr.mxu0 0.0
    %2695 = vmatpush1.msra.mxu0 0.0
    %2696 = vmatprep.subr.mxu0 0.0
    %2697 = vmatpush1.msra.mxu0 0.0
    %2698 = vmatprep.subr.mxu0 0.0
    %2699 = vmatpush1.msra.mxu0 0.0
    %2700 = vmatprep.subr.mxu0 0.0
    %2701 = vmatpush1.msra.mxu0 0.0
    %2702 = vmatprep.subr.mxu0 0.0
    %2703 = vmatpush1.msra.mxu0 0.0
    %2704 = vmatprep.subr.mxu0 0.0
    %2705 = vmatpush1.msra.mxu0 0.0
    %2706 = vmatprep.subr.mxu0 0.0
    %2707 = vmatpush1.msra.mxu0 0.0
    %2708 = vmatprep.subr.mxu0 0.0
    %2709 = vmatpush1.msra.mxu0 0.0
    %2710 = vmatprep.subr.mxu0 0.0
    %2711 = vmatpush1.msra.mxu0 0.0
    %2712 = vmatprep.subr.mxu0 0.0
    %2713 = vmatpush1.msra.mxu0 0.0
    %2714 = vmatprep.subr.mxu0 0.0
    %2715 = vmatpush1.msra.mxu0 0.0
    %2716 = vmatprep.subr.mxu0 0.0
    %2717 = vmatpush1.msra.mxu0 0.0
    %2718 = vmatprep.subr.mxu0 0.0
    %2719 = vmatpush1.msra.mxu0 0.0
    %2720 = vmatprep.subr.mxu0 0.0
    %2721 = vmatpush1.msra.mxu0 0.0
    %2722 = vmatprep.subr.mxu0 0.0
    %2723 = vmatpush1.msra.mxu0 0.0
    %2724 = vmatprep.subr.mxu0 0.0
    %2725 = vmatpush1.msra.mxu0 0.0
    %2726 = vmatprep.subr.mxu0 0.0
    %2727 = vmatpush1.msra.mxu0 0.0
    %2728 = vmatprep.subr.mxu0 0.0
    %2729 = vmatpush1.msra.mxu0 0.0
    %2730 = vmatprep.subr.mxu0 0.0
    %2731 = vmatpush1.msra.mxu0 0.0
    %2732 = vmatprep.subr.mxu0 0.0
    %2733 = vmatpush1.msra.mxu0 0.0
    %2734 = vmatprep.mubr.f32.mxu0 0.0
    %2735 = vmatmul.mubr.f32.gmra.mrb[0].mxu0 %v2665
    %v2736 = vpop.f32.mrb[0].mxu0
    %v2737 = vadd.f32 %v2662, %v2736
    %v2738 = vpop.f32.mrb[0].mxu0
    %2739 = vmatprep.mubr.f32.mxu0 0.0
    %2740 = vmatmul.mubr.f32.gmra.mrb[0].mxu0 %v2668
    %v2741 = vpop.f32.mrb[0].mxu0
    %v2742 = vadd.f32 %v2662, %v2741
    %v2743 = vpop.f32.mrb[0].mxu0
    %2744 = vdwg.mxu0
    %v2745 = vmul.f32 %v2737, 0.5
    %v2746 = vmul.f32 %v2742, 0.5
    %v2747 = vmul.f32 %v2737, 0.70710677
    %v2748 = vmul.f32 %v2742, 0.70710677
    %v2749 = verf.f32.pop %v2747
    %v2750 = verf.f32.pop %v2748
    %v2751 = vadd.f32 %v2749, 1.0
    %v2752 = vadd.f32 %v2750, 1.0
    %v2753 = vmul.f32 %v2745, %v2751
    %v2754 = vmul.f32 %v2746, %v2752
    %s2755 = scalar_lea.vmem %s17, 64
    %v2756 = vld [vmem:[%s2755] sm:$0xff]
    %v2757 = vld [vmem:[%s2755 + $0x8] sm:$0xff]
    %v2758 = vld [vmem:[%s2755 + $0x10] sm:$0xff]
    %v2759 = vld [vmem:[%s2755 + $0x18] sm:$0xff]
    %v2760 = vld [vmem:[%s2755 + $0x20] sm:$0xff]
    %v2761 = vld [vmem:[%s2755 + $0x28] sm:$0xff]
    %v2762 = vld [vmem:[%s2755 + $0x30] sm:$0xff]
    %v2763 = vld [vmem:[%s2755 + $0x38] sm:$0xff]
    %s2764 = scalar_lea.vmem %s18, 1
    %v2765 = vld [vmem:[%s2764] sm:$0x1]
    %v2767 = vlaneseq
    %v2768 = vshrl.u32 %v2767, 7
    %v2769 = vsub.s32 0, %v2768
    %v2770 = vrot.slane %v2765, %v2769
    %v2773 = vsel %vm1381, %v2753, 0
    %v2776 = vsel %vm1381, %v2754, 0
    %2778 = vmatprep.subr.mxu0 0.0
    %2779 = vmatpush1.msra.mxu0 %v2756
    %2780 = vmatprep.subr.mxu0 0.0
    %2781 = vmatpush1.msra.mxu0 %v2757
    %2782 = vmatprep.subr.mxu0 0.0
    %2783 = vmatpush1.msra.mxu0 %v2758
    %2784 = vmatprep.subr.mxu0 0.0
    %2785 = vmatpush1.msra.mxu0 %v2759
    %2786 = vmatprep.subr.mxu0 0.0
    %2787 = vmatpush1.msra.mxu0 %v2760
    %2788 = vmatprep.subr.mxu0 0.0
    %2789 = vmatpush1.msra.mxu0 %v2761
    %2790 = vmatprep.subr.mxu0 0.0
    %2791 = vmatpush1.msra.mxu0 %v2762
    %2792 = vmatprep.subr.mxu0 0.0
    %2793 = vmatpush1.msra.mxu0 %v2763
    %2794 = vmatprep.subr.mxu0 0.0
    %2795 = vmatpush1.msra.mxu0 0.0
    %2796 = vmatprep.subr.mxu0 0.0
    %2797 = vmatpush1.msra.mxu0 0.0
    %2798 = vmatprep.subr.mxu0 0.0
    %2799 = vmatpush1.msra.mxu0 0.0
    %2800 = vmatprep.subr.mxu0 0.0
    %2801 = vmatpush1.msra.mxu0 0.0
    %2802 = vmatprep.subr.mxu0 0.0
    %2803 = vmatpush1.msra.mxu0 0.0
    %2804 = vmatprep.subr.mxu0 0.0
    %2805 = vmatpush1.msra.mxu0 0.0
    %2806 = vmatprep.subr.mxu0 0.0
    %2807 = vmatpush1.msra.mxu0 0.0
    %2808 = vmatprep.subr.mxu0 0.0
    %2809 = vmatpush1.msra.mxu0 0.0
    %2810 = vmatprep.subr.mxu0 0.0
    %2811 = vmatpush1.msra.mxu0 0.0
    %2812 = vmatprep.subr.mxu0 0.0
    %2813 = vmatpush1.msra.mxu0 0.0
    %2814 = vmatprep.subr.mxu0 0.0
    %2815 = vmatpush1.msra.mxu0 0.0
    %2816 = vmatprep.subr.mxu0 0.0
    %2817 = vmatpush1.msra.mxu0 0.0
    %2818 = vmatprep.subr.mxu0 0.0
    %2819 = vmatpush1.msra.mxu0 0.0
    %2820 = vmatprep.subr.mxu0 0.0
    %2821 = vmatpush1.msra.mxu0 0.0
    %2822 = vmatprep.subr.mxu0 0.0
    %2823 = vmatpush1.msra.mxu0 0.0
    %2824 = vmatprep.subr.mxu0 0.0
    %2825 = vmatpush1.msra.mxu0 0.0
    %2826 = vmatprep.subr.mxu0 0.0
    %2827 = vmatpush1.msra.mxu0 0.0
    %2828 = vmatprep.subr.mxu0 0.0
    %2829 = vmatpush1.msra.mxu0 0.0
    %2830 = vmatprep.subr.mxu0 0.0
    %2831 = vmatpush1.msra.mxu0 0.0
    %2832 = vmatprep.subr.mxu0 0.0
    %2833 = vmatpush1.msra.mxu0 0.0
    %2834 = vmatprep.subr.mxu0 0.0
    %2835 = vmatpush1.msra.mxu0 0.0
    %2836 = vmatprep.subr.mxu0 0.0
    %2837 = vmatpush1.msra.mxu0 0.0
    %2838 = vmatprep.subr.mxu0 0.0
    %2839 = vmatpush1.msra.mxu0 0.0
    %2840 = vmatprep.subr.mxu0 0.0
    %2841 = vmatpush1.msra.mxu0 0.0
    %2842 = vmatprep.mubr.f32.mxu0 0.0
    %2843 = vmatmul.mubr.f32.gmra.mrb[0].mxu0 %v2773
    %v2844 = vpop.f32.mrb[0].mxu0
    %v2845 = vadd.f32 %v2770, %v2844
    %v2846 = vpop.f32.mrb[0].mxu0
    %2847 = vmatprep.mubr.f32.mxu0 0.0
    %2848 = vmatmul.mubr.f32.gmra.mrb[0].mxu0 %v2776
    %v2849 = vpop.f32.mrb[0].mxu0
    %v2850 = vadd.f32 %v2770, %v2849
    %v2851 = vpop.f32.mrb[0].mxu0
    %2852 = vdwg.mxu0
    %v2853 = vadd.f32 %v2845, %v2649
    %v2854 = vadd.f32 %v2850, %v2650
    %s2855 = scalar_lea.vmem %s19, 1
    %v2856 = vld [vmem:[%s2855] sm:$0x1]
    %s2857 = scalar_lea.vmem %s20, 1
    %v2858 = vld [vmem:[%s2857] sm:$0x1]
    %v2859 = vsel %vm85, %v2853, 0.0
    %2860 = vadd.xlane.f32.xlu0 %v2859
    %v2861 = vpop.xlane.xlu0 %2860
    %v2862 = vsel %vm85, %v2854, 0.0
    %2863 = vadd.xlane.f32.xlu0 %v2862
    %v2864 = vpop.xlane.xlu0 %2863
    %v2865 = vmul.f32 %v2861, %v92
    %v2866 = vmul.f32 %v2864, %v92
    %v2867 = vsub.f32 %v2853, %v2865
    %v2868 = vsub.f32 %v2854, %v2866
    %v2869 = vmul.f32 %v2867, %v2867
    %v2870 = vmul.f32 %v2868, %v2868
    %v2871 = vsel %vm85, %v2869, 0.0
    %2872 = vadd.xlane.f32.xlu0 %v2871
    %v2873 = vpop.xlane.xlu0 %2872
    %v2874 = vsel %vm85, %v2870, 0.0
    %2875 = vadd.xlane.f32.xlu0 %v2874
    %v2876 = vpop.xlane.xlu0 %2875
    %v2877 = vmul.f32 %v2873, %v92
    %v2878 = vmul.f32 %v2876, %v92
    %v2879 = vadd.f32 %v2877, 1e-12
    %v2880 = vadd.f32 %v2878, 1e-12
    %v2881 = vrsqrt.pop %v2879
    %v2882 = vrsqrt.pop %v2880
    %v2883 = vmul.f32 %v2867, %v2881
    %v2884 = vmul.f32 %v2868, %v2882
    %v2886 = vlaneseq
    %v2887 = vshrl.u32 %v2886, 7
    %v2888 = vsub.s32 0, %v2887
    %v2889 = vrot.slane %v2856, %v2888
    %v2891 = vmul.f32 %v2883, %v2889
    %v2892 = vmul.f32 %v2884, %v2889
    %v2894 = vlaneseq
    %v2895 = vshrl.u32 %v2894, 7
    %v2896 = vsub.s32 0, %v2895
    %v2897 = vrot.slane %v2858, %v2896
    %v2899 = vadd.f32 %v2891, %v2897
    %v2900 = vadd.f32 %v2892, %v2897
    %v2901 = vld [vmem:[%s2] sm:$0x3]
    %v2903 = vsel %vm396, %v2901, 0
    %2905 = vmatprep.subr.mxu0 0.0
    %2906 = vmatpush1.msra.mxu0 %v2899
    %2907 = vmatprep.subr.mxu0 0.0
    %2908 = vmatpush1.msra.mxu0 %v2900
    %2909 = vmatprep.subr.mxu0 0.0
    %2910 = vmatpush1.msra.mxu0 0.0
    %2911 = vmatprep.subr.mxu0 0.0
    %2912 = vmatpush1.msra.mxu0 0.0
    %2913 = vmatprep.subr.mxu0 0.0
    %2914 = vmatpush1.msra.mxu0 0.0
    %2915 = vmatprep.subr.mxu0 0.0
    %2916 = vmatpush1.msra.mxu0 0.0
    %2917 = vmatprep.subr.mxu0 0.0
    %2918 = vmatpush1.msra.mxu0 0.0
    %2919 = vmatprep.subr.mxu0 0.0
    %2920 = vmatpush1.msra.mxu0 0.0
    %2921 = vmatprep.subr.mxu0 0.0
    %2922 = vmatpush1.msra.mxu0 0.0
    %2923 = vmatprep.subr.mxu0 0.0
    %2924 = vmatpush1.msra.mxu0 0.0
    %2925 = vmatprep.subr.mxu0 0.0
    %2926 = vmatpush1.msra.mxu0 0.0
    %2927 = vmatprep.subr.mxu0 0.0
    %2928 = vmatpush1.msra.mxu0 0.0
    %2929 = vmatprep.subr.mxu0 0.0
    %2930 = vmatpush1.msra.mxu0 0.0
    %2931 = vmatprep.subr.mxu0 0.0
    %2932 = vmatpush1.msra.mxu0 0.0
    %2933 = vmatprep.subr.mxu0 0.0
    %2934 = vmatpush1.msra.mxu0 0.0
    %2935 = vmatprep.subr.mxu0 0.0
    %2936 = vmatpush1.msra.mxu0 0.0
    %2937 = vmatprep.subr.mxu0 0.0
    %2938 = vmatpush1.msra.mxu0 0.0
    %2939 = vmatprep.subr.mxu0 0.0
    %2940 = vmatpush1.msra.mxu0 0.0
    %2941 = vmatprep.subr.mxu0 0.0
    %2942 = vmatpush1.msra.mxu0 0.0
    %2943 = vmatprep.subr.mxu0 0.0
    %2944 = vmatpush1.msra.mxu0 0.0
    %2945 = vmatprep.subr.mxu0 0.0
    %2946 = vmatpush1.msra.mxu0 0.0
    %2947 = vmatprep.subr.mxu0 0.0
    %2948 = vmatpush1.msra.mxu0 0.0
    %2949 = vmatprep.subr.mxu0 0.0
    %2950 = vmatpush1.msra.mxu0 0.0
    %2951 = vmatprep.subr.mxu0 0.0
    %2952 = vmatpush1.msra.mxu0 0.0
    %2953 = vmatprep.subr.mxu0 0.0
    %2954 = vmatpush1.msra.mxu0 0.0
    %2955 = vmatprep.subr.mxu0 0.0
    %2956 = vmatpush1.msra.mxu0 0.0
    %2957 = vmatprep.subr.mxu0 0.0
    %2958 = vmatpush1.msra.mxu0 0.0
    %2959 = vmatprep.subr.mxu0 0.0
    %2960 = vmatpush1.msra.mxu0 0.0
    %2961 = vmatprep.subr.mxu0 0.0
    %2962 = vmatpush1.msra.mxu0 0.0
    %2963 = vmatprep.subr.mxu0 0.0
    %2964 = vmatpush1.msra.mxu0 0.0
    %2965 = vmatprep.subr.mxu0 0.0
    %2966 = vmatpush1.msra.mxu0 0.0
    %2967 = vmatprep.subr.mxu0 0.0
    %2968 = vmatpush1.msra.mxu0 0.0
    %2969 = vmatprep.mubr.f32.mxu0 0.0
    %2970 = vmatmul.mubr.f32.gmra.mrb[0].mxu0 %v2903
    %v2971 = vpop.f32.mrb[0].mxu0
    %v2972 = vadd.f32 0.0, %v2971
    %v2973 = vpop.f32.mrb[0].mxu0
    %2974 = vdwg.mxu0
    %v2975 = vld [vmem:[%s21] sm:$0xff]
    %v2976 = vld [vmem:[%s21 + $0x8] sm:$0xff]
    %v2977 = vld [vmem:[%s21 + $0x10] sm:$0xff]
    %v2978 = vld [vmem:[%s21 + $0x18] sm:$0xff]
    %v2979 = vld [vmem:[%s22] sm:$0x1]
    %v2981 = vlaneseq
    %v2982 = vshrl.u32 %v2981, 7
    %v2983 = vsub.s32 0, %v2982
    %v2984 = vrot.slane %v2979, %v2983
    %v2987 = vsel %vm85, %v2972, 0
    %2989 = vmatprep.subr.mxu0 0.0
    %2990 = vmatpush1.msra.mxu0 %v2975
    %2991 = vmatprep.subr.mxu0 0.0
    %2992 = vmatpush1.msra.mxu0 %v2976
    %2993 = vmatprep.subr.mxu0 0.0
    %2994 = vmatpush1.msra.mxu0 %v2977
    %2995 = vmatprep.subr.mxu0 0.0
    %2996 = vmatpush1.msra.mxu0 %v2978
    %2997 = vmatprep.subr.mxu0 0.0
    %2998 = vmatpush1.msra.mxu0 0.0
    %2999 = vmatprep.subr.mxu0 0.0
    %3000 = vmatpush1.msra.mxu0 0.0
    %3001 = vmatprep.subr.mxu0 0.0
    %3002 = vmatpush1.msra.mxu0 0.0
    %3003 = vmatprep.subr.mxu0 0.0
    %3004 = vmatpush1.msra.mxu0 0.0
    %3005 = vmatprep.subr.mxu0 0.0
    %3006 = vmatpush1.msra.mxu0 0.0
    %3007 = vmatprep.subr.mxu0 0.0
    %3008 = vmatpush1.msra.mxu0 0.0
    %3009 = vmatprep.subr.mxu0 0.0
    %3010 = vmatpush1.msra.mxu0 0.0
    %3011 = vmatprep.subr.mxu0 0.0
    %3012 = vmatpush1.msra.mxu0 0.0
    %3013 = vmatprep.subr.mxu0 0.0
    %3014 = vmatpush1.msra.mxu0 0.0
    %3015 = vmatprep.subr.mxu0 0.0
    %3016 = vmatpush1.msra.mxu0 0.0
    %3017 = vmatprep.subr.mxu0 0.0
    %3018 = vmatpush1.msra.mxu0 0.0
    %3019 = vmatprep.subr.mxu0 0.0
    %3020 = vmatpush1.msra.mxu0 0.0
    %3021 = vmatprep.subr.mxu0 0.0
    %3022 = vmatpush1.msra.mxu0 0.0
    %3023 = vmatprep.subr.mxu0 0.0
    %3024 = vmatpush1.msra.mxu0 0.0
    %3025 = vmatprep.subr.mxu0 0.0
    %3026 = vmatpush1.msra.mxu0 0.0
    %3027 = vmatprep.subr.mxu0 0.0
    %3028 = vmatpush1.msra.mxu0 0.0
    %3029 = vmatprep.subr.mxu0 0.0
    %3030 = vmatpush1.msra.mxu0 0.0
    %3031 = vmatprep.subr.mxu0 0.0
    %3032 = vmatpush1.msra.mxu0 0.0
    %3033 = vmatprep.subr.mxu0 0.0
    %3034 = vmatpush1.msra.mxu0 0.0
    %3035 = vmatprep.subr.mxu0 0.0
    %3036 = vmatpush1.msra.mxu0 0.0
    %3037 = vmatprep.subr.mxu0 0.0
    %3038 = vmatpush1.msra.mxu0 0.0
    %3039 = vmatprep.subr.mxu0 0.0
    %3040 = vmatpush1.msra.mxu0 0.0
    %3041 = vmatprep.subr.mxu0 0.0
    %3042 = vmatpush1.msra.mxu0 0.0
    %3043 = vmatprep.subr.mxu0 0.0
    %3044 = vmatpush1.msra.mxu0 0.0
    %3045 = vmatprep.subr.mxu0 0.0
    %3046 = vmatpush1.msra.mxu0 0.0
    %3047 = vmatprep.subr.mxu0 0.0
    %3048 = vmatpush1.msra.mxu0 0.0
    %3049 = vmatprep.subr.mxu0 0.0
    %3050 = vmatpush1.msra.mxu0 0.0
    %3051 = vmatprep.subr.mxu0 0.0
    %3052 = vmatpush1.msra.mxu0 0.0
    %3053 = vmatprep.mubr.f32.mxu0 0.0
    %3054 = vmatmul.mubr.f32.gmra.mrb[0].mxu0 %v2987
    %v3055 = vpop.f32.mrb[0].mxu0
    %v3056 = vadd.f32 %v2984, %v3055
    %v3057 = vpop.f32.mrb[0].mxu0
    %3058 = vdwg.mxu0
    %v3059 = vtanh.pop %v3056
    %v3060 = vld [vmem:[%s23] sm:$0xff]
    %v3061 = vld [vmem:[%s23 + $0x8] sm:$0xff]
    %v3062 = vld [vmem:[%s23 + $0x10] sm:$0xff]
    %v3063 = vld [vmem:[%s23 + $0x18] sm:$0xff]
    %v3064 = vld [vmem:[%s24] sm:$0x1]
    %v3066 = vlaneseq
    %v3067 = vshrl.u32 %v3066, 7
    %v3068 = vsub.s32 0, %v3067
    %v3069 = vrot.slane %v3064, %v3068
    %v3072 = vsel %vm85, %v3059, 0
    %3074 = vmatprep.subr.mxu0 0.0
    %3075 = vmatpush1.msra.mxu0 %v3060
    %3076 = vmatprep.subr.mxu0 0.0
    %3077 = vmatpush1.msra.mxu0 %v3061
    %3078 = vmatprep.subr.mxu0 0.0
    %3079 = vmatpush1.msra.mxu0 %v3062
    %3080 = vmatprep.subr.mxu0 0.0
    %3081 = vmatpush1.msra.mxu0 %v3063
    %3082 = vmatprep.subr.mxu0 0.0
    %3083 = vmatpush1.msra.mxu0 0.0
    %3084 = vmatprep.subr.mxu0 0.0
    %3085 = vmatpush1.msra.mxu0 0.0
    %3086 = vmatprep.subr.mxu0 0.0
    %3087 = vmatpush1.msra.mxu0 0.0
    %3088 = vmatprep.subr.mxu0 0.0
    %3089 = vmatpush1.msra.mxu0 0.0
    %3090 = vmatprep.subr.mxu0 0.0
    %3091 = vmatpush1.msra.mxu0 0.0
    %3092 = vmatprep.subr.mxu0 0.0
    %3093 = vmatpush1.msra.mxu0 0.0
    %3094 = vmatprep.subr.mxu0 0.0
    %3095 = vmatpush1.msra.mxu0 0.0
    %3096 = vmatprep.subr.mxu0 0.0
    %3097 = vmatpush1.msra.mxu0 0.0
    %3098 = vmatprep.subr.mxu0 0.0
    %3099 = vmatpush1.msra.mxu0 0.0
    %3100 = vmatprep.subr.mxu0 0.0
    %3101 = vmatpush1.msra.mxu0 0.0
    %3102 = vmatprep.subr.mxu0 0.0
    %3103 = vmatpush1.msra.mxu0 0.0
    %3104 = vmatprep.subr.mxu0 0.0
    %3105 = vmatpush1.msra.mxu0 0.0
    %3106 = vmatprep.subr.mxu0 0.0
    %3107 = vmatpush1.msra.mxu0 0.0
    %3108 = vmatprep.subr.mxu0 0.0
    %3109 = vmatpush1.msra.mxu0 0.0
    %3110 = vmatprep.subr.mxu0 0.0
    %3111 = vmatpush1.msra.mxu0 0.0
    %3112 = vmatprep.subr.mxu0 0.0
    %3113 = vmatpush1.msra.mxu0 0.0
    %3114 = vmatprep.subr.mxu0 0.0
    %3115 = vmatpush1.msra.mxu0 0.0
    %3116 = vmatprep.subr.mxu0 0.0
    %3117 = vmatpush1.msra.mxu0 0.0
    %3118 = vmatprep.subr.mxu0 0.0
    %3119 = vmatpush1.msra.mxu0 0.0
    %3120 = vmatprep.subr.mxu0 0.0
    %3121 = vmatpush1.msra.mxu0 0.0
    %3122 = vmatprep.subr.mxu0 0.0
    %3123 = vmatpush1.msra.mxu0 0.0
    %3124 = vmatprep.subr.mxu0 0.0
    %3125 = vmatpush1.msra.mxu0 0.0
    %3126 = vmatprep.subr.mxu0 0.0
    %3127 = vmatpush1.msra.mxu0 0.0
    %3128 = vmatprep.subr.mxu0 0.0
    %3129 = vmatpush1.msra.mxu0 0.0
    %3130 = vmatprep.subr.mxu0 0.0
    %3131 = vmatpush1.msra.mxu0 0.0
    %3132 = vmatprep.subr.mxu0 0.0
    %3133 = vmatpush1.msra.mxu0 0.0
    %3134 = vmatprep.subr.mxu0 0.0
    %3135 = vmatpush1.msra.mxu0 0.0
    %3136 = vmatprep.subr.mxu0 0.0
    %3137 = vmatpush1.msra.mxu0 0.0
    %3138 = vmatprep.mubr.f32.mxu0 0.0
    %3139 = vmatmul.mubr.f32.gmra.mrb[0].mxu0 %v3072
    %v3140 = vpop.f32.mrb[0].mxu0
    %v3141 = vadd.f32 %v3069, %v3140
    %v3142 = vpop.f32.mrb[0].mxu0
    %3143 = vdwg.mxu0
    %3144 = vst [vmem:[#allocation2] sm:$0x3] %v3141
    // Predicated region
    $region102: #{bert_sequence_classifier.1} parent=1 // pred_check
      _
    $region103: #{bert_sequence_classifier.1} parent=1 // pred_check_branch
      %3146 = sbr.rel (0) target = $region105
    $region104: #{bert_sequence_classifier.1} parent=1 // pred_region
      %s3148 = ssub.s32 32, 32
      %3149 = vsyncadd [#allocation3], %s3148
      %s3151 = sshll.u32 [#allocation2], 4
      %s3152 = int_to_ptr.vmem [resolvable:$true] %s3151
      %3154 = dma.vmem_to_hbm [thread:$0]  %s3152, 32, %s25, [#allocation3]
    $region105: #{bert_sequence_classifier.1} parent=1 // pred_fallthru
      _
    // Predicated region
    $region106: #{bert_sequence_classifier.1} parent=1 // pred_check
      _
    $region107: #{bert_sequence_classifier.1} parent=1 // pred_check_branch
      %3156 = sbr.rel (0) target = $region109
    $region108: #{bert_sequence_classifier.1} parent=1 // pred_region
      %3157 = dma.done [#allocation3], 32
    $region109: #{bert_sequence_classifier.1} parent=1 // pred_fallthru
      _
    %3158 = vsyncpa [#allocation3], 1

</llo_original>
